<compile_context>
chip_gen: v7x
topology: tpu7x:2x2x1
jax: 0.10.0
libtpu: 0.0.40
codegen_flags: <defaults>
</compile_context>

<pallas_src>
import jax
import jax.numpy as jnp
from jax.experimental import pallas as pl
from jax.experimental.pallas import tpu as pltpu

# ---- scaled-down GPT hyperparameters (structure identical to the module) ----
n_embd = 128
n_head = 4
head_size = n_embd // n_head          # 32
n_layer = 2
block_size = 16                       # max positions
vocab_size = 256
LN_EPS = 1e-5                         # nn.LayerNorm default
NEG_INF = -1e30                       # finite "-inf" for the causal mask


# ------------------------------ in-kernel helpers -----------------------------
def _layer_norm(x, g, b):
    # f32 statistics on the VPU (v5e has no bf16 VPU path).
    mu = jnp.mean(x, axis=-1, keepdims=True)
    var = jnp.mean(jnp.square(x - mu), axis=-1, keepdims=True)
    return (x - mu) * jax.lax.rsqrt(var + LN_EPS) * g + b


def _dot(a, w):
    # bf16 MXU inputs, f32 accumulate (weights are stored bf16).
    return jnp.dot(a.astype(jnp.bfloat16), w, preferred_element_type=jnp.float32)


# ------------------------------- fused kernel ---------------------------------
def _gpt_kernel(idx_ref, tok_ref, pos_ref,
                ln1g_ref, ln1b_ref, wqkv_ref, wo_ref, bo_ref,
                ln2g_ref, ln2b_ref, w1_ref, b1_ref, w2_ref, b2_ref,
                lnfg_ref, lnfb_ref, lmw_ref, lmb_ref,
                o_ref):
    """Full GPT forward for one batch element (one grid step), all in VMEM."""
    T = idx_ref.shape[0]
    C = n_embd
    H, hs = n_head, head_size

    # ---- embedding: one-hot token gather (bf16 MXU) + positional broadcast add
    idx = idx_ref[...]                                               # (T, 1) i32
    voc = jax.lax.broadcasted_iota(jnp.int32, (T, vocab_size), 1)
    tok_oh = (idx == voc).astype(jnp.bfloat16)                       # (T, V) bf16
    x = jnp.dot(tok_oh, tok_ref[...], preferred_element_type=jnp.float32)
    x = x + pos_ref[0:T, :].astype(jnp.float32)                      # (T, C) f32

    # ---- causal mask: plain triangular compare (per-batch, no //T %T)
    ri = jax.lax.broadcasted_iota(jnp.int32, (T, T), 0)
    ci = jax.lax.broadcasted_iota(jnp.int32, (T, T), 1)
    causal = ci <= ri                                                # (T, T) bool
    scale = head_size ** -0.5

    def split_heads(t):                                              # (T,C)->(H,T,hs)
        return t.reshape(T, H, hs).transpose(1, 0, 2)

    for l in range(n_layer):                                         # static unroll
        # --- self-attention branch: x + proj(MHA(ln1(x))) + bo ------------
        h = _layer_norm(x, ln1g_ref[l], ln1b_ref[l])
        qkv = _dot(h, wqkv_ref[l])                                   # (T, 3C) f32
        q, k, v = qkv[:, :C], qkv[:, C:2 * C], qkv[:, 2 * C:]

        qh = split_heads(q).astype(jnp.bfloat16)                     # (H, T, hs)
        kh = split_heads(k).astype(jnp.bfloat16)
        vh = split_heads(v).astype(jnp.bfloat16)

        s = jnp.einsum("htd,hsd->hts", qh, kh,
                       preferred_element_type=jnp.float32) * scale   # (H, T, T)
        s = jnp.where(causal[None], s, NEG_INF)
        s = s - jnp.max(s, axis=-1, keepdims=True)
        p = jnp.exp(s)
        p = p * pl.reciprocal(jnp.sum(p, axis=-1, keepdims=True), approx=True)
        o = jnp.einsum("hts,hsd->htd", p.astype(jnp.bfloat16), vh,
                       preferred_element_type=jnp.float32)           # (H, T, hs)
        attn = o.transpose(1, 0, 2).reshape(T, C)                    # concat heads
        x = x + _dot(attn, wo_ref[l]) + bo_ref[l]                    # fused residual

        # --- feed-forward branch: x + W2(relu(W1(ln2(x)) + b1)) + b2 -------
        h2 = _layer_norm(x, ln2g_ref[l], ln2b_ref[l])
        f = jnp.maximum(_dot(h2, w1_ref[l]) + b1_ref[l], 0.0)
        x = x + _dot(f, w2_ref[l]) + b2_ref[l]                       # fused residual

    # ---- ln_f + lm_head: lane-dense (T, vocab) logits slab
    hf = _layer_norm(x, lnfg_ref[...], lnfb_ref[...])
    o_ref[...] = _dot(hf, lmw_ref[...]) + lmb_ref[...]


# ------------------------------- forward pass -----------------------------------
def gpt_forward(params, idx):
    """idx: (B, T) int32 token ids -> logits (B, T, vocab_size)."""
    B, T = idx.shape
    M = B * T
    p = params

    def resident(arr):
        # Full-array block with a constant index_map: fetched once, stays in VMEM.
        return pl.BlockSpec(arr.shape, lambda b, _nd=arr.ndim: (0,) * _nd)

    in_specs = [
        pl.BlockSpec((T, 1), lambda b: (b, 0)),                      # idx (per batch)
        resident(p["tok_emb"]), resident(p["pos_emb"]),
        resident(p["ln1_g"]), resident(p["ln1_b"]),
        resident(p["wqkv"]), resident(p["wo"]), resident(p["bo"]),
        resident(p["ln2_g"]), resident(p["ln2_b"]),
        resident(p["w1"]), resident(p["b1"]),
        resident(p["w2"]), resident(p["b2"]),
        resident(p["ln_f_g"]), resident(p["ln_f_b"]),
        resident(p["lm_head_w"]), resident(p["lm_head_b"]),
    ]
    out_spec = pl.BlockSpec((T, vocab_size), lambda b: (b, 0))

    logits = pl.pallas_call(
        _gpt_kernel,
        grid=(B,),
        in_specs=in_specs,
        out_specs=out_spec,
        out_shape=jax.ShapeDtypeStruct((M, vocab_size), jnp.float32),
        compiler_params=pltpu.CompilerParams(
            dimension_semantics=("parallel",)),   # v7x: 2 TCs split the batch
    )(idx.reshape(M, 1).astype(jnp.int32),
      p["tok_emb"], p["pos_emb"],
      p["ln1_g"], p["ln1_b"], p["wqkv"], p["wo"], p["bo"],
      p["ln2_g"], p["ln2_b"], p["w1"], p["b1"], p["w2"], p["b2"],
      p["ln_f_g"], p["ln_f_b"], p["lm_head_w"], p["lm_head_b"])
    return logits.reshape(B, T, vocab_size)


# ---------------------------- parameter setup ----------------------------------
def init_params(key):
    std = 0.02

    def normal(k, shape, dtype):
        return (std * jax.random.normal(k, shape, jnp.float32)).astype(dtype)

    L, C, V, P = n_layer, n_embd, vocab_size, block_size
    keys = jax.random.split(key, 7)
    return {
        "tok_emb": normal(keys[0], (V, C), jnp.bfloat16),
        "pos_emb": normal(keys[1], (P, C), jnp.bfloat16),
        # q|k|v weights concatenated along the output dim (bias-free), per layer.
        "wqkv": normal(keys[2], (L, C, 3 * C), jnp.bfloat16),
        "wo": normal(keys[3], (L, C, C), jnp.bfloat16),
        "bo": jnp.zeros((L, 1, C), jnp.float32),
        "w1": normal(keys[4], (L, C, 4 * C), jnp.bfloat16),
        "b1": jnp.zeros((L, 1, 4 * C), jnp.float32),
        "w2": normal(keys[5], (L, 4 * C, C), jnp.bfloat16),
        "b2": jnp.zeros((L, 1, C), jnp.float32),
        "ln1_g": jnp.ones((L, 1, C), jnp.float32),
        "ln1_b": jnp.zeros((L, 1, C), jnp.float32),
        "ln2_g": jnp.ones((L, 1, C), jnp.float32),
        "ln2_b": jnp.zeros((L, 1, C), jnp.float32),
        "ln_f_g": jnp.ones((1, C), jnp.float32),
        "ln_f_b": jnp.zeros((1, C), jnp.float32),
        "lm_head_w": normal(keys[6], (C, V), jnp.bfloat16),
        "lm_head_b": jnp.zeros((1, V), jnp.float32),
    }


# --------------------------- pure-JAX f32 reference ------------------------------
def gpt_forward_ref(params, idx):
    B, T = idx.shape
    f32 = lambda a: a.astype(jnp.float32)

    def ln(x, g, b):
        mu = jnp.mean(x, -1, keepdims=True)
        var = jnp.mean((x - mu) ** 2, -1, keepdims=True)
        return (x - mu) / jnp.sqrt(var + LN_EPS) * g + b

    x = f32(params["tok_emb"])[idx] + f32(params["pos_emb"])[jnp.arange(T)][None]
    for l in range(n_layer):
        h = ln(x, params["ln1_g"][l], params["ln1_b"][l])
        qkv = h @ f32(params["wqkv"][l])
        q, k, v = jnp.split(qkv, 3, axis=-1)

        def heads(t):
            return t.reshape(B, T, n_head, head_size).transpose(0, 2, 1, 3)

        qh, kh, vh = heads(q), heads(k), heads(v)
        s = jnp.einsum("bhid,bhjd->bhij", qh, kh) * (head_size ** -0.5)
        causal = jnp.tril(jnp.ones((T, T), bool))
        s = jnp.where(causal, s, -jnp.inf)
        p = jax.nn.softmax(s, axis=-1)
        o = jnp.einsum("bhij,bhjd->bhid", p, vh)
        o = o.transpose(0, 2, 1, 3).reshape(B, T, n_embd)
        x = x + o @ f32(params["wo"][l]) + params["bo"][l]
        h2 = ln(x, params["ln2_g"][l], params["ln2_b"][l])
        f = jnp.maximum(h2 @ f32(params["w1"][l]) + params["b1"][l], 0.0)
        x = x + f @ f32(params["w2"][l]) + params["b2"][l]
    x = ln(x, params["ln_f_g"], params["ln_f_b"])
    return x @ f32(params["lm_head_w"]) + params["lm_head_b"]


if __name__ == "__main__":
    key = jax.random.PRNGKey(0)
    pkey, dkey = jax.random.split(key)
    params = init_params(pkey)

    B, T = 2, 8
    idx = jax.random.randint(dkey, (B, T), 0, vocab_size, dtype=jnp.int32)

    logits = jax.jit(gpt_forward)(params, idx)
    logits = jax.block_until_ready(logits)

    assert logits.shape == (B, T, vocab_size)
    assert bool(jnp.all(jnp.isfinite(logits)))

    # Tolerance-based check vs. a pure-JAX f32 reference (bf16 MXU inputs and
    # approx reciprocal introduce small, bounded numerical differences).
    ref = gpt_forward_ref(params, idx)
    err = float(jnp.max(jnp.abs(logits - ref)))
    scale = float(jnp.max(jnp.abs(ref))) + 1e-6
    assert err <= 0.05 * scale + 1e-3, (err, scale)

    print("KERNEL_OK")
</pallas_src>

<mosaic_0001>
module attributes {stable_mosaic.version = 11 : i64} {
  func.func @_gpt_kernel(%arg0: i32, %arg1: memref<8x1xi32, #tpu.memory_space<vmem>>, %arg2: memref<256x128xbf16, #tpu.memory_space<vmem>>, %arg3: memref<16x128xbf16, #tpu.memory_space<vmem>>, %arg4: memref<2x1x128xf32, #tpu.memory_space<vmem>>, %arg5: memref<2x1x128xf32, #tpu.memory_space<vmem>>, %arg6: memref<2x128x384xbf16, #tpu.memory_space<vmem>>, %arg7: memref<2x128x128xbf16, #tpu.memory_space<vmem>>, %arg8: memref<2x1x128xf32, #tpu.memory_space<vmem>>, %arg9: memref<2x1x128xf32, #tpu.memory_space<vmem>>, %arg10: memref<2x1x128xf32, #tpu.memory_space<vmem>>, %arg11: memref<2x128x512xbf16, #tpu.memory_space<vmem>>, %arg12: memref<2x1x512xf32, #tpu.memory_space<vmem>>, %arg13: memref<2x512x128xbf16, #tpu.memory_space<vmem>>, %arg14: memref<2x1x128xf32, #tpu.memory_space<vmem>>, %arg15: memref<1x128xf32, #tpu.memory_space<vmem>>, %arg16: memref<1x128xf32, #tpu.memory_space<vmem>>, %arg17: memref<128x256xbf16, #tpu.memory_space<vmem>>, %arg18: memref<1x256xf32, #tpu.memory_space<vmem>>, %arg19: memref<8x256xf32, #tpu.memory_space<vmem>>) attributes {dimension_semantics = [#tpu.dimension_semantics<parallel>], iteration_bounds = array<i64: 2>, scalar_prefetch = 0 : i64, scratch_operands = 0 : i64, tpu.core_type = #tpu.core_type<tc>, window_params = [{transform_indices = @transform_0, window_bounds = array<i64: 8, 1>}, {pipeline_mode = #tpu.pipeline_mode<synchronous>, transform_indices = @transform_1, window_bounds = array<i64: 256, 128>}, {pipeline_mode = #tpu.pipeline_mode<synchronous>, transform_indices = @transform_2, window_bounds = array<i64: 16, 128>}, {pipeline_mode = #tpu.pipeline_mode<synchronous>, transform_indices = @transform_3, window_bounds = array<i64: 2, 1, 128>}, {pipeline_mode = #tpu.pipeline_mode<synchronous>, transform_indices = @transform_4, window_bounds = array<i64: 2, 1, 128>}, {pipeline_mode = #tpu.pipeline_mode<synchronous>, transform_indices = @transform_5, window_bounds = array<i64: 2, 128, 384>}, {pipeline_mode = #tpu.pipeline_mode<synchronous>, transform_indices = @transform_6, window_bounds = array<i64: 2, 128, 128>}, {pipeline_mode = #tpu.pipeline_mode<synchronous>, transform_indices = @transform_7, window_bounds = array<i64: 2, 1, 128>}, {pipeline_mode = #tpu.pipeline_mode<synchronous>, transform_indices = @transform_8, window_bounds = array<i64: 2, 1, 128>}, {pipeline_mode = #tpu.pipeline_mode<synchronous>, transform_indices = @transform_9, window_bounds = array<i64: 2, 1, 128>}, {pipeline_mode = #tpu.pipeline_mode<synchronous>, transform_indices = @transform_10, window_bounds = array<i64: 2, 128, 512>}, {pipeline_mode = #tpu.pipeline_mode<synchronous>, transform_indices = @transform_11, window_bounds = array<i64: 2, 1, 512>}, {pipeline_mode = #tpu.pipeline_mode<synchronous>, transform_indices = @transform_12, window_bounds = array<i64: 2, 512, 128>}, {pipeline_mode = #tpu.pipeline_mode<synchronous>, transform_indices = @transform_13, window_bounds = array<i64: 2, 1, 128>}, {pipeline_mode = #tpu.pipeline_mode<synchronous>, transform_indices = @transform_14, window_bounds = array<i64: 1, 128>}, {pipeline_mode = #tpu.pipeline_mode<synchronous>, transform_indices = @transform_15, window_bounds = array<i64: 1, 128>}, {pipeline_mode = #tpu.pipeline_mode<synchronous>, transform_indices = @transform_16, window_bounds = array<i64: 128, 256>}, {pipeline_mode = #tpu.pipeline_mode<synchronous>, transform_indices = @transform_17, window_bounds = array<i64: 1, 256>}, {transform_indices = @transform_18, window_bounds = array<i64: 8, 256>}]} {
    %c0 = arith.constant 0 : index
    %c0_0 = arith.constant 0 : index
    %0 = vector.load %arg1[%c0, %c0_0] : memref<8x1xi32, #tpu.memory_space<vmem>>, vector<8x1xi32>
    %1 = tpu.iota {dimensions = array<i32: 1>} : vector<8x256xi32>
    %2 = vector.broadcast %0 : vector<8x1xi32> to vector<8x256xi32>
    %3 = arith.cmpi eq, %2, %1 : vector<8x256xi32>
    %4 = arith.extui %3 : vector<8x256xi1> to vector<8x256xi32>
    %5 = arith.sitofp %4 : vector<8x256xi32> to vector<8x256xf32>
    %6 = arith.truncf %5 : vector<8x256xf32> to vector<8x256xbf16>
    %c0_1 = arith.constant 0 : index
    %c0_2 = arith.constant 0 : index
    %7 = vector.load %arg2[%c0_1, %c0_2] : memref<256x128xbf16, #tpu.memory_space<vmem>>, vector<256x128xbf16>
    %cst = arith.constant dense<0.000000e+00> : vector<8x128xf32>
    %8 = tpu.matmul %6, %7, %cst {dimension_numbers = #tpu.dot_dimension_numbers<[1], [0], [0], [1], [0, 0, 1, 1], [], []>} : vector<8x256xbf16>, vector<256x128xbf16>, vector<8x128xf32> -> vector<8x128xf32>
    %c0_3 = arith.constant 0 : index
    %c0_4 = arith.constant 0 : index
    %9 = vector.load %arg3[%c0_3, %c0_4] : memref<16x128xbf16, #tpu.memory_space<vmem>>, vector<8x128xbf16>
    %10 = arith.extf %9 : vector<8x128xbf16> to vector<8x128xf32>
    %11 = arith.addf %8, %10 : vector<8x128xf32>
    %12 = tpu.iota {dimensions = array<i32: 0>} : vector<8x8xi32>
    %13 = tpu.iota {dimensions = array<i32: 1>} : vector<8x8xi32>
    %14 = arith.cmpi sle, %13, %12 : vector<8x8xi32>
    %c0_5 = arith.constant 0 : index
    %c0_6 = arith.constant 0 : index
    %c0_7 = arith.constant 0 : index
    %15 = vector.load %arg4[%c0_5, %c0_6, %c0_7] : memref<2x1x128xf32, #tpu.memory_space<vmem>>, vector<1x1x128xf32>
    %16 = vector.shape_cast %15 : vector<1x1x128xf32> to vector<1x128xf32>
    %c0_8 = arith.constant 0 : index
    %c0_9 = arith.constant 0 : index
    %c0_10 = arith.constant 0 : index
    %17 = vector.load %arg5[%c0_8, %c0_9, %c0_10] : memref<2x1x128xf32, #tpu.memory_space<vmem>>, vector<1x1x128xf32>
    %18 = vector.shape_cast %17 : vector<1x1x128xf32> to vector<1x128xf32>
    %cst_11 = arith.constant dense<0.000000e+00> : vector<8xf32>
    %19 = vector.multi_reduction <add>, %11, %cst_11 [1] : vector<8x128xf32> to vector<8xf32>
    %20 = vector.shape_cast %19 : vector<8xf32> to vector<8x1xf32>
    %cst_12 = arith.constant 1.280000e+02 : f32
    %21 = vector.broadcast %cst_12 : f32 to vector<8x1xf32>
    %22 = arith.divf %20, %21 : vector<8x1xf32>
    %23 = vector.broadcast %22 : vector<8x1xf32> to vector<8x128xf32>
    %24 = arith.subf %11, %23 : vector<8x128xf32>
    %25 = arith.mulf %24, %24 : vector<8x128xf32>
    %cst_13 = arith.constant dense<0.000000e+00> : vector<8xf32>
    %26 = vector.multi_reduction <add>, %25, %cst_13 [1] : vector<8x128xf32> to vector<8xf32>
    %27 = vector.shape_cast %26 : vector<8xf32> to vector<8x1xf32>
    %cst_14 = arith.constant 1.280000e+02 : f32
    %28 = vector.broadcast %cst_14 : f32 to vector<8x1xf32>
    %29 = arith.divf %27, %28 : vector<8x1xf32>
    %30 = vector.broadcast %22 : vector<8x1xf32> to vector<8x128xf32>
    %31 = arith.subf %11, %30 : vector<8x128xf32>
    %cst_15 = arith.constant 9.99999974E-6 : f32
    %32 = vector.broadcast %cst_15 : f32 to vector<8x1xf32>
    %33 = arith.addf %29, %32 : vector<8x1xf32>
    %34 = math.rsqrt %33 : vector<8x1xf32>
    %35 = vector.broadcast %34 : vector<8x1xf32> to vector<8x128xf32>
    %36 = arith.mulf %31, %35 : vector<8x128xf32>
    %37 = vector.broadcast %16 : vector<1x128xf32> to vector<8x128xf32>
    %38 = arith.mulf %36, %37 : vector<8x128xf32>
    %39 = vector.broadcast %18 : vector<1x128xf32> to vector<8x128xf32>
    %40 = arith.addf %38, %39 : vector<8x128xf32>
    %c0_16 = arith.constant 0 : index
    %c0_17 = arith.constant 0 : index
    %c0_18 = arith.constant 0 : index
    %41 = vector.load %arg6[%c0_16, %c0_17, %c0_18] : memref<2x128x384xbf16, #tpu.memory_space<vmem>>, vector<1x128x384xbf16>
    %42 = vector.shape_cast %41 : vector<1x128x384xbf16> to vector<128x384xbf16>
    %43 = arith.truncf %40 : vector<8x128xf32> to vector<8x128xbf16>
    %cst_19 = arith.constant dense<0.000000e+00> : vector<8x384xf32>
    %44 = tpu.matmul %43, %42, %cst_19 {dimension_numbers = #tpu.dot_dimension_numbers<[1], [0], [0], [1], [0, 0, 1, 1], [], []>} : vector<8x128xbf16>, vector<128x384xbf16>, vector<8x384xf32> -> vector<8x384xf32>
    %45 = vector.extract_strided_slice %44 {offsets = [0, 0], sizes = [8, 128], strides = [1, 1]} : vector<8x384xf32> to vector<8x128xf32>
    %46 = vector.extract_strided_slice %44 {offsets = [0, 128], sizes = [8, 128], strides = [1, 1]} : vector<8x384xf32> to vector<8x128xf32>
    %47 = vector.extract_strided_slice %44 {offsets = [0, 256], sizes = [8, 128], strides = [1, 1]} : vector<8x384xf32> to vector<8x128xf32>
    %48 = vector.shape_cast %45 : vector<8x128xf32> to vector<8x4x32xf32>
    %49 = tpu.transpose %48, [1, 0, 2] : vector<8x4x32xf32> -> vector<4x8x32xf32>
    %50 = arith.truncf %49 : vector<4x8x32xf32> to vector<4x8x32xbf16>
    %51 = vector.shape_cast %46 : vector<8x128xf32> to vector<8x4x32xf32>
    %52 = tpu.transpose %51, [1, 0, 2] : vector<8x4x32xf32> -> vector<4x8x32xf32>
    %53 = arith.truncf %52 : vector<4x8x32xf32> to vector<4x8x32xbf16>
    %54 = vector.shape_cast %47 : vector<8x128xf32> to vector<8x4x32xf32>
    %55 = tpu.transpose %54, [1, 0, 2] : vector<8x4x32xf32> -> vector<4x8x32xf32>
    %56 = arith.truncf %55 : vector<4x8x32xf32> to vector<4x8x32xbf16>
    "tpu.trace_start"() <{level = 10 : i32, message = "htd,hsd->hts"}> : () -> ()
    %cst_20 = arith.constant dense<0.000000e+00> : vector<4x8x8xf32>
    %57 = tpu.matmul %50, %53, %cst_20 {dimension_numbers = #tpu.dot_dimension_numbers<[2], [2], [1], [1], [0, 0, 0, 1, 1, 1], [0], [0]>} : vector<4x8x32xbf16>, vector<4x8x32xbf16>, vector<4x8x8xf32> -> vector<4x8x8xf32>
    "tpu.trace_stop"() : () -> ()
    %cst_21 = arith.constant 0.176776692 : f32
    %58 = vector.broadcast %cst_21 : f32 to vector<4x8x8xf32>
    %59 = arith.mulf %57, %58 : vector<4x8x8xf32>
    %60 = vector.shape_cast %14 : vector<8x8xi1> to vector<1x8x8xi1>
    %cst_22 = arith.constant -1.000000e+30 : f32
    %61 = vector.shape_cast %60 : vector<1x8x8xi1> to vector<1x8x8xi1>
    %62 = vector.broadcast %61 : vector<1x8x8xi1> to vector<4x8x8xi1>
    %63 = vector.broadcast %cst_22 : f32 to vector<4x8x8xf32>
    %64 = arith.select %62, %59, %63 : vector<4x8x8xi1>, vector<4x8x8xf32>
    %cst_23 = arith.constant dense<0xFF800000> : vector<4x8xf32>
    %65 = vector.multi_reduction <maximumf>, %64, %cst_23 [2] : vector<4x8x8xf32> to vector<4x8xf32>
    %66 = vector.shape_cast %65 : vector<4x8xf32> to vector<4x8x1xf32>
    %67 = vector.broadcast %66 : vector<4x8x1xf32> to vector<4x8x8xf32>
    %68 = arith.subf %64, %67 : vector<4x8x8xf32>
    %69 = math.exp %68 : vector<4x8x8xf32>
    %cst_24 = arith.constant dense<0.000000e+00> : vector<4x8xf32>
    %70 = vector.multi_reduction <add>, %69, %cst_24 [2] : vector<4x8x8xf32> to vector<4x8xf32>
    %71 = vector.shape_cast %70 : vector<4x8xf32> to vector<4x8x1xf32>
    %72 = tpu.reciprocal %71 {approx = true} : vector<4x8x1xf32> -> vector<4x8x1xf32>
    %73 = vector.broadcast %72 : vector<4x8x1xf32> to vector<4x8x8xf32>
    %74 = arith.mulf %69, %73 : vector<4x8x8xf32>
    %75 = arith.truncf %74 : vector<4x8x8xf32> to vector<4x8x8xbf16>
    "tpu.trace_start"() <{level = 10 : i32, message = "hts,hsd->htd"}> : () -> ()
    %cst_25 = arith.constant dense<0.000000e+00> : vector<4x8x32xf32>
    %76 = tpu.matmul %75, %56, %cst_25 {dimension_numbers = #tpu.dot_dimension_numbers<[2], [1], [1], [2], [0, 0, 0, 1, 1, 2], [0], [0]>} : vector<4x8x8xbf16>, vector<4x8x32xbf16>, vector<4x8x32xf32> -> vector<4x8x32xf32>
    "tpu.trace_stop"() : () -> ()
    %77 = tpu.transpose %76, [1, 0, 2] : vector<4x8x32xf32> -> vector<8x4x32xf32>
    %78 = vector.shape_cast %77 : vector<8x4x32xf32> to vector<8x128xf32>
    %c0_26 = arith.constant 0 : index
    %c0_27 = arith.constant 0 : index
    %c0_28 = arith.constant 0 : index
    %79 = vector.load %arg7[%c0_26, %c0_27, %c0_28] : memref<2x128x128xbf16, #tpu.memory_space<vmem>>, vector<1x128x128xbf16>
    %80 = vector.shape_cast %79 : vector<1x128x128xbf16> to vector<128x128xbf16>
    %81 = arith.truncf %78 : vector<8x128xf32> to vector<8x128xbf16>
    %cst_29 = arith.constant dense<0.000000e+00> : vector<8x128xf32>
    %82 = tpu.matmul %81, %80, %cst_29 {dimension_numbers = #tpu.dot_dimension_numbers<[1], [0], [0], [1], [0, 0, 1, 1], [], []>} : vector<8x128xbf16>, vector<128x128xbf16>, vector<8x128xf32> -> vector<8x128xf32>
    %83 = arith.addf %11, %82 : vector<8x128xf32>
    %c0_30 = arith.constant 0 : index
    %c0_31 = arith.constant 0 : index
    %c0_32 = arith.constant 0 : index
    %84 = vector.load %arg8[%c0_30, %c0_31, %c0_32] : memref<2x1x128xf32, #tpu.memory_space<vmem>>, vector<1x1x128xf32>
    %85 = vector.shape_cast %84 : vector<1x1x128xf32> to vector<1x128xf32>
    %86 = vector.broadcast %85 : vector<1x128xf32> to vector<8x128xf32>
    %87 = arith.addf %83, %86 : vector<8x128xf32>
    %c0_33 = arith.constant 0 : index
    %c0_34 = arith.constant 0 : index
    %c0_35 = arith.constant 0 : index
    %88 = vector.load %arg9[%c0_33, %c0_34, %c0_35] : memref<2x1x128xf32, #tpu.memory_space<vmem>>, vector<1x1x128xf32>
    %89 = vector.shape_cast %88 : vector<1x1x128xf32> to vector<1x128xf32>
    %c0_36 = arith.constant 0 : index
    %c0_37 = arith.constant 0 : index
    %c0_38 = arith.constant 0 : index
    %90 = vector.load %arg10[%c0_36, %c0_37, %c0_38] : memref<2x1x128xf32, #tpu.memory_space<vmem>>, vector<1x1x128xf32>
    %91 = vector.shape_cast %90 : vector<1x1x128xf32> to vector<1x128xf32>
    %cst_39 = arith.constant dense<0.000000e+00> : vector<8xf32>
    %92 = vector.multi_reduction <add>, %87, %cst_39 [1] : vector<8x128xf32> to vector<8xf32>
    %93 = vector.shape_cast %92 : vector<8xf32> to vector<8x1xf32>
    %cst_40 = arith.constant 1.280000e+02 : f32
    %94 = vector.broadcast %cst_40 : f32 to vector<8x1xf32>
    %95 = arith.divf %93, %94 : vector<8x1xf32>
    %96 = vector.broadcast %95 : vector<8x1xf32> to vector<8x128xf32>
    %97 = arith.subf %87, %96 : vector<8x128xf32>
    %98 = arith.mulf %97, %97 : vector<8x128xf32>
    %cst_41 = arith.constant dense<0.000000e+00> : vector<8xf32>
    %99 = vector.multi_reduction <add>, %98, %cst_41 [1] : vector<8x128xf32> to vector<8xf32>
    %100 = vector.shape_cast %99 : vector<8xf32> to vector<8x1xf32>
    %cst_42 = arith.constant 1.280000e+02 : f32
    %101 = vector.broadcast %cst_42 : f32 to vector<8x1xf32>
    %102 = arith.divf %100, %101 : vector<8x1xf32>
    %103 = vector.broadcast %95 : vector<8x1xf32> to vector<8x128xf32>
    %104 = arith.subf %87, %103 : vector<8x128xf32>
    %cst_43 = arith.constant 9.99999974E-6 : f32
    %105 = vector.broadcast %cst_43 : f32 to vector<8x1xf32>
    %106 = arith.addf %102, %105 : vector<8x1xf32>
    %107 = math.rsqrt %106 : vector<8x1xf32>
    %108 = vector.broadcast %107 : vector<8x1xf32> to vector<8x128xf32>
    %109 = arith.mulf %104, %108 : vector<8x128xf32>
    %110 = vector.broadcast %89 : vector<1x128xf32> to vector<8x128xf32>
    %111 = arith.mulf %109, %110 : vector<8x128xf32>
    %112 = vector.broadcast %91 : vector<1x128xf32> to vector<8x128xf32>
    %113 = arith.addf %111, %112 : vector<8x128xf32>
    %c0_44 = arith.constant 0 : index
    %c0_45 = arith.constant 0 : index
    %c0_46 = arith.constant 0 : index
    %114 = vector.load %arg11[%c0_44, %c0_45, %c0_46] : memref<2x128x512xbf16, #tpu.memory_space<vmem>>, vector<1x128x512xbf16>
    %115 = vector.shape_cast %114 : vector<1x128x512xbf16> to vector<128x512xbf16>
    %116 = arith.truncf %113 : vector<8x128xf32> to vector<8x128xbf16>
    %cst_47 = arith.constant dense<0.000000e+00> : vector<8x512xf32>
    %117 = tpu.matmul %116, %115, %cst_47 {dimension_numbers = #tpu.dot_dimension_numbers<[1], [0], [0], [1], [0, 0, 1, 1], [], []>} : vector<8x128xbf16>, vector<128x512xbf16>, vector<8x512xf32> -> vector<8x512xf32>
    %c0_48 = arith.constant 0 : index
    %c0_49 = arith.constant 0 : index
    %c0_50 = arith.constant 0 : index
    %118 = vector.load %arg12[%c0_48, %c0_49, %c0_50] : memref<2x1x512xf32, #tpu.memory_space<vmem>>, vector<1x1x512xf32>
    %119 = vector.shape_cast %118 : vector<1x1x512xf32> to vector<1x512xf32>
    %120 = vector.broadcast %119 : vector<1x512xf32> to vector<8x512xf32>
    %121 = arith.addf %117, %120 : vector<8x512xf32>
    %cst_51 = arith.constant 0.000000e+00 : f32
    %122 = vector.broadcast %cst_51 : f32 to vector<8x512xf32>
    %123 = arith.maximumf %121, %122 : vector<8x512xf32>
    %c0_52 = arith.constant 0 : index
    %c0_53 = arith.constant 0 : index
    %c0_54 = arith.constant 0 : index
    %124 = vector.load %arg13[%c0_52, %c0_53, %c0_54] : memref<2x512x128xbf16, #tpu.memory_space<vmem>>, vector<1x512x128xbf16>
    %125 = vector.shape_cast %124 : vector<1x512x128xbf16> to vector<512x128xbf16>
    %126 = arith.truncf %123 : vector<8x512xf32> to vector<8x512xbf16>
    %cst_55 = arith.constant dense<0.000000e+00> : vector<8x128xf32>
    %127 = tpu.matmul %126, %125, %cst_55 {dimension_numbers = #tpu.dot_dimension_numbers<[1], [0], [0], [1], [0, 0, 1, 1], [], []>} : vector<8x512xbf16>, vector<512x128xbf16>, vector<8x128xf32> -> vector<8x128xf32>
    %128 = arith.addf %87, %127 : vector<8x128xf32>
    %c0_56 = arith.constant 0 : index
    %c0_57 = arith.constant 0 : index
    %c0_58 = arith.constant 0 : index
    %129 = vector.load %arg14[%c0_56, %c0_57, %c0_58] : memref<2x1x128xf32, #tpu.memory_space<vmem>>, vector<1x1x128xf32>
    %130 = vector.shape_cast %129 : vector<1x1x128xf32> to vector<1x128xf32>
    %131 = vector.broadcast %130 : vector<1x128xf32> to vector<8x128xf32>
    %132 = arith.addf %128, %131 : vector<8x128xf32>
    %c1 = arith.constant 1 : index
    %c0_59 = arith.constant 0 : index
    %c0_60 = arith.constant 0 : index
    %133 = vector.load %arg4[%c1, %c0_59, %c0_60] : memref<2x1x128xf32, #tpu.memory_space<vmem>>, vector<1x1x128xf32>
    %134 = vector.shape_cast %133 : vector<1x1x128xf32> to vector<1x128xf32>
    %c1_61 = arith.constant 1 : index
    %c0_62 = arith.constant 0 : index
    %c0_63 = arith.constant 0 : index
    %135 = vector.load %arg5[%c1_61, %c0_62, %c0_63] : memref<2x1x128xf32, #tpu.memory_space<vmem>>, vector<1x1x128xf32>
    %136 = vector.shape_cast %135 : vector<1x1x128xf32> to vector<1x128xf32>
    %cst_64 = arith.constant dense<0.000000e+00> : vector<8xf32>
    %137 = vector.multi_reduction <add>, %132, %cst_64 [1] : vector<8x128xf32> to vector<8xf32>
    %138 = vector.shape_cast %137 : vector<8xf32> to vector<8x1xf32>
    %cst_65 = arith.constant 1.280000e+02 : f32
    %139 = vector.broadcast %cst_65 : f32 to vector<8x1xf32>
    %140 = arith.divf %138, %139 : vector<8x1xf32>
    %141 = vector.broadcast %140 : vector<8x1xf32> to vector<8x128xf32>
    %142 = arith.subf %132, %141 : vector<8x128xf32>
    %143 = arith.mulf %142, %142 : vector<8x128xf32>
    %cst_66 = arith.constant dense<0.000000e+00> : vector<8xf32>
    %144 = vector.multi_reduction <add>, %143, %cst_66 [1] : vector<8x128xf32> to vector<8xf32>
    %145 = vector.shape_cast %144 : vector<8xf32> to vector<8x1xf32>
    %cst_67 = arith.constant 1.280000e+02 : f32
    %146 = vector.broadcast %cst_67 : f32 to vector<8x1xf32>
    %147 = arith.divf %145, %146 : vector<8x1xf32>
    %148 = vector.broadcast %140 : vector<8x1xf32> to vector<8x128xf32>
    %149 = arith.subf %132, %148 : vector<8x128xf32>
    %cst_68 = arith.constant 9.99999974E-6 : f32
    %150 = vector.broadcast %cst_68 : f32 to vector<8x1xf32>
    %151 = arith.addf %147, %150 : vector<8x1xf32>
    %152 = math.rsqrt %151 : vector<8x1xf32>
    %153 = vector.broadcast %152 : vector<8x1xf32> to vector<8x128xf32>
    %154 = arith.mulf %149, %153 : vector<8x128xf32>
    %155 = vector.broadcast %134 : vector<1x128xf32> to vector<8x128xf32>
    %156 = arith.mulf %154, %155 : vector<8x128xf32>
    %157 = vector.broadcast %136 : vector<1x128xf32> to vector<8x128xf32>
    %158 = arith.addf %156, %157 : vector<8x128xf32>
    %c1_69 = arith.constant 1 : index
    %c0_70 = arith.constant 0 : index
    %c0_71 = arith.constant 0 : index
    %159 = vector.load %arg6[%c1_69, %c0_70, %c0_71] : memref<2x128x384xbf16, #tpu.memory_space<vmem>>, vector<1x128x384xbf16>
    %160 = vector.shape_cast %159 : vector<1x128x384xbf16> to vector<128x384xbf16>
    %161 = arith.truncf %158 : vector<8x128xf32> to vector<8x128xbf16>
    %cst_72 = arith.constant dense<0.000000e+00> : vector<8x384xf32>
    %162 = tpu.matmul %161, %160, %cst_72 {dimension_numbers = #tpu.dot_dimension_numbers<[1], [0], [0], [1], [0, 0, 1, 1], [], []>} : vector<8x128xbf16>, vector<128x384xbf16>, vector<8x384xf32> -> vector<8x384xf32>
    %163 = vector.extract_strided_slice %162 {offsets = [0, 0], sizes = [8, 128], strides = [1, 1]} : vector<8x384xf32> to vector<8x128xf32>
    %164 = vector.extract_strided_slice %162 {offsets = [0, 128], sizes = [8, 128], strides = [1, 1]} : vector<8x384xf32> to vector<8x128xf32>
    %165 = vector.extract_strided_slice %162 {offsets = [0, 256], sizes = [8, 128], strides = [1, 1]} : vector<8x384xf32> to vector<8x128xf32>
    %166 = vector.shape_cast %163 : vector<8x128xf32> to vector<8x4x32xf32>
    %167 = tpu.transpose %166, [1, 0, 2] : vector<8x4x32xf32> -> vector<4x8x32xf32>
    %168 = arith.truncf %167 : vector<4x8x32xf32> to vector<4x8x32xbf16>
    %169 = vector.shape_cast %164 : vector<8x128xf32> to vector<8x4x32xf32>
    %170 = tpu.transpose %169, [1, 0, 2] : vector<8x4x32xf32> -> vector<4x8x32xf32>
    %171 = arith.truncf %170 : vector<4x8x32xf32> to vector<4x8x32xbf16>
    %172 = vector.shape_cast %165 : vector<8x128xf32> to vector<8x4x32xf32>
    %173 = tpu.transpose %172, [1, 0, 2] : vector<8x4x32xf32> -> vector<4x8x32xf32>
    %174 = arith.truncf %173 : vector<4x8x32xf32> to vector<4x8x32xbf16>
    "tpu.trace_start"() <{level = 10 : i32, message = "htd,hsd->hts"}> : () -> ()
    %cst_73 = arith.constant dense<0.000000e+00> : vector<4x8x8xf32>
    %175 = tpu.matmul %168, %171, %cst_73 {dimension_numbers = #tpu.dot_dimension_numbers<[2], [2], [1], [1], [0, 0, 0, 1, 1, 1], [0], [0]>} : vector<4x8x32xbf16>, vector<4x8x32xbf16>, vector<4x8x8xf32> -> vector<4x8x8xf32>
    "tpu.trace_stop"() : () -> ()
    %cst_74 = arith.constant 0.176776692 : f32
    %176 = vector.broadcast %cst_74 : f32 to vector<4x8x8xf32>
    %177 = arith.mulf %175, %176 : vector<4x8x8xf32>
    %178 = vector.shape_cast %14 : vector<8x8xi1> to vector<1x8x8xi1>
    %cst_75 = arith.constant -1.000000e+30 : f32
    %179 = vector.shape_cast %178 : vector<1x8x8xi1> to vector<1x8x8xi1>
    %180 = vector.broadcast %179 : vector<1x8x8xi1> to vector<4x8x8xi1>
    %181 = vector.broadcast %cst_75 : f32 to vector<4x8x8xf32>
    %182 = arith.select %180, %177, %181 : vector<4x8x8xi1>, vector<4x8x8xf32>
    %cst_76 = arith.constant dense<0xFF800000> : vector<4x8xf32>
    %183 = vector.multi_reduction <maximumf>, %182, %cst_76 [2] : vector<4x8x8xf32> to vector<4x8xf32>
    %184 = vector.shape_cast %183 : vector<4x8xf32> to vector<4x8x1xf32>
    %185 = vector.broadcast %184 : vector<4x8x1xf32> to vector<4x8x8xf32>
    %186 = arith.subf %182, %185 : vector<4x8x8xf32>
    %187 = math.exp %186 : vector<4x8x8xf32>
    %cst_77 = arith.constant dense<0.000000e+00> : vector<4x8xf32>
    %188 = vector.multi_reduction <add>, %187, %cst_77 [2] : vector<4x8x8xf32> to vector<4x8xf32>
    %189 = vector.shape_cast %188 : vector<4x8xf32> to vector<4x8x1xf32>
    %190 = tpu.reciprocal %189 {approx = true} : vector<4x8x1xf32> -> vector<4x8x1xf32>
    %191 = vector.broadcast %190 : vector<4x8x1xf32> to vector<4x8x8xf32>
    %192 = arith.mulf %187, %191 : vector<4x8x8xf32>
    %193 = arith.truncf %192 : vector<4x8x8xf32> to vector<4x8x8xbf16>
    "tpu.trace_start"() <{level = 10 : i32, message = "hts,hsd->htd"}> : () -> ()
    %cst_78 = arith.constant dense<0.000000e+00> : vector<4x8x32xf32>
    %194 = tpu.matmul %193, %174, %cst_78 {dimension_numbers = #tpu.dot_dimension_numbers<[2], [1], [1], [2], [0, 0, 0, 1, 1, 2], [0], [0]>} : vector<4x8x8xbf16>, vector<4x8x32xbf16>, vector<4x8x32xf32> -> vector<4x8x32xf32>
    "tpu.trace_stop"() : () -> ()
    %195 = tpu.transpose %194, [1, 0, 2] : vector<4x8x32xf32> -> vector<8x4x32xf32>
    %196 = vector.shape_cast %195 : vector<8x4x32xf32> to vector<8x128xf32>
    %c1_79 = arith.constant 1 : index
    %c0_80 = arith.constant 0 : index
    %c0_81 = arith.constant 0 : index
    %197 = vector.load %arg7[%c1_79, %c0_80, %c0_81] : memref<2x128x128xbf16, #tpu.memory_space<vmem>>, vector<1x128x128xbf16>
    %198 = vector.shape_cast %197 : vector<1x128x128xbf16> to vector<128x128xbf16>
    %199 = arith.truncf %196 : vector<8x128xf32> to vector<8x128xbf16>
    %cst_82 = arith.constant dense<0.000000e+00> : vector<8x128xf32>
    %200 = tpu.matmul %199, %198, %cst_82 {dimension_numbers = #tpu.dot_dimension_numbers<[1], [0], [0], [1], [0, 0, 1, 1], [], []>} : vector<8x128xbf16>, vector<128x128xbf16>, vector<8x128xf32> -> vector<8x128xf32>
    %201 = arith.addf %132, %200 : vector<8x128xf32>
    %c1_83 = arith.constant 1 : index
    %c0_84 = arith.constant 0 : index
    %c0_85 = arith.constant 0 : index
    %202 = vector.load %arg8[%c1_83, %c0_84, %c0_85] : memref<2x1x128xf32, #tpu.memory_space<vmem>>, vector<1x1x128xf32>
    %203 = vector.shape_cast %202 : vector<1x1x128xf32> to vector<1x128xf32>
    %204 = vector.broadcast %203 : vector<1x128xf32> to vector<8x128xf32>
    %205 = arith.addf %201, %204 : vector<8x128xf32>
    %c1_86 = arith.constant 1 : index
    %c0_87 = arith.constant 0 : index
    %c0_88 = arith.constant 0 : index
    %206 = vector.load %arg9[%c1_86, %c0_87, %c0_88] : memref<2x1x128xf32, #tpu.memory_space<vmem>>, vector<1x1x128xf32>
    %207 = vector.shape_cast %206 : vector<1x1x128xf32> to vector<1x128xf32>
    %c1_89 = arith.constant 1 : index
    %c0_90 = arith.constant 0 : index
    %c0_91 = arith.constant 0 : index
    %208 = vector.load %arg10[%c1_89, %c0_90, %c0_91] : memref<2x1x128xf32, #tpu.memory_space<vmem>>, vector<1x1x128xf32>
    %209 = vector.shape_cast %208 : vector<1x1x128xf32> to vector<1x128xf32>
    %cst_92 = arith.constant dense<0.000000e+00> : vector<8xf32>
    %210 = vector.multi_reduction <add>, %205, %cst_92 [1] : vector<8x128xf32> to vector<8xf32>
    %211 = vector.shape_cast %210 : vector<8xf32> to vector<8x1xf32>
    %cst_93 = arith.constant 1.280000e+02 : f32
    %212 = vector.broadcast %cst_93 : f32 to vector<8x1xf32>
    %213 = arith.divf %211, %212 : vector<8x1xf32>
    %214 = vector.broadcast %213 : vector<8x1xf32> to vector<8x128xf32>
    %215 = arith.subf %205, %214 : vector<8x128xf32>
    %216 = arith.mulf %215, %215 : vector<8x128xf32>
    %cst_94 = arith.constant dense<0.000000e+00> : vector<8xf32>
    %217 = vector.multi_reduction <add>, %216, %cst_94 [1] : vector<8x128xf32> to vector<8xf32>
    %218 = vector.shape_cast %217 : vector<8xf32> to vector<8x1xf32>
    %cst_95 = arith.constant 1.280000e+02 : f32
    %219 = vector.broadcast %cst_95 : f32 to vector<8x1xf32>
    %220 = arith.divf %218, %219 : vector<8x1xf32>
    %221 = vector.broadcast %213 : vector<8x1xf32> to vector<8x128xf32>
    %222 = arith.subf %205, %221 : vector<8x128xf32>
    %cst_96 = arith.constant 9.99999974E-6 : f32
    %223 = vector.broadcast %cst_96 : f32 to vector<8x1xf32>
    %224 = arith.addf %220, %223 : vector<8x1xf32>
    %225 = math.rsqrt %224 : vector<8x1xf32>
    %226 = vector.broadcast %225 : vector<8x1xf32> to vector<8x128xf32>
    %227 = arith.mulf %222, %226 : vector<8x128xf32>
    %228 = vector.broadcast %207 : vector<1x128xf32> to vector<8x128xf32>
    %229 = arith.mulf %227, %228 : vector<8x128xf32>
    %230 = vector.broadcast %209 : vector<1x128xf32> to vector<8x128xf32>
    %231 = arith.addf %229, %230 : vector<8x128xf32>
    %c1_97 = arith.constant 1 : index
    %c0_98 = arith.constant 0 : index
    %c0_99 = arith.constant 0 : index
    %232 = vector.load %arg11[%c1_97, %c0_98, %c0_99] : memref<2x128x512xbf16, #tpu.memory_space<vmem>>, vector<1x128x512xbf16>
    %233 = vector.shape_cast %232 : vector<1x128x512xbf16> to vector<128x512xbf16>
    %234 = arith.truncf %231 : vector<8x128xf32> to vector<8x128xbf16>
    %cst_100 = arith.constant dense<0.000000e+00> : vector<8x512xf32>
    %235 = tpu.matmul %234, %233, %cst_100 {dimension_numbers = #tpu.dot_dimension_numbers<[1], [0], [0], [1], [0, 0, 1, 1], [], []>} : vector<8x128xbf16>, vector<128x512xbf16>, vector<8x512xf32> -> vector<8x512xf32>
    %c1_101 = arith.constant 1 : index
    %c0_102 = arith.constant 0 : index
    %c0_103 = arith.constant 0 : index
    %236 = vector.load %arg12[%c1_101, %c0_102, %c0_103] : memref<2x1x512xf32, #tpu.memory_space<vmem>>, vector<1x1x512xf32>
    %237 = vector.shape_cast %236 : vector<1x1x512xf32> to vector<1x512xf32>
    %238 = vector.broadcast %237 : vector<1x512xf32> to vector<8x512xf32>
    %239 = arith.addf %235, %238 : vector<8x512xf32>
    %cst_104 = arith.constant 0.000000e+00 : f32
    %240 = vector.broadcast %cst_104 : f32 to vector<8x512xf32>
    %241 = arith.maximumf %239, %240 : vector<8x512xf32>
    %c1_105 = arith.constant 1 : index
    %c0_106 = arith.constant 0 : index
    %c0_107 = arith.constant 0 : index
    %242 = vector.load %arg13[%c1_105, %c0_106, %c0_107] : memref<2x512x128xbf16, #tpu.memory_space<vmem>>, vector<1x512x128xbf16>
    %243 = vector.shape_cast %242 : vector<1x512x128xbf16> to vector<512x128xbf16>
    %244 = arith.truncf %241 : vector<8x512xf32> to vector<8x512xbf16>
    %cst_108 = arith.constant dense<0.000000e+00> : vector<8x128xf32>
    %245 = tpu.matmul %244, %243, %cst_108 {dimension_numbers = #tpu.dot_dimension_numbers<[1], [0], [0], [1], [0, 0, 1, 1], [], []>} : vector<8x512xbf16>, vector<512x128xbf16>, vector<8x128xf32> -> vector<8x128xf32>
    %246 = arith.addf %205, %245 : vector<8x128xf32>
    %c1_109 = arith.constant 1 : index
    %c0_110 = arith.constant 0 : index
    %c0_111 = arith.constant 0 : index
    %247 = vector.load %arg14[%c1_109, %c0_110, %c0_111] : memref<2x1x128xf32, #tpu.memory_space<vmem>>, vector<1x1x128xf32>
    %248 = vector.shape_cast %247 : vector<1x1x128xf32> to vector<1x128xf32>
    %249 = vector.broadcast %248 : vector<1x128xf32> to vector<8x128xf32>
    %250 = arith.addf %246, %249 : vector<8x128xf32>
    %c0_112 = arith.constant 0 : index
    %c0_113 = arith.constant 0 : index
    %251 = vector.load %arg15[%c0_112, %c0_113] : memref<1x128xf32, #tpu.memory_space<vmem>>, vector<1x128xf32>
    %c0_114 = arith.constant 0 : index
    %c0_115 = arith.constant 0 : index
    %252 = vector.load %arg16[%c0_114, %c0_115] : memref<1x128xf32, #tpu.memory_space<vmem>>, vector<1x128xf32>
    %cst_116 = arith.constant dense<0.000000e+00> : vector<8xf32>
    %253 = vector.multi_reduction <add>, %250, %cst_116 [1] : vector<8x128xf32> to vector<8xf32>
    %254 = vector.shape_cast %253 : vector<8xf32> to vector<8x1xf32>
    %cst_117 = arith.constant 1.280000e+02 : f32
    %255 = vector.broadcast %cst_117 : f32 to vector<8x1xf32>
    %256 = arith.divf %254, %255 : vector<8x1xf32>
    %257 = vector.broadcast %256 : vector<8x1xf32> to vector<8x128xf32>
    %258 = arith.subf %250, %257 : vector<8x128xf32>
    %259 = arith.mulf %258, %258 : vector<8x128xf32>
    %cst_118 = arith.constant dense<0.000000e+00> : vector<8xf32>
    %260 = vector.multi_reduction <add>, %259, %cst_118 [1] : vector<8x128xf32> to vector<8xf32>
    %261 = vector.shape_cast %260 : vector<8xf32> to vector<8x1xf32>
    %cst_119 = arith.constant 1.280000e+02 : f32
    %262 = vector.broadcast %cst_119 : f32 to vector<8x1xf32>
    %263 = arith.divf %261, %262 : vector<8x1xf32>
    %264 = vector.broadcast %256 : vector<8x1xf32> to vector<8x128xf32>
    %265 = arith.subf %250, %264 : vector<8x128xf32>
    %cst_120 = arith.constant 9.99999974E-6 : f32
    %266 = vector.broadcast %cst_120 : f32 to vector<8x1xf32>
    %267 = arith.addf %263, %266 : vector<8x1xf32>
    %268 = math.rsqrt %267 : vector<8x1xf32>
    %269 = vector.broadcast %268 : vector<8x1xf32> to vector<8x128xf32>
    %270 = arith.mulf %265, %269 : vector<8x128xf32>
    %271 = vector.broadcast %251 : vector<1x128xf32> to vector<8x128xf32>
    %272 = arith.mulf %270, %271 : vector<8x128xf32>
    %273 = vector.broadcast %252 : vector<1x128xf32> to vector<8x128xf32>
    %274 = arith.addf %272, %273 : vector<8x128xf32>
    %c0_121 = arith.constant 0 : index
    %c0_122 = arith.constant 0 : index
    %275 = vector.load %arg17[%c0_121, %c0_122] : memref<128x256xbf16, #tpu.memory_space<vmem>>, vector<128x256xbf16>
    %276 = arith.truncf %274 : vector<8x128xf32> to vector<8x128xbf16>
    %cst_123 = arith.constant dense<0.000000e+00> : vector<8x256xf32>
    %277 = tpu.matmul %276, %275, %cst_123 {dimension_numbers = #tpu.dot_dimension_numbers<[1], [0], [0], [1], [0, 0, 1, 1], [], []>} : vector<8x128xbf16>, vector<128x256xbf16>, vector<8x256xf32> -> vector<8x256xf32>
    %c0_124 = arith.constant 0 : index
    %c0_125 = arith.constant 0 : index
    %278 = vector.load %arg18[%c0_124, %c0_125] : memref<1x256xf32, #tpu.memory_space<vmem>>, vector<1x256xf32>
    %279 = vector.broadcast %278 : vector<1x256xf32> to vector<8x256xf32>
    %280 = arith.addf %277, %279 : vector<8x256xf32>
    %c0_126 = arith.constant 0 : index
    %c0_127 = arith.constant 0 : index
    %281 = vector.load %arg19[%c0_126, %c0_127] : memref<8x256xf32, #tpu.memory_space<vmem>>, vector<8x256xf32>
    tpu.vector_store %arg19[%c0_126, %c0_127], %280 {strides = array<i32>} : memref<8x256xf32, #tpu.memory_space<vmem>>, vector<8x256xf32>,
    return
  }
  func.func @transform_0(%arg0: i32) -> (i32, i32) {
    %c0_i32 = arith.constant 0 : i32
    %c0_i32_0 = arith.constant 0 : i32
    return %arg0, %c0_i32 : i32, i32
  }
  func.func @transform_1(%arg0: i32) -> (i32, i32) {
    %c0_i32 = arith.constant 0 : i32
    %c0_i32_0 = arith.constant 0 : i32
    %c0_i32_1 = arith.constant 0 : i32
    return %c0_i32, %c0_i32_0 : i32, i32
  }
  func.func @transform_2(%arg0: i32) -> (i32, i32) {
    %c0_i32 = arith.constant 0 : i32
    %c0_i32_0 = arith.constant 0 : i32
    %c0_i32_1 = arith.constant 0 : i32
    return %c0_i32, %c0_i32_0 : i32, i32
  }
  func.func @transform_3(%arg0: i32) -> (i32, i32, i32) {
    %c0_i32 = arith.constant 0 : i32
    %c0_i32_0 = arith.constant 0 : i32
    %c0_i32_1 = arith.constant 0 : i32
    %c0_i32_2 = arith.constant 0 : i32
    return %c0_i32, %c0_i32_0, %c0_i32_1 : i32, i32, i32
  }
  func.func @transform_4(%arg0: i32) -> (i32, i32, i32) {
    %c0_i32 = arith.constant 0 : i32
    %c0_i32_0 = arith.constant 0 : i32
    %c0_i32_1 = arith.constant 0 : i32
    %c0_i32_2 = arith.constant 0 : i32
    return %c0_i32, %c0_i32_0, %c0_i32_1 : i32, i32, i32
  }
  func.func @transform_5(%arg0: i32) -> (i32, i32, i32) {
    %c0_i32 = arith.constant 0 : i32
    %c0_i32_0 = arith.constant 0 : i32
    %c0_i32_1 = arith.constant 0 : i32
    %c0_i32_2 = arith.constant 0 : i32
    return %c0_i32, %c0_i32_0, %c0_i32_1 : i32, i32, i32
  }
  func.func @transform_6(%arg0: i32) -> (i32, i32, i32) {
    %c0_i32 = arith.constant 0 : i32
    %c0_i32_0 = arith.constant 0 : i32
    %c0_i32_1 = arith.constant 0 : i32
    %c0_i32_2 = arith.constant 0 : i32
    return %c0_i32, %c0_i32_0, %c0_i32_1 : i32, i32, i32
  }
  func.func @transform_7(%arg0: i32) -> (i32, i32, i32) {
    %c0_i32 = arith.constant 0 : i32
    %c0_i32_0 = arith.constant 0 : i32
    %c0_i32_1 = arith.constant 0 : i32
    %c0_i32_2 = arith.constant 0 : i32
    return %c0_i32, %c0_i32_0, %c0_i32_1 : i32, i32, i32
  }
  func.func @transform_8(%arg0: i32) -> (i32, i32, i32) {
    %c0_i32 = arith.constant 0 : i32
    %c0_i32_0 = arith.constant 0 : i32
    %c0_i32_1 = arith.constant 0 : i32
    %c0_i32_2 = arith.constant 0 : i32
    return %c0_i32, %c0_i32_0, %c0_i32_1 : i32, i32, i32
  }
  func.func @transform_9(%arg0: i32) -> (i32, i32, i32) {
    %c0_i32 = arith.constant 0 : i32
    %c0_i32_0 = arith.constant 0 : i32
    %c0_i32_1 = arith.constant 0 : i32
    %c0_i32_2 = arith.constant 0 : i32
    return %c0_i32, %c0_i32_0, %c0_i32_1 : i32, i32, i32
  }
  func.func @transform_10(%arg0: i32) -> (i32, i32, i32) {
    %c0_i32 = arith.constant 0 : i32
    %c0_i32_0 = arith.constant 0 : i32
    %c0_i32_1 = arith.constant 0 : i32
    %c0_i32_2 = arith.constant 0 : i32
    return %c0_i32, %c0_i32_0, %c0_i32_1 : i32, i32, i32
  }
  func.func @transform_11(%arg0: i32) -> (i32, i32, i32) {
    %c0_i32 = arith.constant 0 : i32
    %c0_i32_0 = arith.constant 0 : i32
    %c0_i32_1 = arith.constant 0 : i32
    %c0_i32_2 = arith.constant 0 : i32
    return %c0_i32, %c0_i32_0, %c0_i32_1 : i32, i32, i32
  }
  func.func @transform_12(%arg0: i32) -> (i32, i32, i32) {
    %c0_i32 = arith.constant 0 : i32
    %c0_i32_0 = arith.constant 0 : i32
    %c0_i32_1 = arith.constant 0 : i32
    %c0_i32_2 = arith.constant 0 : i32
    return %c0_i32, %c0_i32_0, %c0_i32_1 : i32, i32, i32
  }
  func.func @transform_13(%arg0: i32) -> (i32, i32, i32) {
    %c0_i32 = arith.constant 0 : i32
    %c0_i32_0 = arith.constant 0 : i32
    %c0_i32_1 = arith.constant 0 : i32
    %c0_i32_2 = arith.constant 0 : i32
    return %c0_i32, %c0_i32_0, %c0_i32_1 : i32, i32, i32
  }
  func.func @transform_14(%arg0: i32) -> (i32, i32) {
    %c0_i32 = arith.constant 0 : i32
    %c0_i32_0 = arith.constant 0 : i32
    %c0_i32_1 = arith.constant 0 : i32
    return %c0_i32, %c0_i32_0 : i32, i32
  }
  func.func @transform_15(%arg0: i32) -> (i32, i32) {
    %c0_i32 = arith.constant 0 : i32
    %c0_i32_0 = arith.constant 0 : i32
    %c0_i32_1 = arith.constant 0 : i32
    return %c0_i32, %c0_i32_0 : i32, i32
  }
  func.func @transform_16(%arg0: i32) -> (i32, i32) {
    %c0_i32 = arith.constant 0 : i32
    %c0_i32_0 = arith.constant 0 : i32
    %c0_i32_1 = arith.constant 0 : i32
    return %c0_i32, %c0_i32_0 : i32, i32
  }
  func.func @transform_17(%arg0: i32) -> (i32, i32) {
    %c0_i32 = arith.constant 0 : i32
    %c0_i32_0 = arith.constant 0 : i32
    %c0_i32_1 = arith.constant 0 : i32
    return %c0_i32, %c0_i32_0 : i32, i32
  }
  func.func @transform_18(%arg0: i32) -> (i32, i32) {
    %c0_i32 = arith.constant 0 : i32
    %c0_i32_0 = arith.constant 0 : i32
    return %arg0, %c0_i32 : i32, i32
  }
}

</mosaic_0001>

<llo_original>
// kernel: gpt_forward.1
$region0: #{gpt_forward.1}
  #allocation0 [shape = 'u32[]', space=smem, size = 0x4, offset = 0x4, fixed_abs, tag = 'smem constant byte address 0x4 - core index']
  #allocation1 [shape = 'u32[144,128]{1,0:T(1,128)}', space=vmem, size = 0x12000, scoped, tag = 'internal scratch']
  %s0 = inlined_call_operand.vmem [shape: s32[16,1], index: 0, kind: input, shape index: {}]
  %s1 = inlined_call_operand.hbm [shape: bf16[256,128], index: 1, kind: input, shape index: {}]
  %s2 = inlined_call_operand.vmem [shape: bf16[16,128], index: 2, kind: input, shape index: {}]
  %s3 = inlined_call_operand.vmem [shape: f32[2,1,128], index: 3, kind: input, shape index: {}]
  %s4 = inlined_call_operand.vmem [shape: f32[2,1,128], index: 4, kind: input, shape index: {}]
  %s5 = inlined_call_operand.hbm [shape: bf16[2,128,384], index: 5, kind: input, shape index: {}]
  %s6 = inlined_call_operand.hbm [shape: bf16[2,128,128], index: 6, kind: input, shape index: {}]
  %s7 = inlined_call_operand.vmem [shape: f32[2,1,128], index: 7, kind: input, shape index: {}]
  %s8 = inlined_call_operand.vmem [shape: f32[2,1,128], index: 8, kind: input, shape index: {}]
  %s9 = inlined_call_operand.vmem [shape: f32[2,1,128], index: 9, kind: input, shape index: {}]
  %s10 = inlined_call_operand.hbm [shape: bf16[2,128,512], index: 10, kind: input, shape index: {}]
  %s11 = inlined_call_operand.vmem [shape: f32[2,1,512], index: 11, kind: input, shape index: {}]
  %s12 = inlined_call_operand.hbm [shape: bf16[2,512,128], index: 12, kind: input, shape index: {}]
  %s13 = inlined_call_operand.hbm [shape: f32[2,1,128], index: 13, kind: input, shape index: {}]
  %s14 = inlined_call_operand.vmem [shape: f32[1,128], index: 14, kind: input, shape index: {}]
  %s15 = inlined_call_operand.vmem [shape: f32[1,128], index: 15, kind: input, shape index: {}]
  %s16 = inlined_call_operand.hbm [shape: bf16[128,256], index: 16, kind: input, shape index: {}]
  %s17 = inlined_call_operand.hbm [shape: f32[1,256], index: 17, kind: input, shape index: {}]
  %s18 = inlined_call_operand.hbm [shape: f32[16,256], index: 18, kind: output, shape index: {}]
  %s19 = sld [smem:[#allocation0]]
  $region137: #{gpt_forward.1} parent=0
    _
  %s21 = ssub.s32 1, %s19
  %s22 = scalar_select 0, %s21, %s19
  $region1: #{gpt_forward.1} parent=0
    #allocation2 [shape = 'u8[65536]{0}', space=vmem, size = 0x10000, scoped, tag = 'input window, operand 1, single buffered']
    #allocation3 [shape = 's32[2]{0}', space=sflag, size = 0x8, scoped, tag = 'scoped memory for gpt_forward.1']
    #allocation4 [shape = 's32[2]{0}', space=sflag, size = 0x8, scoped, tag = 'scoped memory for gpt_forward.1']
    #allocation5 [shape = 'u8[196608]{0}', space=vmem, size = 0x30000, scoped, tag = 'input window, operand 5, single buffered']
    #allocation6 [shape = 's32[1]{0}', space=sflag, size = 0x4, scoped, tag = 'scoped memory for gpt_forward.1']
    #allocation7 [shape = 'u8[65536]{0}', space=vmem, size = 0x10000, scoped, tag = 'input window, operand 6, single buffered']
    #allocation8 [shape = 'u8[262144]{0}', space=vmem, size = 0x40000, scoped, tag = 'input window, operand 10, single buffered']
    #allocation9 [shape = 's32[1]{0}', space=sflag, size = 0x4, scoped, tag = 'scoped memory for gpt_forward.1']
    #allocation10 [shape = 'u8[262144]{0}', space=vmem, size = 0x40000, scoped, tag = 'input window, operand 12, single buffered']
    #allocation11 [shape = 'u8[1024]{0}', space=vmem, size = 0x400, scoped, tag = 'input window, operand 13, single buffered']
    #allocation12 [shape = 's32[1]{0}', space=sflag, size = 0x4, scoped, tag = 'scoped memory for gpt_forward.1']
    #allocation13 [shape = 'u8[65536]{0}', space=vmem, size = 0x10000, scoped, tag = 'input window, operand 16, single buffered']
    #allocation14 [shape = 'u8[1024]{0}', space=vmem, size = 0x400, scoped, tag = 'input window, operand 17, single buffered']
    #allocation15 [shape = 's32[1]{0}', space=sflag, size = 0x4, scoped, tag = 'scoped memory for gpt_forward.1']
    #allocation16 [shape = 'u8[16384]{0}', space=vmem, size = 0x4000, scoped, tag = 'output window, operand 0']
    %23 = vsyncpa [#allocation3], 0
    %24 = vsyncpa [#allocation6], 0
    %25 = vsyncpa [#allocation9], 0
    %26 = vsyncpa [#allocation12], 0
    %27 = vsyncpa [#allocation15], 0
    %28 = vsyncpa [#allocation4], 0
    %s29 = scalar_lea.sflag [#allocation4], 1
    %30 = vsyncpa %s29, 0
    loop: start=0, step=1, limit=4
    $region2: #{gpt_forward.1} parent=1 // loop_pre_header
      _
    $region3: #{gpt_forward.1} parent=1 // loop_header
      %s32 = sphi 0, %s36
      %p33 = scmp.ge.s32.totalorder %s32, 4
      %s42 = sphi 0, %s44
      %s45 = sphi 0, %s42
      %s46 = sphi 0, %s45
      %s62 = sphi 0, %s46
      %s66 = sphi 0, %s66
      %s68 = sphi 0, %s66
      %s69 = sphi 0, %s68
      %s83 = sphi 0, %s69
      %s87 = sphi 0, %s87
      %s89 = sphi 0, %s87
      %s90 = sphi 0, %s89
      %s104 = sphi 0, %s90
      %s108 = sphi 0, %s108
      %s110 = sphi 0, %s108
      %s111 = sphi 0, %s110
      %s125 = sphi 0, %s111
      %s129 = sphi 0, %s129
      %s131 = sphi 0, %s129
      %s132 = sphi 0, %s131
      %s146 = sphi 0, %s132
      %s150 = sphi 0, %s150
      %s152 = sphi 0, %s150
      %s153 = sphi 0, %s152
      %s167 = sphi 0, %s153
      %s171 = sphi 0, %s171
      %s173 = sphi 0, %s171
      %s174 = sphi 0, %s173
      %s188 = sphi 0, %s174
      %s192 = sphi 0, %s192
      %s194 = sphi 0, %s192
      %s195 = sphi 0, %s194
      %s209 = sphi 0, %s195
      %s213 = sphi 0, %s213
      %s215 = sphi 0, %s213
      %s216 = sphi 0, %s215
      %s230 = sphi 0, %s216
      %s234 = sphi 0, %s234
      %s236 = sphi 0, %s234
      %s237 = sphi 0, %s236
      %s251 = sphi 0, %s237
      %s255 = sphi 0, %s255
      %s257 = sphi 0, %s255
      %s258 = sphi 0, %s257
      %s272 = sphi 0, %s258
      %s276 = sphi 0, %s276
      %s278 = sphi 0, %s276
      %s279 = sphi 0, %s278
      %s293 = sphi 0, %s279
      %s297 = sphi 0, %s297
      %s299 = sphi 0, %s297
      %s300 = sphi 0, %s299
      %s314 = sphi 0, %s300
      %s318 = sphi 0, %s318
      %s320 = sphi 0, %s318
      %s321 = sphi 0, %s320
      %s335 = sphi 0, %s321
      %s339 = sphi 0, %s339
      %s341 = sphi 0, %s339
      %s342 = sphi 0, %s341
      %s356 = sphi 0, %s342
      %s360 = sphi 0, %s360
      %s362 = sphi 0, %s360
      %s363 = sphi 0, %s362
      %s377 = sphi 0, %s363
      %s381 = sphi 0, %s381
      %s383 = sphi 0, %s381
      %s384 = sphi 0, %s383
      %s398 = sphi 0, %s384
      %s402 = sphi 0, %s402
      %s404 = sphi 0, %s402
      %s405 = sphi 0, %s404
      %s419 = sphi 0, %s405
      %s425 = sphi 0, %s427
      %s428 = sphi 0, %s425
      %s429 = sphi 0, %s428
      %s445 = sphi 0, %s429
    $region4: #{gpt_forward.1} parent=1 // loop_header_branch
      %35 = sbr.rel (%p33) target = $region8
    $region5: #{gpt_forward.1} parent=1 // loop_body
      %s37 = ssub.s32 %s32, 1
      %s38 = ssub.s32 %s32, 2
      %s39 = sadd.s32 %s32, 1
      %s40 = ssub.s32 %s32, %s39
      %p41 = scmp.eq.s32.totalorder %s40, 0
      %s43 = sadd.s32 %s42, 1
      %s44 = scalar_select %p41, %s42, %s43
      %p47 = pneg %p41
      %p48 = scmp.eq.s32.totalorder %s32, 1
      %p49 = por %p47, %p48
      %p50 = scmp.ne.s32.totalorder %s42, %s45
      %p51 = scmp.eq.s32.totalorder %s32, 0
      %p52 = por %p50, %p51
      %p53 = scmp.ne.s32.totalorder %s42, %s45
      %p54 = scmp.eq.s32.totalorder %s37, 1
      %p55 = por %p53, %p54
      %p56 = scmp.ne.s32.totalorder %s45, %s46
      %p57 = scmp.eq.s32.totalorder %s37, 0
      %p58 = por %p56, %p57
      %p59 = scmp.ne.s32.totalorder %s45, %s46
      %p60 = scmp.eq.s32.totalorder %s38, 1
      %p61 = por %p59, %p60
      %p63 = scmp.ne.s32.totalorder %s46, %s62
      %p64 = scmp.eq.s32.totalorder %s38, 0
      %p65 = por %p63, %p64
      %s67 = sadd.s32 %s66, 1
      %p70 = scmp.eq.s32.totalorder %s32, 1
      %p71 = scmp.ne.s32.totalorder %s66, %s68
      %p72 = scmp.eq.s32.totalorder %s32, 0
      %p73 = por %p71, %p72
      %p74 = scmp.ne.s32.totalorder %s66, %s68
      %p75 = scmp.eq.s32.totalorder %s37, 1
      %p76 = por %p74, %p75
      %p77 = scmp.ne.s32.totalorder %s68, %s69
      %p78 = scmp.eq.s32.totalorder %s37, 0
      %p79 = por %p77, %p78
      %p80 = scmp.ne.s32.totalorder %s68, %s69
      %p81 = scmp.eq.s32.totalorder %s38, 1
      %p82 = por %p80, %p81
      %p84 = scmp.ne.s32.totalorder %s69, %s83
      %p85 = scmp.eq.s32.totalorder %s38, 0
      %p86 = por %p84, %p85
      %s88 = sadd.s32 %s87, 1
      %p91 = scmp.eq.s32.totalorder %s32, 1
      %p92 = scmp.ne.s32.totalorder %s87, %s89
      %p93 = scmp.eq.s32.totalorder %s32, 0
      %p94 = por %p92, %p93
      %p95 = scmp.ne.s32.totalorder %s87, %s89
      %p96 = scmp.eq.s32.totalorder %s37, 1
      %p97 = por %p95, %p96
      %p98 = scmp.ne.s32.totalorder %s89, %s90
      %p99 = scmp.eq.s32.totalorder %s37, 0
      %p100 = por %p98, %p99
      %p101 = scmp.ne.s32.totalorder %s89, %s90
      %p102 = scmp.eq.s32.totalorder %s38, 1
      %p103 = por %p101, %p102
      %p105 = scmp.ne.s32.totalorder %s90, %s104
      %p106 = scmp.eq.s32.totalorder %s38, 0
      %p107 = por %p105, %p106
      %s109 = sadd.s32 %s108, 1
      %p112 = scmp.eq.s32.totalorder %s32, 1
      %p113 = scmp.ne.s32.totalorder %s108, %s110
      %p114 = scmp.eq.s32.totalorder %s32, 0
      %p115 = por %p113, %p114
      %p116 = scmp.ne.s32.totalorder %s108, %s110
      %p117 = scmp.eq.s32.totalorder %s37, 1
      %p118 = por %p116, %p117
      %p119 = scmp.ne.s32.totalorder %s110, %s111
      %p120 = scmp.eq.s32.totalorder %s37, 0
      %p121 = por %p119, %p120
      %p122 = scmp.ne.s32.totalorder %s110, %s111
      %p123 = scmp.eq.s32.totalorder %s38, 1
      %p124 = por %p122, %p123
      %p126 = scmp.ne.s32.totalorder %s111, %s125
      %p127 = scmp.eq.s32.totalorder %s38, 0
      %p128 = por %p126, %p127
      %s130 = sadd.s32 %s129, 1
      %p133 = scmp.eq.s32.totalorder %s32, 1
      %p134 = scmp.ne.s32.totalorder %s129, %s131
      %p135 = scmp.eq.s32.totalorder %s32, 0
      %p136 = por %p134, %p135
      %p137 = scmp.ne.s32.totalorder %s129, %s131
      %p138 = scmp.eq.s32.totalorder %s37, 1
      %p139 = por %p137, %p138
      %p140 = scmp.ne.s32.totalorder %s131, %s132
      %p141 = scmp.eq.s32.totalorder %s37, 0
      %p142 = por %p140, %p141
      %p143 = scmp.ne.s32.totalorder %s131, %s132
      %p144 = scmp.eq.s32.totalorder %s38, 1
      %p145 = por %p143, %p144
      %p147 = scmp.ne.s32.totalorder %s132, %s146
      %p148 = scmp.eq.s32.totalorder %s38, 0
      %p149 = por %p147, %p148
      %s151 = sadd.s32 %s150, 1
      %p154 = scmp.eq.s32.totalorder %s32, 1
      %p155 = scmp.ne.s32.totalorder %s150, %s152
      %p156 = scmp.eq.s32.totalorder %s32, 0
      %p157 = por %p155, %p156
      %p158 = scmp.ne.s32.totalorder %s150, %s152
      %p159 = scmp.eq.s32.totalorder %s37, 1
      %p160 = por %p158, %p159
      %p161 = scmp.ne.s32.totalorder %s152, %s153
      %p162 = scmp.eq.s32.totalorder %s37, 0
      %p163 = por %p161, %p162
      %p164 = scmp.ne.s32.totalorder %s152, %s153
      %p165 = scmp.eq.s32.totalorder %s38, 1
      %p166 = por %p164, %p165
      %p168 = scmp.ne.s32.totalorder %s153, %s167
      %p169 = scmp.eq.s32.totalorder %s38, 0
      %p170 = por %p168, %p169
      %s172 = sadd.s32 %s171, 1
      %p175 = scmp.eq.s32.totalorder %s32, 1
      %p176 = scmp.ne.s32.totalorder %s171, %s173
      %p177 = scmp.eq.s32.totalorder %s32, 0
      %p178 = por %p176, %p177
      %p179 = scmp.ne.s32.totalorder %s171, %s173
      %p180 = scmp.eq.s32.totalorder %s37, 1
      %p181 = por %p179, %p180
      %p182 = scmp.ne.s32.totalorder %s173, %s174
      %p183 = scmp.eq.s32.totalorder %s37, 0
      %p184 = por %p182, %p183
      %p185 = scmp.ne.s32.totalorder %s173, %s174
      %p186 = scmp.eq.s32.totalorder %s38, 1
      %p187 = por %p185, %p186
      %p189 = scmp.ne.s32.totalorder %s174, %s188
      %p190 = scmp.eq.s32.totalorder %s38, 0
      %p191 = por %p189, %p190
      %s193 = sadd.s32 %s192, 1
      %p196 = scmp.eq.s32.totalorder %s32, 1
      %p197 = scmp.ne.s32.totalorder %s192, %s194
      %p198 = scmp.eq.s32.totalorder %s32, 0
      %p199 = por %p197, %p198
      %p200 = scmp.ne.s32.totalorder %s192, %s194
      %p201 = scmp.eq.s32.totalorder %s37, 1
      %p202 = por %p200, %p201
      %p203 = scmp.ne.s32.totalorder %s194, %s195
      %p204 = scmp.eq.s32.totalorder %s37, 0
      %p205 = por %p203, %p204
      %p206 = scmp.ne.s32.totalorder %s194, %s195
      %p207 = scmp.eq.s32.totalorder %s38, 1
      %p208 = por %p206, %p207
      %p210 = scmp.ne.s32.totalorder %s195, %s209
      %p211 = scmp.eq.s32.totalorder %s38, 0
      %p212 = por %p210, %p211
      %s214 = sadd.s32 %s213, 1
      %p217 = scmp.eq.s32.totalorder %s32, 1
      %p218 = scmp.ne.s32.totalorder %s213, %s215
      %p219 = scmp.eq.s32.totalorder %s32, 0
      %p220 = por %p218, %p219
      %p221 = scmp.ne.s32.totalorder %s213, %s215
      %p222 = scmp.eq.s32.totalorder %s37, 1
      %p223 = por %p221, %p222
      %p224 = scmp.ne.s32.totalorder %s215, %s216
      %p225 = scmp.eq.s32.totalorder %s37, 0
      %p226 = por %p224, %p225
      %p227 = scmp.ne.s32.totalorder %s215, %s216
      %p228 = scmp.eq.s32.totalorder %s38, 1
      %p229 = por %p227, %p228
      %p231 = scmp.ne.s32.totalorder %s216, %s230
      %p232 = scmp.eq.s32.totalorder %s38, 0
      %p233 = por %p231, %p232
      %s235 = sadd.s32 %s234, 1
      %p238 = scmp.eq.s32.totalorder %s32, 1
      %p239 = scmp.ne.s32.totalorder %s234, %s236
      %p240 = scmp.eq.s32.totalorder %s32, 0
      %p241 = por %p239, %p240
      %p242 = scmp.ne.s32.totalorder %s234, %s236
      %p243 = scmp.eq.s32.totalorder %s37, 1
      %p244 = por %p242, %p243
      %p245 = scmp.ne.s32.totalorder %s236, %s237
      %p246 = scmp.eq.s32.totalorder %s37, 0
      %p247 = por %p245, %p246
      %p248 = scmp.ne.s32.totalorder %s236, %s237
      %p249 = scmp.eq.s32.totalorder %s38, 1
      %p250 = por %p248, %p249
      %p252 = scmp.ne.s32.totalorder %s237, %s251
      %p253 = scmp.eq.s32.totalorder %s38, 0
      %p254 = por %p252, %p253
      %s256 = sadd.s32 %s255, 1
      %p259 = scmp.eq.s32.totalorder %s32, 1
      %p260 = scmp.ne.s32.totalorder %s255, %s257
      %p261 = scmp.eq.s32.totalorder %s32, 0
      %p262 = por %p260, %p261
      %p263 = scmp.ne.s32.totalorder %s255, %s257
      %p264 = scmp.eq.s32.totalorder %s37, 1
      %p265 = por %p263, %p264
      %p266 = scmp.ne.s32.totalorder %s257, %s258
      %p267 = scmp.eq.s32.totalorder %s37, 0
      %p268 = por %p266, %p267
      %p269 = scmp.ne.s32.totalorder %s257, %s258
      %p270 = scmp.eq.s32.totalorder %s38, 1
      %p271 = por %p269, %p270
      %p273 = scmp.ne.s32.totalorder %s258, %s272
      %p274 = scmp.eq.s32.totalorder %s38, 0
      %p275 = por %p273, %p274
      %s277 = sadd.s32 %s276, 1
      %p280 = scmp.eq.s32.totalorder %s32, 1
      %p281 = scmp.ne.s32.totalorder %s276, %s278
      %p282 = scmp.eq.s32.totalorder %s32, 0
      %p283 = por %p281, %p282
      %p284 = scmp.ne.s32.totalorder %s276, %s278
      %p285 = scmp.eq.s32.totalorder %s37, 1
      %p286 = por %p284, %p285
      %p287 = scmp.ne.s32.totalorder %s278, %s279
      %p288 = scmp.eq.s32.totalorder %s37, 0
      %p289 = por %p287, %p288
      %p290 = scmp.ne.s32.totalorder %s278, %s279
      %p291 = scmp.eq.s32.totalorder %s38, 1
      %p292 = por %p290, %p291
      %p294 = scmp.ne.s32.totalorder %s279, %s293
      %p295 = scmp.eq.s32.totalorder %s38, 0
      %p296 = por %p294, %p295
      %s298 = sadd.s32 %s297, 1
      %p301 = scmp.eq.s32.totalorder %s32, 1
      %p302 = scmp.ne.s32.totalorder %s297, %s299
      %p303 = scmp.eq.s32.totalorder %s32, 0
      %p304 = por %p302, %p303
      %p305 = scmp.ne.s32.totalorder %s297, %s299
      %p306 = scmp.eq.s32.totalorder %s37, 1
      %p307 = por %p305, %p306
      %p308 = scmp.ne.s32.totalorder %s299, %s300
      %p309 = scmp.eq.s32.totalorder %s37, 0
      %p310 = por %p308, %p309
      %p311 = scmp.ne.s32.totalorder %s299, %s300
      %p312 = scmp.eq.s32.totalorder %s38, 1
      %p313 = por %p311, %p312
      %p315 = scmp.ne.s32.totalorder %s300, %s314
      %p316 = scmp.eq.s32.totalorder %s38, 0
      %p317 = por %p315, %p316
      %s319 = sadd.s32 %s318, 1
      %p322 = scmp.eq.s32.totalorder %s32, 1
      %p323 = scmp.ne.s32.totalorder %s318, %s320
      %p324 = scmp.eq.s32.totalorder %s32, 0
      %p325 = por %p323, %p324
      %p326 = scmp.ne.s32.totalorder %s318, %s320
      %p327 = scmp.eq.s32.totalorder %s37, 1
      %p328 = por %p326, %p327
      %p329 = scmp.ne.s32.totalorder %s320, %s321
      %p330 = scmp.eq.s32.totalorder %s37, 0
      %p331 = por %p329, %p330
      %p332 = scmp.ne.s32.totalorder %s320, %s321
      %p333 = scmp.eq.s32.totalorder %s38, 1
      %p334 = por %p332, %p333
      %p336 = scmp.ne.s32.totalorder %s321, %s335
      %p337 = scmp.eq.s32.totalorder %s38, 0
      %p338 = por %p336, %p337
      %s340 = sadd.s32 %s339, 1
      %p343 = scmp.eq.s32.totalorder %s32, 1
      %p344 = scmp.ne.s32.totalorder %s339, %s341
      %p345 = scmp.eq.s32.totalorder %s32, 0
      %p346 = por %p344, %p345
      %p347 = scmp.ne.s32.totalorder %s339, %s341
      %p348 = scmp.eq.s32.totalorder %s37, 1
      %p349 = por %p347, %p348
      %p350 = scmp.ne.s32.totalorder %s341, %s342
      %p351 = scmp.eq.s32.totalorder %s37, 0
      %p352 = por %p350, %p351
      %p353 = scmp.ne.s32.totalorder %s341, %s342
      %p354 = scmp.eq.s32.totalorder %s38, 1
      %p355 = por %p353, %p354
      %p357 = scmp.ne.s32.totalorder %s342, %s356
      %p358 = scmp.eq.s32.totalorder %s38, 0
      %p359 = por %p357, %p358
      %s361 = sadd.s32 %s360, 1
      %p364 = scmp.eq.s32.totalorder %s32, 1
      %p365 = scmp.ne.s32.totalorder %s360, %s362
      %p366 = scmp.eq.s32.totalorder %s32, 0
      %p367 = por %p365, %p366
      %p368 = scmp.ne.s32.totalorder %s360, %s362
      %p369 = scmp.eq.s32.totalorder %s37, 1
      %p370 = por %p368, %p369
      %p371 = scmp.ne.s32.totalorder %s362, %s363
      %p372 = scmp.eq.s32.totalorder %s37, 0
      %p373 = por %p371, %p372
      %p374 = scmp.ne.s32.totalorder %s362, %s363
      %p375 = scmp.eq.s32.totalorder %s38, 1
      %p376 = por %p374, %p375
      %p378 = scmp.ne.s32.totalorder %s363, %s377
      %p379 = scmp.eq.s32.totalorder %s38, 0
      %p380 = por %p378, %p379
      %s382 = sadd.s32 %s381, 1
      %p385 = scmp.eq.s32.totalorder %s32, 1
      %p386 = scmp.ne.s32.totalorder %s381, %s383
      %p387 = scmp.eq.s32.totalorder %s32, 0
      %p388 = por %p386, %p387
      %p389 = scmp.ne.s32.totalorder %s381, %s383
      %p390 = scmp.eq.s32.totalorder %s37, 1
      %p391 = por %p389, %p390
      %p392 = scmp.ne.s32.totalorder %s383, %s384
      %p393 = scmp.eq.s32.totalorder %s37, 0
      %p394 = por %p392, %p393
      %p395 = scmp.ne.s32.totalorder %s383, %s384
      %p396 = scmp.eq.s32.totalorder %s38, 1
      %p397 = por %p395, %p396
      %p399 = scmp.ne.s32.totalorder %s384, %s398
      %p400 = scmp.eq.s32.totalorder %s38, 0
      %p401 = por %p399, %p400
      %s403 = sadd.s32 %s402, 1
      %p406 = scmp.eq.s32.totalorder %s32, 1
      %p407 = scmp.ne.s32.totalorder %s402, %s404
      %p408 = scmp.eq.s32.totalorder %s32, 0
      %p409 = por %p407, %p408
      %p410 = scmp.ne.s32.totalorder %s402, %s404
      %p411 = scmp.eq.s32.totalorder %s37, 1
      %p412 = por %p410, %p411
      %p413 = scmp.ne.s32.totalorder %s404, %s405
      %p414 = scmp.eq.s32.totalorder %s37, 0
      %p415 = por %p413, %p414
      %p416 = scmp.ne.s32.totalorder %s404, %s405
      %p417 = scmp.eq.s32.totalorder %s38, 1
      %p418 = por %p416, %p417
      %p420 = scmp.ne.s32.totalorder %s405, %s419
      %p421 = scmp.eq.s32.totalorder %s38, 0
      %p422 = por %p420, %p421
      %s423 = ssub.s32 %s32, %s39
      %p424 = scmp.eq.s32.totalorder %s423, 0
      %s426 = sadd.s32 %s425, 1
      %s427 = scalar_select %p424, %s425, %s426
      %p430 = pneg %p424
      %p431 = scmp.eq.s32.totalorder %s32, 1
      %p432 = por %p430, %p431
      %p433 = scmp.ne.s32.totalorder %s425, %s428
      %p434 = scmp.eq.s32.totalorder %s32, 0
      %p435 = por %p433, %p434
      %p436 = scmp.ne.s32.totalorder %s425, %s428
      %p437 = scmp.eq.s32.totalorder %s37, 1
      %p438 = por %p436, %p437
      %p439 = scmp.ne.s32.totalorder %s428, %s429
      %p440 = scmp.eq.s32.totalorder %s37, 0
      %p441 = por %p439, %p440
      %p442 = scmp.ne.s32.totalorder %s428, %s429
      %p443 = scmp.eq.s32.totalorder %s38, 1
      %p444 = por %p442, %p443
      %p446 = scmp.ne.s32.totalorder %s429, %s445
      %p447 = scmp.eq.s32.totalorder %s38, 0
      %p448 = por %p446, %p447
      %p449 = scmp.le.s32.totalorder 1, %s32
      %p450 = scmp.lt.s32.totalorder %s32, 3
      %p451 = pnand %p449, %p450
      %p452 = pneg %p451
      // Predicated region
      $region9: #{gpt_forward.1} parent=5 // pred_check
        _
      $region10: #{gpt_forward.1} parent=5 // pred_check_branch
        %454 = sbr.rel (%p451) target = $region12
      $region11: #{gpt_forward.1} parent=5 // pred_region
        %s455 = ssub.s32 %s32, 1
        // Predicated region
        $region13: #{gpt_forward.1} parent=11 // pred_check
          %p456 = pneg %p79
        $region14: #{gpt_forward.1} parent=11 // pred_check_branch
          %458 = sbr.rel (%p456) target = $region16
        $region15: #{gpt_forward.1} parent=11 // pred_region
          %s460 = ssub.s32 2048, 2048
          %461 = vsyncadd [#allocation3], %s460
          %s462 = sshll.u32 [#allocation2], 4
          %s463 = int_to_ptr.vmem [resolvable:$true] %s462
          %468 = dma.hbm_to_vmem [thread:$0]  %s1, 2048, %s463, [#allocation3], 64, 64, 4
        $region16: #{gpt_forward.1} parent=11 // pred_fallthru
          _
        // Predicated region
        $region17: #{gpt_forward.1} parent=11 // pred_check
          %p469 = pneg %p100
        $region18: #{gpt_forward.1} parent=11 // pred_check_branch
          %471 = sbr.rel (%p469) target = $region20
        $region19: #{gpt_forward.1} parent=11 // pred_region
          _
        $region20: #{gpt_forward.1} parent=11 // pred_fallthru
          _
        // Predicated region
        $region21: #{gpt_forward.1} parent=11 // pred_check
          %p472 = pneg %p121
        $region22: #{gpt_forward.1} parent=11 // pred_check_branch
          %474 = sbr.rel (%p472) target = $region24
        $region23: #{gpt_forward.1} parent=11 // pred_region
          _
        $region24: #{gpt_forward.1} parent=11 // pred_fallthru
          _
        // Predicated region
        $region25: #{gpt_forward.1} parent=11 // pred_check
          %p475 = pneg %p142
        $region26: #{gpt_forward.1} parent=11 // pred_check_branch
          %477 = sbr.rel (%p475) target = $region28
        $region27: #{gpt_forward.1} parent=11 // pred_region
          _
        $region28: #{gpt_forward.1} parent=11 // pred_fallthru
          _
        // Predicated region
        $region29: #{gpt_forward.1} parent=11 // pred_check
          %p478 = pneg %p163
        $region30: #{gpt_forward.1} parent=11 // pred_check_branch
          %480 = sbr.rel (%p478) target = $region32
        $region31: #{gpt_forward.1} parent=11 // pred_region
          %s482 = ssub.s32 6144, 6144
          %483 = vsyncadd [#allocation6], %s482
          %s484 = sshll.u32 [#allocation5], 4
          %s485 = int_to_ptr.vmem [resolvable:$true] %s484
          %490 = dma.hbm_to_vmem [thread:$0]  %s5, 6144, %s485, [#allocation6], 192, 192, 12
        $region32: #{gpt_forward.1} parent=11 // pred_fallthru
          _
        // Predicated region
        $region33: #{gpt_forward.1} parent=11 // pred_check
          %p491 = pneg %p184
        $region34: #{gpt_forward.1} parent=11 // pred_check_branch
          %493 = sbr.rel (%p491) target = $region36
        $region35: #{gpt_forward.1} parent=11 // pred_region
          %s495 = ssub.s32 2048, 2048
          %496 = vsyncadd [#allocation6], %s495
          %s497 = sshll.u32 [#allocation7], 4
          %s498 = int_to_ptr.vmem [resolvable:$true] %s497
          %503 = dma.hbm_to_vmem [thread:$0]  %s6, 2048, %s498, [#allocation6], 64, 64, 4
        $region36: #{gpt_forward.1} parent=11 // pred_fallthru
          _
        // Predicated region
        $region37: #{gpt_forward.1} parent=11 // pred_check
          %p504 = pneg %p205
        $region38: #{gpt_forward.1} parent=11 // pred_check_branch
          %506 = sbr.rel (%p504) target = $region40
        $region39: #{gpt_forward.1} parent=11 // pred_region
          _
        $region40: #{gpt_forward.1} parent=11 // pred_fallthru
          _
        // Predicated region
        $region41: #{gpt_forward.1} parent=11 // pred_check
          %p507 = pneg %p226
        $region42: #{gpt_forward.1} parent=11 // pred_check_branch
          %509 = sbr.rel (%p507) target = $region44
        $region43: #{gpt_forward.1} parent=11 // pred_region
          _
        $region44: #{gpt_forward.1} parent=11 // pred_fallthru
          _
        // Predicated region
        $region45: #{gpt_forward.1} parent=11 // pred_check
          %p510 = pneg %p247
        $region46: #{gpt_forward.1} parent=11 // pred_check_branch
          %512 = sbr.rel (%p510) target = $region48
        $region47: #{gpt_forward.1} parent=11 // pred_region
          _
        $region48: #{gpt_forward.1} parent=11 // pred_fallthru
          _
        // Predicated region
        $region49: #{gpt_forward.1} parent=11 // pred_check
          %p513 = pneg %p268
        $region50: #{gpt_forward.1} parent=11 // pred_check_branch
          %515 = sbr.rel (%p513) target = $region52
        $region51: #{gpt_forward.1} parent=11 // pred_region
          %s517 = ssub.s32 8192, 8192
          %518 = vsyncadd [#allocation9], %s517
          %s519 = sshll.u32 [#allocation8], 4
          %s520 = int_to_ptr.vmem [resolvable:$true] %s519
          %525 = dma.hbm_to_vmem [thread:$0]  %s10, 8192, %s520, [#allocation9], 256, 256, 16
        $region52: #{gpt_forward.1} parent=11 // pred_fallthru
          _
        // Predicated region
        $region53: #{gpt_forward.1} parent=11 // pred_check
          %p526 = pneg %p289
        $region54: #{gpt_forward.1} parent=11 // pred_check_branch
          %528 = sbr.rel (%p526) target = $region56
        $region55: #{gpt_forward.1} parent=11 // pred_region
          _
        $region56: #{gpt_forward.1} parent=11 // pred_fallthru
          _
        // Predicated region
        $region57: #{gpt_forward.1} parent=11 // pred_check
          %p529 = pneg %p310
        $region58: #{gpt_forward.1} parent=11 // pred_check_branch
          %531 = sbr.rel (%p529) target = $region60
        $region59: #{gpt_forward.1} parent=11 // pred_region
          %s533 = ssub.s32 8192, 8192
          %534 = vsyncadd [#allocation9], %s533
          %s535 = sshll.u32 [#allocation10], 4
          %s536 = int_to_ptr.vmem [resolvable:$true] %s535
          %541 = dma.hbm_to_vmem [thread:$0]  %s12, 8192, %s536, [#allocation9], 64, 64, 4
        $region60: #{gpt_forward.1} parent=11 // pred_fallthru
          _
        // Predicated region
        $region61: #{gpt_forward.1} parent=11 // pred_check
          %p542 = pneg %p331
        $region62: #{gpt_forward.1} parent=11 // pred_check_branch
          %544 = sbr.rel (%p542) target = $region64
        $region63: #{gpt_forward.1} parent=11 // pred_region
          %s546 = ssub.s32 32, 32
          %547 = vsyncadd [#allocation12], %s546
          %s548 = sshll.u32 [#allocation11], 4
          %s549 = int_to_ptr.vmem [resolvable:$true] %s548
          %554 = dma.hbm_to_vmem [thread:$0]  %s13, 32, %s549, [#allocation12], 16, 16, 1
        $region64: #{gpt_forward.1} parent=11 // pred_fallthru
          _
        // Predicated region
        $region65: #{gpt_forward.1} parent=11 // pred_check
          %p555 = pneg %p352
        $region66: #{gpt_forward.1} parent=11 // pred_check_branch
          %557 = sbr.rel (%p555) target = $region68
        $region67: #{gpt_forward.1} parent=11 // pred_region
          _
        $region68: #{gpt_forward.1} parent=11 // pred_fallthru
          _
        // Predicated region
        $region69: #{gpt_forward.1} parent=11 // pred_check
          %p558 = pneg %p373
        $region70: #{gpt_forward.1} parent=11 // pred_check_branch
          %560 = sbr.rel (%p558) target = $region72
        $region71: #{gpt_forward.1} parent=11 // pred_region
          _
        $region72: #{gpt_forward.1} parent=11 // pred_fallthru
          _
        // Predicated region
        $region73: #{gpt_forward.1} parent=11 // pred_check
          %p561 = pneg %p394
        $region74: #{gpt_forward.1} parent=11 // pred_check_branch
          %563 = sbr.rel (%p561) target = $region76
        $region75: #{gpt_forward.1} parent=11 // pred_region
          %s565 = ssub.s32 2048, 2048
          %566 = vsyncadd [#allocation12], %s565
          %s567 = sshll.u32 [#allocation13], 4
          %s568 = int_to_ptr.vmem [resolvable:$true] %s567
          %573 = dma.hbm_to_vmem [thread:$0]  %s16, 2048, %s568, [#allocation12], 128, 128, 8
        $region76: #{gpt_forward.1} parent=11 // pred_fallthru
          _
        // Predicated region
        $region77: #{gpt_forward.1} parent=11 // pred_check
          %p574 = pneg %p415
        $region78: #{gpt_forward.1} parent=11 // pred_check_branch
          %576 = sbr.rel (%p574) target = $region80
        $region79: #{gpt_forward.1} parent=11 // pred_region
          %s578 = ssub.s32 32, 32
          %579 = vsyncadd [#allocation15], %s578
          %s581 = sshll.u32 [#allocation14], 4
          %s582 = int_to_ptr.vmem [resolvable:$true] %s581
          %584 = dma.hbm_to_vmem [thread:$0]  %s17, 32, %s582, [#allocation15]
        $region80: #{gpt_forward.1} parent=11 // pred_fallthru
          _
      $region12: #{gpt_forward.1} parent=5 // pred_fallthru
        _
      %p585 = scmp.lt.s32.totalorder %s32, 2
      // Predicated region
      $region81: #{gpt_forward.1} parent=5 // pred_check
        %p586 = pneg %p585
      $region82: #{gpt_forward.1} parent=5 // pred_check_branch
        %588 = sbr.rel (%p586) target = $region84
      $region83: #{gpt_forward.1} parent=5 // pred_region
        // Predicated region
        $region85: #{gpt_forward.1} parent=83 // pred_check
          %p589 = pneg %p52
        $region86: #{gpt_forward.1} parent=83 // pred_check_branch
          %591 = sbr.rel (%p589) target = $region88
        $region87: #{gpt_forward.1} parent=83 // pred_region
          %p592 = scmp.lt.s32.totalorder %s32, 1
          %s593 = scalar_select %p592, %s32, 1
          %s594 = smul.addr %s593, 8
          %s595 = scalar_lea.vmem %s0, %s594
        $region88: #{gpt_forward.1} parent=83 // pred_fallthru
          _
      $region84: #{gpt_forward.1} parent=5 // pred_fallthru
        _
      %p596 = scmp.le.s32.totalorder 1, %s32
      %p597 = scmp.lt.s32.totalorder %s32, 3
      %p598 = pnand %p596, %p597
      %p599 = pneg %p598
      // Predicated region
      $region89: #{gpt_forward.1} parent=5 // pred_check
        _
      $region90: #{gpt_forward.1} parent=5 // pred_check_branch
        %601 = sbr.rel (%p598) target = $region92
      $region91: #{gpt_forward.1} parent=5 // pred_region
        %s602 = ssub.s32 %s32, 1
        // Predicated region
        $region93: #{gpt_forward.1} parent=91 // pred_check
          %p603 = pneg %p79
        $region94: #{gpt_forward.1} parent=91 // pred_check_branch
          %605 = sbr.rel (%p603) target = $region96
        $region95: #{gpt_forward.1} parent=91 // pred_region
          %606 = dma.done [#allocation3], 2048
        $region96: #{gpt_forward.1} parent=91 // pred_fallthru
          _
        // Predicated region
        $region97: #{gpt_forward.1} parent=91 // pred_check
          %p607 = pneg %p163
        $region98: #{gpt_forward.1} parent=91 // pred_check_branch
          %609 = sbr.rel (%p607) target = $region100
        $region99: #{gpt_forward.1} parent=91 // pred_region
          %610 = dma.done [#allocation6], 6144
        $region100: #{gpt_forward.1} parent=91 // pred_fallthru
          _
        // Predicated region
        $region101: #{gpt_forward.1} parent=91 // pred_check
          %p611 = pneg %p184
        $region102: #{gpt_forward.1} parent=91 // pred_check_branch
          %613 = sbr.rel (%p611) target = $region104
        $region103: #{gpt_forward.1} parent=91 // pred_region
          %614 = dma.done [#allocation6], 2048
        $region104: #{gpt_forward.1} parent=91 // pred_fallthru
          _
        // Predicated region
        $region105: #{gpt_forward.1} parent=91 // pred_check
          %p615 = pneg %p268
        $region106: #{gpt_forward.1} parent=91 // pred_check_branch
          %617 = sbr.rel (%p615) target = $region108
        $region107: #{gpt_forward.1} parent=91 // pred_region
          %618 = dma.done [#allocation9], 8192
        $region108: #{gpt_forward.1} parent=91 // pred_fallthru
          _
        // Predicated region
        $region109: #{gpt_forward.1} parent=91 // pred_check
          %p619 = pneg %p310
        $region110: #{gpt_forward.1} parent=91 // pred_check_branch
          %621 = sbr.rel (%p619) target = $region112
        $region111: #{gpt_forward.1} parent=91 // pred_region
          %622 = dma.done [#allocation9], 8192
        $region112: #{gpt_forward.1} parent=91 // pred_fallthru
          _
        // Predicated region
        $region113: #{gpt_forward.1} parent=91 // pred_check
          %p623 = pneg %p331
        $region114: #{gpt_forward.1} parent=91 // pred_check_branch
          %625 = sbr.rel (%p623) target = $region116
        $region115: #{gpt_forward.1} parent=91 // pred_region
          %626 = dma.done [#allocation12], 32
        $region116: #{gpt_forward.1} parent=91 // pred_fallthru
          _
        // Predicated region
        $region117: #{gpt_forward.1} parent=91 // pred_check
          %p627 = pneg %p394
        $region118: #{gpt_forward.1} parent=91 // pred_check_branch
          %629 = sbr.rel (%p627) target = $region120
        $region119: #{gpt_forward.1} parent=91 // pred_region
          %630 = dma.done [#allocation12], 2048
        $region120: #{gpt_forward.1} parent=91 // pred_fallthru
          _
        // Predicated region
        $region121: #{gpt_forward.1} parent=91 // pred_check
          %p631 = pneg %p415
        $region122: #{gpt_forward.1} parent=91 // pred_check_branch
          %633 = sbr.rel (%p631) target = $region124
        $region123: #{gpt_forward.1} parent=91 // pred_region
          %634 = dma.done [#allocation15], 32
        $region124: #{gpt_forward.1} parent=91 // pred_fallthru
          _
        %p635 = scmp.lt.s32.totalorder %s37, 1
        %s636 = scalar_select %p635, %s37, 1
        %s637 = smul.addr %s636, 8
        %s638 = scalar_lea.vmem %s0, %s637
        %p639 = pneg %p58
        %p640 = pneg %p55
        %p641 = pneg %p79
        %p642 = pneg %p76
        %p643 = pneg %p100
        %p644 = pneg %p97
        %p645 = pneg %p121
        %p646 = pneg %p118
        %p647 = pneg %p142
        %p648 = pneg %p139
        %p649 = pneg %p163
        %p650 = pneg %p160
        %p651 = pneg %p184
        %p652 = pneg %p181
        %p653 = pneg %p205
        %p654 = pneg %p202
        %p655 = pneg %p226
        %p656 = pneg %p223
        %p657 = pneg %p247
        %p658 = pneg %p244
        %p659 = pneg %p268
        %p660 = pneg %p265
        %p661 = pneg %p289
        %p662 = pneg %p286
        %p663 = pneg %p310
        %p664 = pneg %p307
        %p665 = pneg %p331
        %p666 = pneg %p328
        %p667 = pneg %p352
        %p668 = pneg %p349
        %p669 = pneg %p373
        %p670 = pneg %p370
        %p671 = pneg %p394
        %p672 = pneg %p391
        %p673 = pneg %p415
        %p674 = pneg %p412
        %p675 = pneg %p441
        %p676 = pneg %p438
        %s677 = sand.u32 %s428, 1
        %s678 = scalar_lea.sflag [#allocation4], %s677
        %s679 = sand.u32 %s428, 1
        %s680 = smul.addr %s679, 16
        %s681 = scalar_lea.vmem [#allocation16], %s680
        %p682 = scmp.lt.s32.totalorder %s37, 1
        %s683 = scalar_select %p682, %s37, 1
        %s684 = smul.addr %s683, 8
        %s685 = scalar_lea.vmem %s0, %s684
        %v687 = vld [vmem:[%s685] sm:$0xff]
        %v688 = vlaneseq
        %v689 = vand.u32 %v688, 127
        %v690 = vadd.s32 %v689, 128
        %691 = vset.pattern.permute.xlu0 0
        %692 = vperm.xlu0 %691, %v687
        %v693 = vpop.permute.xlu0 %692
        %vm694 = vcmp.eq.s32.totalorder %v693, %v689
        %vm695 = vcmp.eq.s32.totalorder %v693, %v690
        %v696 = vsel %vm694, 1, 0
        %v697 = vsel %vm695, 1, 0
        %v698 = vcvt.s32.f32 %v696
        %v699 = vcvt.s32.f32 %v697
        %v700 = vpack.c.bf16 %v698, %v698
        %v701 = vpack.c.bf16 %v699, %v699
        %v702 = vld [vmem:[#allocation2] sm:$0xf]
        %v703 = vld [vmem:[#allocation2 + $0x4] sm:$0xf]
        %v704 = vld [vmem:[#allocation2 + $0x8] sm:$0xf]
        %v705 = vld [vmem:[#allocation2 + $0xc] sm:$0xf]
        %v706 = vld [vmem:[#allocation2 + $0x10] sm:$0xf]
        %v707 = vld [vmem:[#allocation2 + $0x14] sm:$0xf]
        %v708 = vld [vmem:[#allocation2 + $0x18] sm:$0xf]
        %v709 = vld [vmem:[#allocation2 + $0x1c] sm:$0xf]
        %v710 = vld [vmem:[#allocation2 + $0x20] sm:$0xf]
        %v711 = vld [vmem:[#allocation2 + $0x24] sm:$0xf]
        %v712 = vld [vmem:[#allocation2 + $0x28] sm:$0xf]
        %v713 = vld [vmem:[#allocation2 + $0x2c] sm:$0xf]
        %v714 = vld [vmem:[#allocation2 + $0x30] sm:$0xf]
        %v715 = vld [vmem:[#allocation2 + $0x34] sm:$0xf]
        %v716 = vld [vmem:[#allocation2 + $0x38] sm:$0xf]
        %v717 = vld [vmem:[#allocation2 + $0x3c] sm:$0xf]
        %v718 = vld [vmem:[#allocation2 + $0x40] sm:$0xf]
        %v719 = vld [vmem:[#allocation2 + $0x44] sm:$0xf]
        %v720 = vld [vmem:[#allocation2 + $0x48] sm:$0xf]
        %v721 = vld [vmem:[#allocation2 + $0x4c] sm:$0xf]
        %v722 = vld [vmem:[#allocation2 + $0x50] sm:$0xf]
        %v723 = vld [vmem:[#allocation2 + $0x54] sm:$0xf]
        %v724 = vld [vmem:[#allocation2 + $0x58] sm:$0xf]
        %v725 = vld [vmem:[#allocation2 + $0x5c] sm:$0xf]
        %v726 = vld [vmem:[#allocation2 + $0x60] sm:$0xf]
        %v727 = vld [vmem:[#allocation2 + $0x64] sm:$0xf]
        %v728 = vld [vmem:[#allocation2 + $0x68] sm:$0xf]
        %v729 = vld [vmem:[#allocation2 + $0x6c] sm:$0xf]
        %v730 = vld [vmem:[#allocation2 + $0x70] sm:$0xf]
        %v731 = vld [vmem:[#allocation2 + $0x74] sm:$0xf]
        %v732 = vld [vmem:[#allocation2 + $0x78] sm:$0xf]
        %v733 = vld [vmem:[#allocation2 + $0x7c] sm:$0xf]
        %v734 = vld [vmem:[%s2] sm:$0xf]
        %v735 = vunpack.c.l.bf16 %v734
        %v768 = vunpack.c.l.b16 %v702
        %v769 = vunpack.c.l.b16 %v703
        %v770 = vunpack.c.l.b16 %v704
        %v771 = vunpack.c.l.b16 %v705
        %v772 = vunpack.c.l.b16 %v706
        %v773 = vunpack.c.l.b16 %v707
        %v774 = vunpack.c.l.b16 %v708
        %v775 = vunpack.c.l.b16 %v709
        %v776 = vunpack.c.l.b16 %v710
        %v777 = vunpack.c.l.b16 %v711
        %v778 = vunpack.c.l.b16 %v712
        %v779 = vunpack.c.l.b16 %v713
        %v780 = vunpack.c.l.b16 %v714
        %v781 = vunpack.c.l.b16 %v715
        %v782 = vunpack.c.l.b16 %v716
        %v783 = vunpack.c.l.b16 %v717
        %v784 = vunpack.c.l.b16 %v718
        %v785 = vunpack.c.l.b16 %v719
        %v786 = vunpack.c.l.b16 %v720
        %v787 = vunpack.c.l.b16 %v721
        %v788 = vunpack.c.l.b16 %v722
        %v789 = vunpack.c.l.b16 %v723
        %v790 = vunpack.c.l.b16 %v724
        %v791 = vunpack.c.l.b16 %v725
        %v792 = vunpack.c.l.b16 %v726
        %v793 = vunpack.c.l.b16 %v727
        %v794 = vunpack.c.l.b16 %v728
        %v795 = vunpack.c.l.b16 %v729
        %v796 = vunpack.c.l.b16 %v730
        %v797 = vunpack.c.l.b16 %v731
        %v798 = vunpack.c.l.b16 %v732
        %v799 = vunpack.c.l.b16 %v733
        %v800 = vpack.c.b16 %v769, %v768
        %v801 = vpack.c.b16 %v771, %v770
        %v802 = vpack.c.b16 %v773, %v772
        %v803 = vpack.c.b16 %v775, %v774
        %v804 = vpack.c.b16 %v777, %v776
        %v805 = vpack.c.b16 %v779, %v778
        %v806 = vpack.c.b16 %v781, %v780
        %v807 = vpack.c.b16 %v783, %v782
        %v808 = vpack.c.b16 %v785, %v784
        %v809 = vpack.c.b16 %v787, %v786
        %v810 = vpack.c.b16 %v789, %v788
        %v811 = vpack.c.b16 %v791, %v790
        %v812 = vpack.c.b16 %v793, %v792
        %v813 = vpack.c.b16 %v795, %v794
        %v814 = vpack.c.b16 %v797, %v796
        %v815 = vpack.c.b16 %v799, %v798
        %832 = vmatprep.subr.bf16.mxu0 0
        %833 = vmatpush1.bf16.msra.mxu0 %v800
        %834 = vmatprep.subr.bf16.mxu0 0
        %835 = vmatpush1.bf16.msra.mxu0 %v801
        %836 = vmatprep.subr.bf16.mxu0 0
        %837 = vmatpush1.bf16.msra.mxu0 %v802
        %838 = vmatprep.subr.bf16.mxu0 0
        %839 = vmatpush1.bf16.msra.mxu0 %v803
        %840 = vmatprep.subr.bf16.mxu0 0
        %841 = vmatpush1.bf16.msra.mxu0 %v804
        %842 = vmatprep.subr.bf16.mxu0 0
        %843 = vmatpush1.bf16.msra.mxu0 %v805
        %844 = vmatprep.subr.bf16.mxu0 0
        %845 = vmatpush1.bf16.msra.mxu0 %v806
        %846 = vmatprep.subr.bf16.mxu0 0
        %847 = vmatpush1.bf16.msra.mxu0 %v807
        %848 = vmatprep.subr.bf16.mxu0 0
        %849 = vmatpush1.bf16.msra.mxu0 %v808
        %850 = vmatprep.subr.bf16.mxu0 0
        %851 = vmatpush1.bf16.msra.mxu0 %v809
        %852 = vmatprep.subr.bf16.mxu0 0
        %853 = vmatpush1.bf16.msra.mxu0 %v810
        %854 = vmatprep.subr.bf16.mxu0 0
        %855 = vmatpush1.bf16.msra.mxu0 %v811
        %856 = vmatprep.subr.bf16.mxu0 0
        %857 = vmatpush1.bf16.msra.mxu0 %v812
        %858 = vmatprep.subr.bf16.mxu0 0
        %859 = vmatpush1.bf16.msra.mxu0 %v813
        %860 = vmatprep.subr.bf16.mxu0 0
        %861 = vmatpush1.bf16.msra.mxu0 %v814
        %862 = vmatprep.subr.bf16.mxu0 0
        %863 = vmatpush1.bf16.msra.mxu0 %v815
        %864 = vmatprep.mubr.bf16.mxu0 %v701
        %865 = vmatmul.mubr.bf16.gmra.mrb[0].mxu0 %v700
        %v866 = vpop.f32.mrb[0].mxu0
        %v867 = vadd.f32 %v735, %v866
        %v868 = vpop.f32.mrb[0].mxu0
        %v869 = vpop.f32.mrb[0].mxu0
        %v870 = vpop.f32.mrb[0].mxu0
        %871 = vdwg.mxu0
        %v872 = vlaneseq
        %v873 = vshrl.u32 %v872, 7
        %vm874 = vcmp.le.s32.totalorder %v689, %v873
        %v875 = vld [vmem:[%s3] sm:$0x1]
        %v876 = vld [vmem:[%s4] sm:$0x1]
        %877 = vadd.xlane.f32.xlu0 %v867
        %v878 = vpop.xlane.xlu0 %877
        %v879 = vrcp.pop 128.0
        %v880 = vmul.f32 %v878, %v879
        %v881 = vsub.f32 %v867, %v880
        %v882 = vmul.f32 %v881, %v881
        %883 = vadd.xlane.f32.xlu0 %v882
        %v884 = vpop.xlane.xlu0 %883
        %v885 = vmul.f32 %v884, %v879
        %v886 = vadd.f32 %v885, 1e-05
        %v887 = vrsqrt.pop %v886
        %v888 = vmul.f32 %v881, %v887
        %v890 = vlaneseq
        %v891 = vshrl.u32 %v890, 7
        %v892 = vsub.s32 0, %v891
        %v893 = vrot.slane %v875, %v892
        %v895 = vmul.f32 %v888, %v893
        %v897 = vlaneseq
        %v898 = vshrl.u32 %v897, 7
        %v899 = vsub.s32 0, %v898
        %v900 = vrot.slane %v876, %v899
        %v902 = vadd.f32 %v895, %v900
        %v903 = vld [vmem:[#allocation5] sm:$0xff]
        %v904 = vld [vmem:[#allocation5 + $0x8] sm:$0xf]
        %v905 = vld [vmem:[#allocation5 + $0xc] sm:$0xff]
        %v906 = vld [vmem:[#allocation5 + $0x14] sm:$0xf]
        %v907 = vld [vmem:[#allocation5 + $0x18] sm:$0xff]
        %v908 = vld [vmem:[#allocation5 + $0x20] sm:$0xf]
        %v909 = vld [vmem:[#allocation5 + $0x24] sm:$0xff]
        %v910 = vld [vmem:[#allocation5 + $0x2c] sm:$0xf]
        %v911 = vld [vmem:[#allocation5 + $0x30] sm:$0xff]
        %v912 = vld [vmem:[#allocation5 + $0x38] sm:$0xf]
        %v913 = vld [vmem:[#allocation5 + $0x3c] sm:$0xff]
        %v914 = vld [vmem:[#allocation5 + $0x44] sm:$0xf]
        %v915 = vld [vmem:[#allocation5 + $0x48] sm:$0xff]
        %v916 = vld [vmem:[#allocation5 + $0x50] sm:$0xf]
        %v917 = vld [vmem:[#allocation5 + $0x54] sm:$0xff]
        %v918 = vld [vmem:[#allocation5 + $0x5c] sm:$0xf]
        %v919 = vld [vmem:[#allocation5 + $0x60] sm:$0xff]
        %v920 = vld [vmem:[#allocation5 + $0x68] sm:$0xf]
        %v921 = vld [vmem:[#allocation5 + $0x6c] sm:$0xff]
        %v922 = vld [vmem:[#allocation5 + $0x74] sm:$0xf]
        %v923 = vld [vmem:[#allocation5 + $0x78] sm:$0xff]
        %v924 = vld [vmem:[#allocation5 + $0x80] sm:$0xf]
        %v925 = vld [vmem:[#allocation5 + $0x84] sm:$0xff]
        %v926 = vld [vmem:[#allocation5 + $0x8c] sm:$0xf]
        %v927 = vld [vmem:[#allocation5 + $0x90] sm:$0xff]
        %v928 = vld [vmem:[#allocation5 + $0x98] sm:$0xf]
        %v929 = vld [vmem:[#allocation5 + $0x9c] sm:$0xff]
        %v930 = vld [vmem:[#allocation5 + $0xa4] sm:$0xf]
        %v931 = vld [vmem:[#allocation5 + $0xa8] sm:$0xff]
        %v932 = vld [vmem:[#allocation5 + $0xb0] sm:$0xf]
        %v933 = vld [vmem:[#allocation5 + $0xb4] sm:$0xff]
        %v934 = vld [vmem:[#allocation5 + $0xbc] sm:$0xf]
        %v935 = vpack.c.bf16 %v902, %v902
        %v968 = vunpack.c.l.b16 %v903
        %v969 = vunpack.c.h.b16 %v903
        %v970 = vunpack.c.l.b16 %v904
        %v971 = vunpack.c.l.b16 %v905
        %v972 = vunpack.c.h.b16 %v905
        %v973 = vunpack.c.l.b16 %v906
        %v974 = vunpack.c.l.b16 %v907
        %v975 = vunpack.c.h.b16 %v907
        %v976 = vunpack.c.l.b16 %v908
        %v977 = vunpack.c.l.b16 %v909
        %v978 = vunpack.c.h.b16 %v909
        %v979 = vunpack.c.l.b16 %v910
        %v980 = vunpack.c.l.b16 %v911
        %v981 = vunpack.c.h.b16 %v911
        %v982 = vunpack.c.l.b16 %v912
        %v983 = vunpack.c.l.b16 %v913
        %v984 = vunpack.c.h.b16 %v913
        %v985 = vunpack.c.l.b16 %v914
        %v986 = vunpack.c.l.b16 %v915
        %v987 = vunpack.c.h.b16 %v915
        %v988 = vunpack.c.l.b16 %v916
        %v989 = vunpack.c.l.b16 %v917
        %v990 = vunpack.c.h.b16 %v917
        %v991 = vunpack.c.l.b16 %v918
        %v992 = vunpack.c.l.b16 %v919
        %v993 = vunpack.c.h.b16 %v919
        %v994 = vunpack.c.l.b16 %v920
        %v995 = vunpack.c.l.b16 %v921
        %v996 = vunpack.c.h.b16 %v921
        %v997 = vunpack.c.l.b16 %v922
        %v998 = vunpack.c.l.b16 %v923
        %v999 = vunpack.c.h.b16 %v923
        %v1000 = vunpack.c.l.b16 %v924
        %v1001 = vunpack.c.l.b16 %v925
        %v1002 = vunpack.c.h.b16 %v925
        %v1003 = vunpack.c.l.b16 %v926
        %v1004 = vunpack.c.l.b16 %v927
        %v1005 = vunpack.c.h.b16 %v927
        %v1006 = vunpack.c.l.b16 %v928
        %v1007 = vunpack.c.l.b16 %v929
        %v1008 = vunpack.c.h.b16 %v929
        %v1009 = vunpack.c.l.b16 %v930
        %v1010 = vunpack.c.l.b16 %v931
        %v1011 = vunpack.c.h.b16 %v931
        %v1012 = vunpack.c.l.b16 %v932
        %v1013 = vunpack.c.l.b16 %v933
        %v1014 = vunpack.c.h.b16 %v933
        %v1015 = vunpack.c.l.b16 %v934
        %v1016 = vpack.c.b16 %v971, %v968
        %v1017 = vpack.c.b16 %v972, %v969
        %v1018 = vpack.c.b16 %v973, %v970
        %v1019 = vpack.c.b16 %v977, %v974
        %v1020 = vpack.c.b16 %v978, %v975
        %v1021 = vpack.c.b16 %v979, %v976
        %v1022 = vpack.c.b16 %v983, %v980
        %v1023 = vpack.c.b16 %v984, %v981
        %v1024 = vpack.c.b16 %v985, %v982
        %v1025 = vpack.c.b16 %v989, %v986
        %v1026 = vpack.c.b16 %v990, %v987
        %v1027 = vpack.c.b16 %v991, %v988
        %v1028 = vpack.c.b16 %v995, %v992
        %v1029 = vpack.c.b16 %v996, %v993
        %v1030 = vpack.c.b16 %v997, %v994
        %v1031 = vpack.c.b16 %v1001, %v998
        %v1032 = vpack.c.b16 %v1002, %v999
        %v1033 = vpack.c.b16 %v1003, %v1000
        %v1034 = vpack.c.b16 %v1007, %v1004
        %v1035 = vpack.c.b16 %v1008, %v1005
        %v1036 = vpack.c.b16 %v1009, %v1006
        %v1037 = vpack.c.b16 %v1013, %v1010
        %v1038 = vpack.c.b16 %v1014, %v1011
        %v1039 = vpack.c.b16 %v1015, %v1012
        %1064 = vmatprep.subr.bf16.mxu0 %v1017
        %1065 = vmatpush1.bf16.msra.mxu0 %v1016
        %1066 = vmatprep.subr.bf16.mxu0 %v1020
        %1067 = vmatpush1.bf16.msra.mxu0 %v1019
        %1068 = vmatprep.subr.bf16.mxu0 %v1023
        %1069 = vmatpush1.bf16.msra.mxu0 %v1022
        %1070 = vmatprep.subr.bf16.mxu0 %v1026
        %1071 = vmatpush1.bf16.msra.mxu0 %v1025
        %1072 = vmatprep.subr.bf16.mxu0 %v1029
        %1073 = vmatpush1.bf16.msra.mxu0 %v1028
        %1074 = vmatprep.subr.bf16.mxu0 %v1032
        %1075 = vmatpush1.bf16.msra.mxu0 %v1031
        %1076 = vmatprep.subr.bf16.mxu0 %v1035
        %1077 = vmatpush1.bf16.msra.mxu0 %v1034
        %1078 = vmatprep.subr.bf16.mxu0 %v1038
        %1079 = vmatpush1.bf16.msra.mxu0 %v1037
        %1080 = vmatprep.subr.bf16.mxu0 0
        %1081 = vmatpush1.bf16.msra.mxu0 0
        %1082 = vmatprep.subr.bf16.mxu0 0
        %1083 = vmatpush1.bf16.msra.mxu0 0
        %1084 = vmatprep.subr.bf16.mxu0 0
        %1085 = vmatpush1.bf16.msra.mxu0 0
        %1086 = vmatprep.subr.bf16.mxu0 0
        %1087 = vmatpush1.bf16.msra.mxu0 0
        %1088 = vmatprep.subr.bf16.mxu0 0
        %1089 = vmatpush1.bf16.msra.mxu0 0
        %1090 = vmatprep.subr.bf16.mxu0 0
        %1091 = vmatpush1.bf16.msra.mxu0 0
        %1092 = vmatprep.subr.bf16.mxu0 0
        %1093 = vmatpush1.bf16.msra.mxu0 0
        %1094 = vmatprep.subr.bf16.mxu0 0
        %1095 = vmatpush1.bf16.msra.mxu0 0
        %1096 = vmatprep.mubr.bf16.mxu0 0
        %1097 = vmatmul.mubr.bf16.gmra.mrb[0].mxu0 %v935
        %v1098 = vpop.f32.mrb[0].mxu0
        %v1099 = vadd.f32 0.0, %v1098
        %v1100 = vpop.f32.mrb[0].mxu0
        %v1101 = vadd.f32 0.0, %v1100
        %v1102 = vpop.f32.mrb[0].mxu0
        %v1103 = vpop.f32.mrb[0].mxu0
        %1104 = vdwg.mxu0
        %1105 = vmatprep.subr.bf16.mxu0 0
        %1106 = vmatpush1.bf16.msra.mxu0 %v1018
        %1107 = vmatprep.subr.bf16.mxu0 0
        %1108 = vmatpush1.bf16.msra.mxu0 %v1021
        %1109 = vmatprep.subr.bf16.mxu0 0
        %1110 = vmatpush1.bf16.msra.mxu0 %v1024
        %1111 = vmatprep.subr.bf16.mxu0 0
        %1112 = vmatpush1.bf16.msra.mxu0 %v1027
        %1113 = vmatprep.subr.bf16.mxu0 0
        %1114 = vmatpush1.bf16.msra.mxu0 %v1030
        %1115 = vmatprep.subr.bf16.mxu0 0
        %1116 = vmatpush1.bf16.msra.mxu0 %v1033
        %1117 = vmatprep.subr.bf16.mxu0 0
        %1118 = vmatpush1.bf16.msra.mxu0 %v1036
        %1119 = vmatprep.subr.bf16.mxu0 0
        %1120 = vmatpush1.bf16.msra.mxu0 %v1039
        %1121 = vmatprep.subr.bf16.mxu0 0
        %1122 = vmatpush1.bf16.msra.mxu0 0
        %1123 = vmatprep.subr.bf16.mxu0 0
        %1124 = vmatpush1.bf16.msra.mxu0 0
        %1125 = vmatprep.subr.bf16.mxu0 0
        %1126 = vmatpush1.bf16.msra.mxu0 0
        %1127 = vmatprep.subr.bf16.mxu0 0
        %1128 = vmatpush1.bf16.msra.mxu0 0
        %1129 = vmatprep.subr.bf16.mxu0 0
        %1130 = vmatpush1.bf16.msra.mxu0 0
        %1131 = vmatprep.subr.bf16.mxu0 0
        %1132 = vmatpush1.bf16.msra.mxu0 0
        %1133 = vmatprep.subr.bf16.mxu0 0
        %1134 = vmatpush1.bf16.msra.mxu0 0
        %1135 = vmatprep.subr.bf16.mxu0 0
        %1136 = vmatpush1.bf16.msra.mxu0 0
        %1137 = vmatprep.mubr.bf16.mxu0 0
        %1138 = vmatmul.mubr.bf16.gmra.mrb[0].mxu0 %v935
        %v1139 = vpop.f32.mrb[0].mxu0
        %v1140 = vadd.f32 0.0, %v1139
        %v1141 = vpop.f32.mrb[0].mxu0
        %v1142 = vpop.f32.mrb[0].mxu0
        %v1143 = vpop.f32.mrb[0].mxu0
        %1144 = vdwg.mxu0
        %1146 = vrot.lane.b32.xlu0 %v1099, 96
        %v1147 = vpop.permute.xlu0 %1146
        %1149 = vrot.lane.b32.xlu0 %v1099, 64
        %v1150 = vpop.permute.xlu0 %1149
        %1152 = vrot.lane.b32.xlu0 %v1099, 32
        %v1153 = vpop.permute.xlu0 %1152
        %v1155 = vcombine.low %v1099, %v1150
        %v1156 = vcombine.high %v1099, %v1150
        %v1158 = vunpack.c.l.s4 1983009808
        %v1159 = vunpack.c.0.s8 %v1158
        %v1160 = vlaneseq
        %v1161 = vshrl.u32 %v1160, 7
        %v1162 = vsub.s32 %v1159, %v1161
        %v1163 = vrot.slane %v1155, %v1162
        %v1165 = vunpack.c.l.s4 1983009808
        %v1166 = vunpack.c.0.s8 %v1165
        %v1167 = vlaneseq
        %v1168 = vshrl.u32 %v1167, 7
        %v1169 = vsub.s32 %v1166, %v1168
        %v1170 = vrot.slane %v1156, %v1169
        %v1171 = vcombine.low %v1147, %v1153
        %v1172 = vcombine.high %v1147, %v1153
        %v1174 = vunpack.c.l.s4 1983009808
        %v1175 = vunpack.c.0.s8 %v1174
        %v1176 = vlaneseq
        %v1177 = vshrl.u32 %v1176, 7
        %v1178 = vsub.s32 %v1175, %v1177
        %v1179 = vrot.slane %v1171, %v1178
        %v1181 = vunpack.c.l.s4 1983009808
        %v1182 = vunpack.c.0.s8 %v1181
        %v1183 = vlaneseq
        %v1184 = vshrl.u32 %v1183, 7
        %v1185 = vsub.s32 %v1182, %v1184
        %v1186 = vrot.slane %v1172, %v1185
        %v1187 = vcombine.low %v1163, %v1179
        %v1188 = vcombine.high %v1163, %v1179
        %v1190 = vunpack.c.l.s4 1934713408
        %v1191 = vunpack.c.0.s8 %v1190
        %v1192 = vlaneseq
        %v1193 = vshrl.u32 %v1192, 7
        %v1194 = vsub.s32 %v1191, %v1193
        %v1195 = vrot.slane %v1187, %v1194
        %v1197 = vunpack.c.l.s4 1934713408
        %v1198 = vunpack.c.0.s8 %v1197
        %v1199 = vlaneseq
        %v1200 = vshrl.u32 %v1199, 7
        %v1201 = vsub.s32 %v1198, %v1200
        %v1202 = vrot.slane %v1188, %v1201
        %v1203 = vcombine.low %v1170, %v1186
        %v1204 = vcombine.high %v1170, %v1186
        %v1206 = vunpack.c.l.s4 1934713408
        %v1207 = vunpack.c.0.s8 %v1206
        %v1208 = vlaneseq
        %v1209 = vshrl.u32 %v1208, 7
        %v1210 = vsub.s32 %v1207, %v1209
        %v1211 = vrot.slane %v1203, %v1210
        %v1213 = vunpack.c.l.s4 1934713408
        %v1214 = vunpack.c.0.s8 %v1213
        %v1215 = vlaneseq
        %v1216 = vshrl.u32 %v1215, 7
        %v1217 = vsub.s32 %v1214, %v1216
        %v1218 = vrot.slane %v1204, %v1217
        %v1219 = vcombine.high %v1195, 0.0
        %v1220 = vcombine.high %v1202, 0.0
        %v1221 = vcombine.high %v1211, 0.0
        %v1222 = vcombine.high %v1218, 0.0
        %v1223 = vcombine.low %v1195, %v1202
        %v1225 = vunpack.c.l.s4 1983009808
        %v1226 = vunpack.c.0.s8 %v1225
        %v1227 = vlaneseq
        %v1228 = vshrl.u32 %v1227, 7
        %v1229 = vsub.s32 %v1226, %v1228
        %v1230 = vrot.slane %v1223, %v1229
        %v1231 = vcombine.low %v1219, %v1220
        %v1233 = vunpack.c.l.s4 1983009808
        %v1234 = vunpack.c.0.s8 %v1233
        %v1235 = vlaneseq
        %v1236 = vshrl.u32 %v1235, 7
        %v1237 = vsub.s32 %v1234, %v1236
        %v1238 = vrot.slane %v1231, %v1237
        %v1239 = vcombine.low %v1211, %v1218
        %v1241 = vunpack.c.l.s4 1983009808
        %v1242 = vunpack.c.0.s8 %v1241
        %v1243 = vlaneseq
        %v1244 = vshrl.u32 %v1243, 7
        %v1245 = vsub.s32 %v1242, %v1244
        %v1246 = vrot.slane %v1239, %v1245
        %v1247 = vcombine.low %v1221, %v1222
        %v1249 = vunpack.c.l.s4 1983009808
        %v1250 = vunpack.c.0.s8 %v1249
        %v1251 = vlaneseq
        %v1252 = vshrl.u32 %v1251, 7
        %v1253 = vsub.s32 %v1250, %v1252
        %v1254 = vrot.slane %v1247, %v1253
        %v1255 = vcombine.low %v1230, %v1238
        %v1256 = vcombine.high %v1230, %v1238
        %v1258 = vunpack.c.l.s4 1934713408
        %v1259 = vunpack.c.0.s8 %v1258
        %v1260 = vlaneseq
        %v1261 = vshrl.u32 %v1260, 7
        %v1262 = vsub.s32 %v1259, %v1261
        %v1263 = vrot.slane %v1255, %v1262
        %v1265 = vunpack.c.l.s4 1934713408
        %v1266 = vunpack.c.0.s8 %v1265
        %v1267 = vlaneseq
        %v1268 = vshrl.u32 %v1267, 7
        %v1269 = vsub.s32 %v1266, %v1268
        %v1270 = vrot.slane %v1256, %v1269
        %v1271 = vcombine.low %v1246, %v1254
        %v1272 = vcombine.high %v1246, %v1254
        %v1274 = vunpack.c.l.s4 1934713408
        %v1275 = vunpack.c.0.s8 %v1274
        %v1276 = vlaneseq
        %v1277 = vshrl.u32 %v1276, 7
        %v1278 = vsub.s32 %v1275, %v1277
        %v1279 = vrot.slane %v1271, %v1278
        %v1281 = vunpack.c.l.s4 1934713408
        %v1282 = vunpack.c.0.s8 %v1281
        %v1283 = vlaneseq
        %v1284 = vshrl.u32 %v1283, 7
        %v1285 = vsub.s32 %v1282, %v1284
        %v1286 = vrot.slane %v1272, %v1285
        %v1287 = vcombine.low %v1263, %v1279
        %v1288 = vcombine.high %v1263, %v1279
        %v1289 = vcombine.low %v1270, %v1286
        %v1290 = vcombine.high %v1270, %v1286
        %v1291 = vpack.c.bf16 %v1287, %v1287
        %v1292 = vpack.c.bf16 %v1288, %v1288
        %v1293 = vpack.c.bf16 %v1289, %v1289
        %v1294 = vpack.c.bf16 %v1290, %v1290
        %1296 = vrot.lane.b32.xlu0 %v1101, 96
        %v1297 = vpop.permute.xlu0 %1296
        %1299 = vrot.lane.b32.xlu0 %v1101, 64
        %v1300 = vpop.permute.xlu0 %1299
        %1302 = vrot.lane.b32.xlu0 %v1101, 32
        %v1303 = vpop.permute.xlu0 %1302
        %v1305 = vcombine.low %v1101, %v1300
        %v1306 = vcombine.high %v1101, %v1300
        %v1308 = vunpack.c.l.s4 1983009808
        %v1309 = vunpack.c.0.s8 %v1308
        %v1310 = vlaneseq
        %v1311 = vshrl.u32 %v1310, 7
        %v1312 = vsub.s32 %v1309, %v1311
        %v1313 = vrot.slane %v1305, %v1312
        %v1315 = vunpack.c.l.s4 1983009808
        %v1316 = vunpack.c.0.s8 %v1315
        %v1317 = vlaneseq
        %v1318 = vshrl.u32 %v1317, 7
        %v1319 = vsub.s32 %v1316, %v1318
        %v1320 = vrot.slane %v1306, %v1319
        %v1321 = vcombine.low %v1297, %v1303
        %v1322 = vcombine.high %v1297, %v1303
        %v1324 = vunpack.c.l.s4 1983009808
        %v1325 = vunpack.c.0.s8 %v1324
        %v1326 = vlaneseq
        %v1327 = vshrl.u32 %v1326, 7
        %v1328 = vsub.s32 %v1325, %v1327
        %v1329 = vrot.slane %v1321, %v1328
        %v1331 = vunpack.c.l.s4 1983009808
        %v1332 = vunpack.c.0.s8 %v1331
        %v1333 = vlaneseq
        %v1334 = vshrl.u32 %v1333, 7
        %v1335 = vsub.s32 %v1332, %v1334
        %v1336 = vrot.slane %v1322, %v1335
        %v1337 = vcombine.low %v1313, %v1329
        %v1338 = vcombine.high %v1313, %v1329
        %v1340 = vunpack.c.l.s4 1934713408
        %v1341 = vunpack.c.0.s8 %v1340
        %v1342 = vlaneseq
        %v1343 = vshrl.u32 %v1342, 7
        %v1344 = vsub.s32 %v1341, %v1343
        %v1345 = vrot.slane %v1337, %v1344
        %v1347 = vunpack.c.l.s4 1934713408
        %v1348 = vunpack.c.0.s8 %v1347
        %v1349 = vlaneseq
        %v1350 = vshrl.u32 %v1349, 7
        %v1351 = vsub.s32 %v1348, %v1350
        %v1352 = vrot.slane %v1338, %v1351
        %v1353 = vcombine.low %v1320, %v1336
        %v1354 = vcombine.high %v1320, %v1336
        %v1356 = vunpack.c.l.s4 1934713408
        %v1357 = vunpack.c.0.s8 %v1356
        %v1358 = vlaneseq
        %v1359 = vshrl.u32 %v1358, 7
        %v1360 = vsub.s32 %v1357, %v1359
        %v1361 = vrot.slane %v1353, %v1360
        %v1363 = vunpack.c.l.s4 1934713408
        %v1364 = vunpack.c.0.s8 %v1363
        %v1365 = vlaneseq
        %v1366 = vshrl.u32 %v1365, 7
        %v1367 = vsub.s32 %v1364, %v1366
        %v1368 = vrot.slane %v1354, %v1367
        %v1369 = vcombine.high %v1345, 0.0
        %v1370 = vcombine.high %v1352, 0.0
        %v1371 = vcombine.high %v1361, 0.0
        %v1372 = vcombine.high %v1368, 0.0
        %v1373 = vcombine.low %v1345, %v1352
        %v1375 = vunpack.c.l.s4 1983009808
        %v1376 = vunpack.c.0.s8 %v1375
        %v1377 = vlaneseq
        %v1378 = vshrl.u32 %v1377, 7
        %v1379 = vsub.s32 %v1376, %v1378
        %v1380 = vrot.slane %v1373, %v1379
        %v1381 = vcombine.low %v1369, %v1370
        %v1383 = vunpack.c.l.s4 1983009808
        %v1384 = vunpack.c.0.s8 %v1383
        %v1385 = vlaneseq
        %v1386 = vshrl.u32 %v1385, 7
        %v1387 = vsub.s32 %v1384, %v1386
        %v1388 = vrot.slane %v1381, %v1387
        %v1389 = vcombine.low %v1361, %v1368
        %v1391 = vunpack.c.l.s4 1983009808
        %v1392 = vunpack.c.0.s8 %v1391
        %v1393 = vlaneseq
        %v1394 = vshrl.u32 %v1393, 7
        %v1395 = vsub.s32 %v1392, %v1394
        %v1396 = vrot.slane %v1389, %v1395
        %v1397 = vcombine.low %v1371, %v1372
        %v1399 = vunpack.c.l.s4 1983009808
        %v1400 = vunpack.c.0.s8 %v1399
        %v1401 = vlaneseq
        %v1402 = vshrl.u32 %v1401, 7
        %v1403 = vsub.s32 %v1400, %v1402
        %v1404 = vrot.slane %v1397, %v1403
        %v1405 = vcombine.low %v1380, %v1388
        %v1406 = vcombine.high %v1380, %v1388
        %v1408 = vunpack.c.l.s4 1934713408
        %v1409 = vunpack.c.0.s8 %v1408
        %v1410 = vlaneseq
        %v1411 = vshrl.u32 %v1410, 7
        %v1412 = vsub.s32 %v1409, %v1411
        %v1413 = vrot.slane %v1405, %v1412
        %v1415 = vunpack.c.l.s4 1934713408
        %v1416 = vunpack.c.0.s8 %v1415
        %v1417 = vlaneseq
        %v1418 = vshrl.u32 %v1417, 7
        %v1419 = vsub.s32 %v1416, %v1418
        %v1420 = vrot.slane %v1406, %v1419
        %v1421 = vcombine.low %v1396, %v1404
        %v1422 = vcombine.high %v1396, %v1404
        %v1424 = vunpack.c.l.s4 1934713408
        %v1425 = vunpack.c.0.s8 %v1424
        %v1426 = vlaneseq
        %v1427 = vshrl.u32 %v1426, 7
        %v1428 = vsub.s32 %v1425, %v1427
        %v1429 = vrot.slane %v1421, %v1428
        %v1431 = vunpack.c.l.s4 1934713408
        %v1432 = vunpack.c.0.s8 %v1431
        %v1433 = vlaneseq
        %v1434 = vshrl.u32 %v1433, 7
        %v1435 = vsub.s32 %v1432, %v1434
        %v1436 = vrot.slane %v1422, %v1435
        %v1437 = vcombine.low %v1413, %v1429
        %v1438 = vcombine.high %v1413, %v1429
        %v1439 = vcombine.low %v1420, %v1436
        %v1440 = vcombine.high %v1420, %v1436
        %v1441 = vpack.c.bf16 %v1437, %v1437
        %v1442 = vpack.c.bf16 %v1438, %v1438
        %v1443 = vpack.c.bf16 %v1439, %v1439
        %v1444 = vpack.c.bf16 %v1440, %v1440
        %1446 = vrot.lane.b32.xlu0 %v1140, 96
        %v1447 = vpop.permute.xlu0 %1446
        %1449 = vrot.lane.b32.xlu0 %v1140, 64
        %v1450 = vpop.permute.xlu0 %1449
        %1452 = vrot.lane.b32.xlu0 %v1140, 32
        %v1453 = vpop.permute.xlu0 %1452
        %v1455 = vcombine.low %v1140, %v1450
        %v1456 = vcombine.high %v1140, %v1450
        %v1458 = vunpack.c.l.s4 1983009808
        %v1459 = vunpack.c.0.s8 %v1458
        %v1460 = vlaneseq
        %v1461 = vshrl.u32 %v1460, 7
        %v1462 = vsub.s32 %v1459, %v1461
        %v1463 = vrot.slane %v1455, %v1462
        %v1465 = vunpack.c.l.s4 1983009808
        %v1466 = vunpack.c.0.s8 %v1465
        %v1467 = vlaneseq
        %v1468 = vshrl.u32 %v1467, 7
        %v1469 = vsub.s32 %v1466, %v1468
        %v1470 = vrot.slane %v1456, %v1469
        %v1471 = vcombine.low %v1447, %v1453
        %v1472 = vcombine.high %v1447, %v1453
        %v1474 = vunpack.c.l.s4 1983009808
        %v1475 = vunpack.c.0.s8 %v1474
        %v1476 = vlaneseq
        %v1477 = vshrl.u32 %v1476, 7
        %v1478 = vsub.s32 %v1475, %v1477
        %v1479 = vrot.slane %v1471, %v1478
        %v1481 = vunpack.c.l.s4 1983009808
        %v1482 = vunpack.c.0.s8 %v1481
        %v1483 = vlaneseq
        %v1484 = vshrl.u32 %v1483, 7
        %v1485 = vsub.s32 %v1482, %v1484
        %v1486 = vrot.slane %v1472, %v1485
        %v1487 = vcombine.low %v1463, %v1479
        %v1488 = vcombine.high %v1463, %v1479
        %v1490 = vunpack.c.l.s4 1934713408
        %v1491 = vunpack.c.0.s8 %v1490
        %v1492 = vlaneseq
        %v1493 = vshrl.u32 %v1492, 7
        %v1494 = vsub.s32 %v1491, %v1493
        %v1495 = vrot.slane %v1487, %v1494
        %v1497 = vunpack.c.l.s4 1934713408
        %v1498 = vunpack.c.0.s8 %v1497
        %v1499 = vlaneseq
        %v1500 = vshrl.u32 %v1499, 7
        %v1501 = vsub.s32 %v1498, %v1500
        %v1502 = vrot.slane %v1488, %v1501
        %v1503 = vcombine.low %v1470, %v1486
        %v1504 = vcombine.high %v1470, %v1486
        %v1506 = vunpack.c.l.s4 1934713408
        %v1507 = vunpack.c.0.s8 %v1506
        %v1508 = vlaneseq
        %v1509 = vshrl.u32 %v1508, 7
        %v1510 = vsub.s32 %v1507, %v1509
        %v1511 = vrot.slane %v1503, %v1510
        %v1513 = vunpack.c.l.s4 1934713408
        %v1514 = vunpack.c.0.s8 %v1513
        %v1515 = vlaneseq
        %v1516 = vshrl.u32 %v1515, 7
        %v1517 = vsub.s32 %v1514, %v1516
        %v1518 = vrot.slane %v1504, %v1517
        %v1519 = vcombine.high %v1495, 0.0
        %v1520 = vcombine.high %v1502, 0.0
        %v1521 = vcombine.high %v1511, 0.0
        %v1522 = vcombine.high %v1518, 0.0
        %v1523 = vcombine.low %v1495, %v1502
        %v1525 = vunpack.c.l.s4 1983009808
        %v1526 = vunpack.c.0.s8 %v1525
        %v1527 = vlaneseq
        %v1528 = vshrl.u32 %v1527, 7
        %v1529 = vsub.s32 %v1526, %v1528
        %v1530 = vrot.slane %v1523, %v1529
        %v1531 = vcombine.low %v1519, %v1520
        %v1533 = vunpack.c.l.s4 1983009808
        %v1534 = vunpack.c.0.s8 %v1533
        %v1535 = vlaneseq
        %v1536 = vshrl.u32 %v1535, 7
        %v1537 = vsub.s32 %v1534, %v1536
        %v1538 = vrot.slane %v1531, %v1537
        %v1539 = vcombine.low %v1511, %v1518
        %v1541 = vunpack.c.l.s4 1983009808
        %v1542 = vunpack.c.0.s8 %v1541
        %v1543 = vlaneseq
        %v1544 = vshrl.u32 %v1543, 7
        %v1545 = vsub.s32 %v1542, %v1544
        %v1546 = vrot.slane %v1539, %v1545
        %v1547 = vcombine.low %v1521, %v1522
        %v1549 = vunpack.c.l.s4 1983009808
        %v1550 = vunpack.c.0.s8 %v1549
        %v1551 = vlaneseq
        %v1552 = vshrl.u32 %v1551, 7
        %v1553 = vsub.s32 %v1550, %v1552
        %v1554 = vrot.slane %v1547, %v1553
        %v1555 = vcombine.low %v1530, %v1538
        %v1556 = vcombine.high %v1530, %v1538
        %v1558 = vunpack.c.l.s4 1934713408
        %v1559 = vunpack.c.0.s8 %v1558
        %v1560 = vlaneseq
        %v1561 = vshrl.u32 %v1560, 7
        %v1562 = vsub.s32 %v1559, %v1561
        %v1563 = vrot.slane %v1555, %v1562
        %v1565 = vunpack.c.l.s4 1934713408
        %v1566 = vunpack.c.0.s8 %v1565
        %v1567 = vlaneseq
        %v1568 = vshrl.u32 %v1567, 7
        %v1569 = vsub.s32 %v1566, %v1568
        %v1570 = vrot.slane %v1556, %v1569
        %v1571 = vcombine.low %v1546, %v1554
        %v1572 = vcombine.high %v1546, %v1554
        %v1574 = vunpack.c.l.s4 1934713408
        %v1575 = vunpack.c.0.s8 %v1574
        %v1576 = vlaneseq
        %v1577 = vshrl.u32 %v1576, 7
        %v1578 = vsub.s32 %v1575, %v1577
        %v1579 = vrot.slane %v1571, %v1578
        %v1581 = vunpack.c.l.s4 1934713408
        %v1582 = vunpack.c.0.s8 %v1581
        %v1583 = vlaneseq
        %v1584 = vshrl.u32 %v1583, 7
        %v1585 = vsub.s32 %v1582, %v1584
        %v1586 = vrot.slane %v1572, %v1585
        %v1587 = vcombine.low %v1563, %v1579
        %v1588 = vcombine.high %v1563, %v1579
        %v1589 = vcombine.low %v1570, %v1586
        %v1590 = vcombine.high %v1570, %v1586
        %v1591 = vpack.c.bf16 %v1587, %v1587
        %v1592 = vpack.c.bf16 %v1588, %v1588
        %v1593 = vpack.c.bf16 %v1589, %v1589
        %v1594 = vpack.c.bf16 %v1590, %v1590
        %vm1595 = vcmask 261120
        %v1597 = vsel %vm1595, %v1291, 0
        %v1600 = vsel %vm1595, %v1441, 0
        %1602 = vmatprep.subr.bf16.mxu0 0
        %1603 = vmatpush1.bf16.xpose.msra.mxu0 %v1600
        %1604 = vmatprep.subr.bf16.mxu0 0
        %1605 = vmatpush1.bf16.xpose.msra.mxu0 0
        %1606 = vmatprep.subr.bf16.mxu0 0
        %1607 = vmatpush1.bf16.xpose.msra.mxu0 0
        %1608 = vmatprep.subr.bf16.mxu0 0
        %1609 = vmatpush1.bf16.xpose.msra.mxu0 0
        %1610 = vmatprep.subr.bf16.mxu0 0
        %1611 = vmatpush1.bf16.xpose.msra.mxu0 0
        %1612 = vmatprep.subr.bf16.mxu0 0
        %1613 = vmatpush1.bf16.xpose.msra.mxu0 0
        %1614 = vmatprep.subr.bf16.mxu0 0
        %1615 = vmatpush1.bf16.xpose.msra.mxu0 0
        %1616 = vmatprep.subr.bf16.mxu0 0
        %1617 = vmatpush1.bf16.xpose.msra.mxu0 0
        %1618 = vmatprep.subr.bf16.mxu0 0
        %1619 = vmatpush1.bf16.xpose.msra.mxu0 0
        %1620 = vmatprep.subr.bf16.mxu0 0
        %1621 = vmatpush1.bf16.xpose.msra.mxu0 0
        %1622 = vmatprep.subr.bf16.mxu0 0
        %1623 = vmatpush1.bf16.xpose.msra.mxu0 0
        %1624 = vmatprep.subr.bf16.mxu0 0
        %1625 = vmatpush1.bf16.xpose.msra.mxu0 0
        %1626 = vmatprep.subr.bf16.mxu0 0
        %1627 = vmatpush1.bf16.xpose.msra.mxu0 0
        %1628 = vmatprep.subr.bf16.mxu0 0
        %1629 = vmatpush1.bf16.xpose.msra.mxu0 0
        %1630 = vmatprep.subr.bf16.mxu0 0
        %1631 = vmatpush1.bf16.xpose.msra.mxu0 0
        %1632 = vmatprep.subr.bf16.mxu0 0
        %1633 = vmatpush1.bf16.xpose.msra.mxu0 0
        %1634 = vmatprep.mubr.bf16.mxu0 0
        %1635 = vmatmul.mubr.bf16.gmra.mrb[0].mxu0 %v1597
        %v1636 = vpop.f32.mrb[0].mxu0
        %v1637 = vadd.f32 0.0, %v1636
        %v1638 = vpop.f32.mrb[0].mxu0
        %v1639 = vpop.f32.mrb[0].mxu0
        %v1640 = vpop.f32.mrb[0].mxu0
        %1641 = vdwg.mxu0
        %v1643 = vsel %vm1595, %v1292, 0
        %v1646 = vsel %vm1595, %v1442, 0
        %1648 = vmatprep.subr.bf16.mxu0 0
        %1649 = vmatpush1.bf16.xpose.msra.mxu0 %v1646
        %1650 = vmatprep.subr.bf16.mxu0 0
        %1651 = vmatpush1.bf16.xpose.msra.mxu0 0
        %1652 = vmatprep.subr.bf16.mxu0 0
        %1653 = vmatpush1.bf16.xpose.msra.mxu0 0
        %1654 = vmatprep.subr.bf16.mxu0 0
        %1655 = vmatpush1.bf16.xpose.msra.mxu0 0
        %1656 = vmatprep.subr.bf16.mxu0 0
        %1657 = vmatpush1.bf16.xpose.msra.mxu0 0
        %1658 = vmatprep.subr.bf16.mxu0 0
        %1659 = vmatpush1.bf16.xpose.msra.mxu0 0
        %1660 = vmatprep.subr.bf16.mxu0 0
        %1661 = vmatpush1.bf16.xpose.msra.mxu0 0
        %1662 = vmatprep.subr.bf16.mxu0 0
        %1663 = vmatpush1.bf16.xpose.msra.mxu0 0
        %1664 = vmatprep.subr.bf16.mxu0 0
        %1665 = vmatpush1.bf16.xpose.msra.mxu0 0
        %1666 = vmatprep.subr.bf16.mxu0 0
        %1667 = vmatpush1.bf16.xpose.msra.mxu0 0
        %1668 = vmatprep.subr.bf16.mxu0 0
        %1669 = vmatpush1.bf16.xpose.msra.mxu0 0
        %1670 = vmatprep.subr.bf16.mxu0 0
        %1671 = vmatpush1.bf16.xpose.msra.mxu0 0
        %1672 = vmatprep.subr.bf16.mxu0 0
        %1673 = vmatpush1.bf16.xpose.msra.mxu0 0
        %1674 = vmatprep.subr.bf16.mxu0 0
        %1675 = vmatpush1.bf16.xpose.msra.mxu0 0
        %1676 = vmatprep.subr.bf16.mxu0 0
        %1677 = vmatpush1.bf16.xpose.msra.mxu0 0
        %1678 = vmatprep.subr.bf16.mxu0 0
        %1679 = vmatpush1.bf16.xpose.msra.mxu0 0
        %1680 = vmatprep.mubr.bf16.mxu0 0
        %1681 = vmatmul.mubr.bf16.gmra.mrb[0].mxu0 %v1643
        %v1682 = vpop.f32.mrb[0].mxu0
        %v1683 = vadd.f32 0.0, %v1682
        %v1684 = vpop.f32.mrb[0].mxu0
        %v1685 = vpop.f32.mrb[0].mxu0
        %v1686 = vpop.f32.mrb[0].mxu0
        %1687 = vdwg.mxu0
        %v1689 = vsel %vm1595, %v1293, 0
        %v1692 = vsel %vm1595, %v1443, 0
        %1694 = vmatprep.subr.bf16.mxu0 0
        %1695 = vmatpush1.bf16.xpose.msra.mxu0 %v1692
        %1696 = vmatprep.subr.bf16.mxu0 0
        %1697 = vmatpush1.bf16.xpose.msra.mxu0 0
        %1698 = vmatprep.subr.bf16.mxu0 0
        %1699 = vmatpush1.bf16.xpose.msra.mxu0 0
        %1700 = vmatprep.subr.bf16.mxu0 0
        %1701 = vmatpush1.bf16.xpose.msra.mxu0 0
        %1702 = vmatprep.subr.bf16.mxu0 0
        %1703 = vmatpush1.bf16.xpose.msra.mxu0 0
        %1704 = vmatprep.subr.bf16.mxu0 0
        %1705 = vmatpush1.bf16.xpose.msra.mxu0 0
        %1706 = vmatprep.subr.bf16.mxu0 0
        %1707 = vmatpush1.bf16.xpose.msra.mxu0 0
        %1708 = vmatprep.subr.bf16.mxu0 0
        %1709 = vmatpush1.bf16.xpose.msra.mxu0 0
        %1710 = vmatprep.subr.bf16.mxu0 0
        %1711 = vmatpush1.bf16.xpose.msra.mxu0 0
        %1712 = vmatprep.subr.bf16.mxu0 0
        %1713 = vmatpush1.bf16.xpose.msra.mxu0 0
        %1714 = vmatprep.subr.bf16.mxu0 0
        %1715 = vmatpush1.bf16.xpose.msra.mxu0 0
        %1716 = vmatprep.subr.bf16.mxu0 0
        %1717 = vmatpush1.bf16.xpose.msra.mxu0 0
        %1718 = vmatprep.subr.bf16.mxu0 0
        %1719 = vmatpush1.bf16.xpose.msra.mxu0 0
        %1720 = vmatprep.subr.bf16.mxu0 0
        %1721 = vmatpush1.bf16.xpose.msra.mxu0 0
        %1722 = vmatprep.subr.bf16.mxu0 0
        %1723 = vmatpush1.bf16.xpose.msra.mxu0 0
        %1724 = vmatprep.subr.bf16.mxu0 0
        %1725 = vmatpush1.bf16.xpose.msra.mxu0 0
        %1726 = vmatprep.mubr.bf16.mxu0 0
        %1727 = vmatmul.mubr.bf16.gmra.mrb[0].mxu0 %v1689
        %v1728 = vpop.f32.mrb[0].mxu0
        %v1729 = vadd.f32 0.0, %v1728
        %v1730 = vpop.f32.mrb[0].mxu0
        %v1731 = vpop.f32.mrb[0].mxu0
        %v1732 = vpop.f32.mrb[0].mxu0
        %1733 = vdwg.mxu0
        %v1735 = vsel %vm1595, %v1294, 0
        %v1738 = vsel %vm1595, %v1444, 0
        %1740 = vmatprep.subr.bf16.mxu0 0
        %1741 = vmatpush1.bf16.xpose.msra.mxu0 %v1738
        %1742 = vmatprep.subr.bf16.mxu0 0
        %1743 = vmatpush1.bf16.xpose.msra.mxu0 0
        %1744 = vmatprep.subr.bf16.mxu0 0
        %1745 = vmatpush1.bf16.xpose.msra.mxu0 0
        %1746 = vmatprep.subr.bf16.mxu0 0
        %1747 = vmatpush1.bf16.xpose.msra.mxu0 0
        %1748 = vmatprep.subr.bf16.mxu0 0
        %1749 = vmatpush1.bf16.xpose.msra.mxu0 0
        %1750 = vmatprep.subr.bf16.mxu0 0
        %1751 = vmatpush1.bf16.xpose.msra.mxu0 0
        %1752 = vmatprep.subr.bf16.mxu0 0
        %1753 = vmatpush1.bf16.xpose.msra.mxu0 0
        %1754 = vmatprep.subr.bf16.mxu0 0
        %1755 = vmatpush1.bf16.xpose.msra.mxu0 0
        %1756 = vmatprep.subr.bf16.mxu0 0
        %1757 = vmatpush1.bf16.xpose.msra.mxu0 0
        %1758 = vmatprep.subr.bf16.mxu0 0
        %1759 = vmatpush1.bf16.xpose.msra.mxu0 0
        %1760 = vmatprep.subr.bf16.mxu0 0
        %1761 = vmatpush1.bf16.xpose.msra.mxu0 0
        %1762 = vmatprep.subr.bf16.mxu0 0
        %1763 = vmatpush1.bf16.xpose.msra.mxu0 0
        %1764 = vmatprep.subr.bf16.mxu0 0
        %1765 = vmatpush1.bf16.xpose.msra.mxu0 0
        %1766 = vmatprep.subr.bf16.mxu0 0
        %1767 = vmatpush1.bf16.xpose.msra.mxu0 0
        %1768 = vmatprep.subr.bf16.mxu0 0
        %1769 = vmatpush1.bf16.xpose.msra.mxu0 0
        %1770 = vmatprep.subr.bf16.mxu0 0
        %1771 = vmatpush1.bf16.xpose.msra.mxu0 0
        %1772 = vmatprep.mubr.bf16.mxu0 0
        %1773 = vmatmul.mubr.bf16.gmra.mrb[0].mxu0 %v1735
        %v1774 = vpop.f32.mrb[0].mxu0
        %v1775 = vadd.f32 0.0, %v1774
        %v1776 = vpop.f32.mrb[0].mxu0
        %v1777 = vpop.f32.mrb[0].mxu0
        %v1778 = vpop.f32.mrb[0].mxu0
        %1779 = vdwg.mxu0
        %v1780 = vmul.f32 %v1637, 0.17677669
        %v1781 = vmul.f32 %v1683, 0.17677669
        %v1782 = vmul.f32 %v1729, 0.17677669
        %v1783 = vmul.f32 %v1775, 0.17677669
        %v1784 = vsel %vm874, 1, 0
        %vm1785 = vcmp.eq.s32.totalorder %v1784, 1
        %v1786 = vsel %vm1785, %v1780, -1e+30
        %v1787 = vsel %vm1785, %v1781, -1e+30
        %v1788 = vsel %vm1785, %v1782, -1e+30
        %v1789 = vsel %vm1785, %v1783, -1e+30
        %vm1790 = vcmask 64512
        %v1791 = vsel %vm1790, %v1786, -inf
        %1792 = vmax.xlane.f32.xlu0 %v1791
        %v1793 = vpop.xlane.xlu0 %1792
        %v1794 = vsel %vm1790, %v1787, -inf
        %1795 = vmax.xlane.f32.xlu0 %v1794
        %v1796 = vpop.xlane.xlu0 %1795
        %v1797 = vsel %vm1790, %v1788, -inf
        %1798 = vmax.xlane.f32.xlu0 %v1797
        %v1799 = vpop.xlane.xlu0 %1798
        %v1800 = vsel %vm1790, %v1789, -inf
        %1801 = vmax.xlane.f32.xlu0 %v1800
        %v1802 = vpop.xlane.xlu0 %1801
        %v1803 = vsub.f32 %v1786, %v1793
        %v1804 = vsub.f32 %v1787, %v1796
        %v1805 = vsub.f32 %v1788, %v1799
        %v1806 = vsub.f32 %v1789, %v1802
        %v1807 = vmul.f32 %v1803, 1.442695
        %v1808 = vpow.pop %v1807
        %v1809 = vmul.f32 %v1804, 1.442695
        %v1810 = vpow.pop %v1809
        %v1811 = vmul.f32 %v1805, 1.442695
        %v1812 = vpow.pop %v1811
        %v1813 = vmul.f32 %v1806, 1.442695
        %v1814 = vpow.pop %v1813
        %v1815 = vsel %vm1790, %v1808, 0.0
        %1816 = vadd.xlane.f32.xlu0 %v1815
        %v1817 = vpop.xlane.xlu0 %1816
        %v1818 = vsel %vm1790, %v1810, 0.0
        %1819 = vadd.xlane.f32.xlu0 %v1818
        %v1820 = vpop.xlane.xlu0 %1819
        %v1821 = vsel %vm1790, %v1812, 0.0
        %1822 = vadd.xlane.f32.xlu0 %v1821
        %v1823 = vpop.xlane.xlu0 %1822
        %v1824 = vsel %vm1790, %v1814, 0.0
        %1825 = vadd.xlane.f32.xlu0 %v1824
        %v1826 = vpop.xlane.xlu0 %1825
        %v1827 = vrcp.pop %v1817
        %v1828 = vrcp.pop %v1820
        %v1829 = vrcp.pop %v1823
        %v1830 = vrcp.pop %v1826
        %v1831 = vmul.f32 %v1808, %v1827
        %v1832 = vmul.f32 %v1810, %v1828
        %v1833 = vmul.f32 %v1812, %v1829
        %v1834 = vmul.f32 %v1814, %v1830
        %v1835 = vpack.c.bf16 %v1831, %v1831
        %v1836 = vpack.c.bf16 %v1832, %v1832
        %v1837 = vpack.c.bf16 %v1833, %v1833
        %v1838 = vpack.c.bf16 %v1834, %v1834
        %v1840 = vsel %vm1790, %v1835, 0
        %vm1842 = vcmask 1043456
        %v1844 = vsel %vm1842, %v1591, 0
        %1846 = vmatprep.subr.bf16.mxu0 0
        %1847 = vmatpush1.bf16.msra.mxu0 %v1844
        %1848 = vmatprep.subr.bf16.mxu0 0
        %1849 = vmatpush1.bf16.msra.mxu0 0
        %1850 = vmatprep.subr.bf16.mxu0 0
        %1851 = vmatpush1.bf16.msra.mxu0 0
        %1852 = vmatprep.subr.bf16.mxu0 0
        %1853 = vmatpush1.bf16.msra.mxu0 0
        %1854 = vmatprep.subr.bf16.mxu0 0
        %1855 = vmatpush1.bf16.msra.mxu0 0
        %1856 = vmatprep.subr.bf16.mxu0 0
        %1857 = vmatpush1.bf16.msra.mxu0 0
        %1858 = vmatprep.subr.bf16.mxu0 0
        %1859 = vmatpush1.bf16.msra.mxu0 0
        %1860 = vmatprep.subr.bf16.mxu0 0
        %1861 = vmatpush1.bf16.msra.mxu0 0
        %1862 = vmatprep.subr.bf16.mxu0 0
        %1863 = vmatpush1.bf16.msra.mxu0 0
        %1864 = vmatprep.subr.bf16.mxu0 0
        %1865 = vmatpush1.bf16.msra.mxu0 0
        %1866 = vmatprep.subr.bf16.mxu0 0
        %1867 = vmatpush1.bf16.msra.mxu0 0
        %1868 = vmatprep.subr.bf16.mxu0 0
        %1869 = vmatpush1.bf16.msra.mxu0 0
        %1870 = vmatprep.subr.bf16.mxu0 0
        %1871 = vmatpush1.bf16.msra.mxu0 0
        %1872 = vmatprep.subr.bf16.mxu0 0
        %1873 = vmatpush1.bf16.msra.mxu0 0
        %1874 = vmatprep.subr.bf16.mxu0 0
        %1875 = vmatpush1.bf16.msra.mxu0 0
        %1876 = vmatprep.subr.bf16.mxu0 0
        %1877 = vmatpush1.bf16.msra.mxu0 0
        %1878 = vmatprep.mubr.bf16.mxu0 0
        %1879 = vmatmul.mubr.bf16.gmra.mrb[0].mxu0 %v1840
        %v1880 = vpop.f32.mrb[0].mxu0
        %v1881 = vadd.f32 0.0, %v1880
        %v1882 = vpop.f32.mrb[0].mxu0
        %v1883 = vpop.f32.mrb[0].mxu0
        %v1884 = vpop.f32.mrb[0].mxu0
        %1885 = vdwg.mxu0
        %v1887 = vsel %vm1790, %v1836, 0
        %v1890 = vsel %vm1842, %v1592, 0
        %1892 = vmatprep.subr.bf16.mxu0 0
        %1893 = vmatpush1.bf16.msra.mxu0 %v1890
        %1894 = vmatprep.subr.bf16.mxu0 0
        %1895 = vmatpush1.bf16.msra.mxu0 0
        %1896 = vmatprep.subr.bf16.mxu0 0
        %1897 = vmatpush1.bf16.msra.mxu0 0
        %1898 = vmatprep.subr.bf16.mxu0 0
        %1899 = vmatpush1.bf16.msra.mxu0 0
        %1900 = vmatprep.subr.bf16.mxu0 0
        %1901 = vmatpush1.bf16.msra.mxu0 0
        %1902 = vmatprep.subr.bf16.mxu0 0
        %1903 = vmatpush1.bf16.msra.mxu0 0
        %1904 = vmatprep.subr.bf16.mxu0 0
        %1905 = vmatpush1.bf16.msra.mxu0 0
        %1906 = vmatprep.subr.bf16.mxu0 0
        %1907 = vmatpush1.bf16.msra.mxu0 0
        %1908 = vmatprep.subr.bf16.mxu0 0
        %1909 = vmatpush1.bf16.msra.mxu0 0
        %1910 = vmatprep.subr.bf16.mxu0 0
        %1911 = vmatpush1.bf16.msra.mxu0 0
        %1912 = vmatprep.subr.bf16.mxu0 0
        %1913 = vmatpush1.bf16.msra.mxu0 0
        %1914 = vmatprep.subr.bf16.mxu0 0
        %1915 = vmatpush1.bf16.msra.mxu0 0
        %1916 = vmatprep.subr.bf16.mxu0 0
        %1917 = vmatpush1.bf16.msra.mxu0 0
        %1918 = vmatprep.subr.bf16.mxu0 0
        %1919 = vmatpush1.bf16.msra.mxu0 0
        %1920 = vmatprep.subr.bf16.mxu0 0
        %1921 = vmatpush1.bf16.msra.mxu0 0
        %1922 = vmatprep.subr.bf16.mxu0 0
        %1923 = vmatpush1.bf16.msra.mxu0 0
        %1924 = vmatprep.mubr.bf16.mxu0 0
        %1925 = vmatmul.mubr.bf16.gmra.mrb[0].mxu0 %v1887
        %v1926 = vpop.f32.mrb[0].mxu0
        %v1927 = vadd.f32 0.0, %v1926
        %v1928 = vpop.f32.mrb[0].mxu0
        %v1929 = vpop.f32.mrb[0].mxu0
        %v1930 = vpop.f32.mrb[0].mxu0
        %1931 = vdwg.mxu0
        %v1933 = vsel %vm1790, %v1837, 0
        %v1936 = vsel %vm1842, %v1593, 0
        %1938 = vmatprep.subr.bf16.mxu0 0
        %1939 = vmatpush1.bf16.msra.mxu0 %v1936
        %1940 = vmatprep.subr.bf16.mxu0 0
        %1941 = vmatpush1.bf16.msra.mxu0 0
        %1942 = vmatprep.subr.bf16.mxu0 0
        %1943 = vmatpush1.bf16.msra.mxu0 0
        %1944 = vmatprep.subr.bf16.mxu0 0
        %1945 = vmatpush1.bf16.msra.mxu0 0
        %1946 = vmatprep.subr.bf16.mxu0 0
        %1947 = vmatpush1.bf16.msra.mxu0 0
        %1948 = vmatprep.subr.bf16.mxu0 0
        %1949 = vmatpush1.bf16.msra.mxu0 0
        %1950 = vmatprep.subr.bf16.mxu0 0
        %1951 = vmatpush1.bf16.msra.mxu0 0
        %1952 = vmatprep.subr.bf16.mxu0 0
        %1953 = vmatpush1.bf16.msra.mxu0 0
        %1954 = vmatprep.subr.bf16.mxu0 0
        %1955 = vmatpush1.bf16.msra.mxu0 0
        %1956 = vmatprep.subr.bf16.mxu0 0
        %1957 = vmatpush1.bf16.msra.mxu0 0
        %1958 = vmatprep.subr.bf16.mxu0 0
        %1959 = vmatpush1.bf16.msra.mxu0 0
        %1960 = vmatprep.subr.bf16.mxu0 0
        %1961 = vmatpush1.bf16.msra.mxu0 0
        %1962 = vmatprep.subr.bf16.mxu0 0
        %1963 = vmatpush1.bf16.msra.mxu0 0
        %1964 = vmatprep.subr.bf16.mxu0 0
        %1965 = vmatpush1.bf16.msra.mxu0 0
        %1966 = vmatprep.subr.bf16.mxu0 0
        %1967 = vmatpush1.bf16.msra.mxu0 0
        %1968 = vmatprep.subr.bf16.mxu0 0
        %1969 = vmatpush1.bf16.msra.mxu0 0
        %1970 = vmatprep.mubr.bf16.mxu0 0
        %1971 = vmatmul.mubr.bf16.gmra.mrb[0].mxu0 %v1933
        %v1972 = vpop.f32.mrb[0].mxu0
        %v1973 = vadd.f32 0.0, %v1972
        %v1974 = vpop.f32.mrb[0].mxu0
        %v1975 = vpop.f32.mrb[0].mxu0
        %v1976 = vpop.f32.mrb[0].mxu0
        %1977 = vdwg.mxu0
        %v1979 = vsel %vm1790, %v1838, 0
        %v1982 = vsel %vm1842, %v1594, 0
        %1984 = vmatprep.subr.bf16.mxu0 0
        %1985 = vmatpush1.bf16.msra.mxu0 %v1982
        %1986 = vmatprep.subr.bf16.mxu0 0
        %1987 = vmatpush1.bf16.msra.mxu0 0
        %1988 = vmatprep.subr.bf16.mxu0 0
        %1989 = vmatpush1.bf16.msra.mxu0 0
        %1990 = vmatprep.subr.bf16.mxu0 0
        %1991 = vmatpush1.bf16.msra.mxu0 0
        %1992 = vmatprep.subr.bf16.mxu0 0
        %1993 = vmatpush1.bf16.msra.mxu0 0
        %1994 = vmatprep.subr.bf16.mxu0 0
        %1995 = vmatpush1.bf16.msra.mxu0 0
        %1996 = vmatprep.subr.bf16.mxu0 0
        %1997 = vmatpush1.bf16.msra.mxu0 0
        %1998 = vmatprep.subr.bf16.mxu0 0
        %1999 = vmatpush1.bf16.msra.mxu0 0
        %2000 = vmatprep.subr.bf16.mxu0 0
        %2001 = vmatpush1.bf16.msra.mxu0 0
        %2002 = vmatprep.subr.bf16.mxu0 0
        %2003 = vmatpush1.bf16.msra.mxu0 0
        %2004 = vmatprep.subr.bf16.mxu0 0
        %2005 = vmatpush1.bf16.msra.mxu0 0
        %2006 = vmatprep.subr.bf16.mxu0 0
        %2007 = vmatpush1.bf16.msra.mxu0 0
        %2008 = vmatprep.subr.bf16.mxu0 0
        %2009 = vmatpush1.bf16.msra.mxu0 0
        %2010 = vmatprep.subr.bf16.mxu0 0
        %2011 = vmatpush1.bf16.msra.mxu0 0
        %2012 = vmatprep.subr.bf16.mxu0 0
        %2013 = vmatpush1.bf16.msra.mxu0 0
        %2014 = vmatprep.subr.bf16.mxu0 0
        %2015 = vmatpush1.bf16.msra.mxu0 0
        %2016 = vmatprep.mubr.bf16.mxu0 0
        %2017 = vmatmul.mubr.bf16.gmra.mrb[0].mxu0 %v1979
        %v2018 = vpop.f32.mrb[0].mxu0
        %v2019 = vadd.f32 0.0, %v2018
        %v2020 = vpop.f32.mrb[0].mxu0
        %v2021 = vpop.f32.mrb[0].mxu0
        %v2022 = vpop.f32.mrb[0].mxu0
        %2023 = vdwg.mxu0
        %v2024 = vcombine.low %v1881, %v1973
        %v2025 = vcombine.high %v1881, %v1973
        %v2027 = vunpack.c.l.s4 1983009808
        %v2028 = vunpack.c.0.s8 %v2027
        %v2029 = vlaneseq
        %v2030 = vshrl.u32 %v2029, 7
        %v2031 = vsub.s32 %v2028, %v2030
        %v2032 = vrot.slane %v2024, %v2031
        %v2034 = vunpack.c.l.s4 1983009808
        %v2035 = vunpack.c.0.s8 %v2034
        %v2036 = vlaneseq
        %v2037 = vshrl.u32 %v2036, 7
        %v2038 = vsub.s32 %v2035, %v2037
        %v2039 = vrot.slane %v2025, %v2038
        %v2040 = vcombine.low %v1927, %v2019
        %v2041 = vcombine.high %v1927, %v2019
        %v2043 = vunpack.c.l.s4 1983009808
        %v2044 = vunpack.c.0.s8 %v2043
        %v2045 = vlaneseq
        %v2046 = vshrl.u32 %v2045, 7
        %v2047 = vsub.s32 %v2044, %v2046
        %v2048 = vrot.slane %v2040, %v2047
        %v2050 = vunpack.c.l.s4 1983009808
        %v2051 = vunpack.c.0.s8 %v2050
        %v2052 = vlaneseq
        %v2053 = vshrl.u32 %v2052, 7
        %v2054 = vsub.s32 %v2051, %v2053
        %v2055 = vrot.slane %v2041, %v2054
        %v2056 = vcombine.low %v2032, %v2048
        %v2057 = vcombine.high %v2032, %v2048
        %v2059 = vunpack.c.l.s4 1934713408
        %v2060 = vunpack.c.0.s8 %v2059
        %v2061 = vlaneseq
        %v2062 = vshrl.u32 %v2061, 7
        %v2063 = vsub.s32 %v2060, %v2062
        %v2064 = vrot.slane %v2056, %v2063
        %v2066 = vunpack.c.l.s4 1934713408
        %v2067 = vunpack.c.0.s8 %v2066
        %v2068 = vlaneseq
        %v2069 = vshrl.u32 %v2068, 7
        %v2070 = vsub.s32 %v2067, %v2069
        %v2071 = vrot.slane %v2057, %v2070
        %v2072 = vcombine.low %v2039, %v2055
        %v2073 = vcombine.high %v2039, %v2055
        %v2075 = vunpack.c.l.s4 1934713408
        %v2076 = vunpack.c.0.s8 %v2075
        %v2077 = vlaneseq
        %v2078 = vshrl.u32 %v2077, 7
        %v2079 = vsub.s32 %v2076, %v2078
        %v2080 = vrot.slane %v2072, %v2079
        %v2082 = vunpack.c.l.s4 1934713408
        %v2083 = vunpack.c.0.s8 %v2082
        %v2084 = vlaneseq
        %v2085 = vshrl.u32 %v2084, 7
        %v2086 = vsub.s32 %v2083, %v2085
        %v2087 = vrot.slane %v2073, %v2086
        %v2088 = vcombine.high %v2064, 0.0
        %v2089 = vcombine.high %v2071, 0.0
        %v2090 = vcombine.high %v2080, 0.0
        %v2091 = vcombine.high %v2087, 0.0
        %v2092 = vcombine.low %v2064, %v2071
        %v2094 = vunpack.c.l.s4 1983009808
        %v2095 = vunpack.c.0.s8 %v2094
        %v2096 = vlaneseq
        %v2097 = vshrl.u32 %v2096, 7
        %v2098 = vsub.s32 %v2095, %v2097
        %v2099 = vrot.slane %v2092, %v2098
        %v2100 = vcombine.low %v2088, %v2089
        %v2102 = vunpack.c.l.s4 1983009808
        %v2103 = vunpack.c.0.s8 %v2102
        %v2104 = vlaneseq
        %v2105 = vshrl.u32 %v2104, 7
        %v2106 = vsub.s32 %v2103, %v2105
        %v2107 = vrot.slane %v2100, %v2106
        %v2108 = vcombine.low %v2080, %v2087
        %v2110 = vunpack.c.l.s4 1983009808
        %v2111 = vunpack.c.0.s8 %v2110
        %v2112 = vlaneseq
        %v2113 = vshrl.u32 %v2112, 7
        %v2114 = vsub.s32 %v2111, %v2113
        %v2115 = vrot.slane %v2108, %v2114
        %v2116 = vcombine.low %v2090, %v2091
        %v2118 = vunpack.c.l.s4 1983009808
        %v2119 = vunpack.c.0.s8 %v2118
        %v2120 = vlaneseq
        %v2121 = vshrl.u32 %v2120, 7
        %v2122 = vsub.s32 %v2119, %v2121
        %v2123 = vrot.slane %v2116, %v2122
        %v2124 = vcombine.low %v2099, %v2107
        %v2125 = vcombine.high %v2099, %v2107
        %v2127 = vunpack.c.l.s4 1934713408
        %v2128 = vunpack.c.0.s8 %v2127
        %v2129 = vlaneseq
        %v2130 = vshrl.u32 %v2129, 7
        %v2131 = vsub.s32 %v2128, %v2130
        %v2132 = vrot.slane %v2124, %v2131
        %v2134 = vunpack.c.l.s4 1934713408
        %v2135 = vunpack.c.0.s8 %v2134
        %v2136 = vlaneseq
        %v2137 = vshrl.u32 %v2136, 7
        %v2138 = vsub.s32 %v2135, %v2137
        %v2139 = vrot.slane %v2125, %v2138
        %v2140 = vcombine.low %v2115, %v2123
        %v2141 = vcombine.high %v2115, %v2123
        %v2143 = vunpack.c.l.s4 1934713408
        %v2144 = vunpack.c.0.s8 %v2143
        %v2145 = vlaneseq
        %v2146 = vshrl.u32 %v2145, 7
        %v2147 = vsub.s32 %v2144, %v2146
        %v2148 = vrot.slane %v2140, %v2147
        %v2150 = vunpack.c.l.s4 1934713408
        %v2151 = vunpack.c.0.s8 %v2150
        %v2152 = vlaneseq
        %v2153 = vshrl.u32 %v2152, 7
        %v2154 = vsub.s32 %v2151, %v2153
        %v2155 = vrot.slane %v2141, %v2154
        %v2156 = vcombine.low %v2132, %v2148
        %v2157 = vcombine.high %v2132, %v2148
        %v2158 = vcombine.low %v2139, %v2155
        %v2159 = vcombine.high %v2139, %v2155
        %2161 = vrot.lane.b32.xlu0 %v2157, 32
        %v2162 = vpop.permute.xlu0 %2161
        %2165 = vrot.lane.b32.xlu0 %v2158, 64
        %v2166 = vpop.permute.xlu0 %2165
        %2169 = vrot.lane.b32.xlu0 %v2159, 96
        %v2170 = vpop.permute.xlu0 %2169
        %v2172 = vsel %vm1595, %v2156, %v2162
        %vm2173 = vcmask 523264
        %v2174 = vsel %vm2173, %v2172, %v2166
        %vm2175 = vcmask 785408
        %v2176 = vsel %vm2175, %v2174, %v2170
        %v2177 = vld [vmem:[#allocation7] sm:$0xf]
        %v2178 = vld [vmem:[#allocation7 + $0x4] sm:$0xf]
        %v2179 = vld [vmem:[#allocation7 + $0x8] sm:$0xf]
        %v2180 = vld [vmem:[#allocation7 + $0xc] sm:$0xf]
        %v2181 = vld [vmem:[#allocation7 + $0x10] sm:$0xf]
        %v2182 = vld [vmem:[#allocation7 + $0x14] sm:$0xf]
        %v2183 = vld [vmem:[#allocation7 + $0x18] sm:$0xf]
        %v2184 = vld [vmem:[#allocation7 + $0x1c] sm:$0xf]
        %v2185 = vld [vmem:[#allocation7 + $0x20] sm:$0xf]
        %v2186 = vld [vmem:[#allocation7 + $0x24] sm:$0xf]
        %v2187 = vld [vmem:[#allocation7 + $0x28] sm:$0xf]
        %v2188 = vld [vmem:[#allocation7 + $0x2c] sm:$0xf]
        %v2189 = vld [vmem:[#allocation7 + $0x30] sm:$0xf]
        %v2190 = vld [vmem:[#allocation7 + $0x34] sm:$0xf]
        %v2191 = vld [vmem:[#allocation7 + $0x38] sm:$0xf]
        %v2192 = vld [vmem:[#allocation7 + $0x3c] sm:$0xf]
        %v2193 = vpack.c.bf16 %v2176, %v2176
        %v2210 = vunpack.c.l.b16 %v2177
        %v2211 = vunpack.c.l.b16 %v2178
        %v2212 = vunpack.c.l.b16 %v2179
        %v2213 = vunpack.c.l.b16 %v2180
        %v2214 = vunpack.c.l.b16 %v2181
        %v2215 = vunpack.c.l.b16 %v2182
        %v2216 = vunpack.c.l.b16 %v2183
        %v2217 = vunpack.c.l.b16 %v2184
        %v2218 = vunpack.c.l.b16 %v2185
        %v2219 = vunpack.c.l.b16 %v2186
        %v2220 = vunpack.c.l.b16 %v2187
        %v2221 = vunpack.c.l.b16 %v2188
        %v2222 = vunpack.c.l.b16 %v2189
        %v2223 = vunpack.c.l.b16 %v2190
        %v2224 = vunpack.c.l.b16 %v2191
        %v2225 = vunpack.c.l.b16 %v2192
        %v2226 = vpack.c.b16 %v2211, %v2210
        %v2227 = vpack.c.b16 %v2213, %v2212
        %v2228 = vpack.c.b16 %v2215, %v2214
        %v2229 = vpack.c.b16 %v2217, %v2216
        %v2230 = vpack.c.b16 %v2219, %v2218
        %v2231 = vpack.c.b16 %v2221, %v2220
        %v2232 = vpack.c.b16 %v2223, %v2222
        %v2233 = vpack.c.b16 %v2225, %v2224
        %2242 = vmatprep.subr.bf16.mxu0 0
        %2243 = vmatpush1.bf16.msra.mxu0 %v2226
        %2244 = vmatprep.subr.bf16.mxu0 0
        %2245 = vmatpush1.bf16.msra.mxu0 %v2227
        %2246 = vmatprep.subr.bf16.mxu0 0
        %2247 = vmatpush1.bf16.msra.mxu0 %v2228
        %2248 = vmatprep.subr.bf16.mxu0 0
        %2249 = vmatpush1.bf16.msra.mxu0 %v2229
        %2250 = vmatprep.subr.bf16.mxu0 0
        %2251 = vmatpush1.bf16.msra.mxu0 %v2230
        %2252 = vmatprep.subr.bf16.mxu0 0
        %2253 = vmatpush1.bf16.msra.mxu0 %v2231
        %2254 = vmatprep.subr.bf16.mxu0 0
        %2255 = vmatpush1.bf16.msra.mxu0 %v2232
        %2256 = vmatprep.subr.bf16.mxu0 0
        %2257 = vmatpush1.bf16.msra.mxu0 %v2233
        %2258 = vmatprep.subr.bf16.mxu0 0
        %2259 = vmatpush1.bf16.msra.mxu0 0
        %2260 = vmatprep.subr.bf16.mxu0 0
        %2261 = vmatpush1.bf16.msra.mxu0 0
        %2262 = vmatprep.subr.bf16.mxu0 0
        %2263 = vmatpush1.bf16.msra.mxu0 0
        %2264 = vmatprep.subr.bf16.mxu0 0
        %2265 = vmatpush1.bf16.msra.mxu0 0
        %2266 = vmatprep.subr.bf16.mxu0 0
        %2267 = vmatpush1.bf16.msra.mxu0 0
        %2268 = vmatprep.subr.bf16.mxu0 0
        %2269 = vmatpush1.bf16.msra.mxu0 0
        %2270 = vmatprep.subr.bf16.mxu0 0
        %2271 = vmatpush1.bf16.msra.mxu0 0
        %2272 = vmatprep.subr.bf16.mxu0 0
        %2273 = vmatpush1.bf16.msra.mxu0 0
        %2274 = vmatprep.mubr.bf16.mxu0 0
        %2275 = vmatmul.mubr.bf16.gmra.mrb[0].mxu0 %v2193
        %v2276 = vpop.f32.mrb[0].mxu0
        %v2277 = vadd.f32 0.0, %v2276
        %v2278 = vpop.f32.mrb[0].mxu0
        %v2279 = vpop.f32.mrb[0].mxu0
        %v2280 = vpop.f32.mrb[0].mxu0
        %2281 = vdwg.mxu0
        %v2282 = vadd.f32 %v867, %v2277
        %v2283 = vld [vmem:[%s7] sm:$0x1]
        %v2285 = vlaneseq
        %v2286 = vshrl.u32 %v2285, 7
        %v2287 = vsub.s32 0, %v2286
        %v2288 = vrot.slane %v2283, %v2287
        %v2290 = vadd.f32 %v2282, %v2288
        %v2291 = vld [vmem:[%s8] sm:$0x1]
        %v2292 = vld [vmem:[%s9] sm:$0x1]
        %2293 = vadd.xlane.f32.xlu0 %v2290
        %v2294 = vpop.xlane.xlu0 %2293
        %v2295 = vmul.f32 %v2294, %v879
        %v2296 = vsub.f32 %v2290, %v2295
        %v2297 = vmul.f32 %v2296, %v2296
        %2298 = vadd.xlane.f32.xlu0 %v2297
        %v2299 = vpop.xlane.xlu0 %2298
        %v2300 = vmul.f32 %v2299, %v879
        %v2301 = vadd.f32 %v2300, 1e-05
        %v2302 = vrsqrt.pop %v2301
        %v2303 = vmul.f32 %v2296, %v2302
        %v2305 = vlaneseq
        %v2306 = vshrl.u32 %v2305, 7
        %v2307 = vsub.s32 0, %v2306
        %v2308 = vrot.slane %v2291, %v2307
        %v2310 = vmul.f32 %v2303, %v2308
        %v2312 = vlaneseq
        %v2313 = vshrl.u32 %v2312, 7
        %v2314 = vsub.s32 0, %v2313
        %v2315 = vrot.slane %v2292, %v2314
        %v2317 = vadd.f32 %v2310, %v2315
        %v2318 = vld [vmem:[#allocation8] sm:$0xff]
        %v2319 = vld [vmem:[#allocation8 + $0x8] sm:$0xff]
        %v2320 = vld [vmem:[#allocation8 + $0x10] sm:$0xff]
        %v2321 = vld [vmem:[#allocation8 + $0x18] sm:$0xff]
        %v2322 = vld [vmem:[#allocation8 + $0x20] sm:$0xff]
        %v2323 = vld [vmem:[#allocation8 + $0x28] sm:$0xff]
        %v2324 = vld [vmem:[#allocation8 + $0x30] sm:$0xff]
        %v2325 = vld [vmem:[#allocation8 + $0x38] sm:$0xff]
        %v2326 = vld [vmem:[#allocation8 + $0x40] sm:$0xff]
        %v2327 = vld [vmem:[#allocation8 + $0x48] sm:$0xff]
        %v2328 = vld [vmem:[#allocation8 + $0x50] sm:$0xff]
        %v2329 = vld [vmem:[#allocation8 + $0x58] sm:$0xff]
        %v2330 = vld [vmem:[#allocation8 + $0x60] sm:$0xff]
        %v2331 = vld [vmem:[#allocation8 + $0x68] sm:$0xff]
        %v2332 = vld [vmem:[#allocation8 + $0x70] sm:$0xff]
        %v2333 = vld [vmem:[#allocation8 + $0x78] sm:$0xff]
        %v2334 = vld [vmem:[#allocation8 + $0x80] sm:$0xff]
        %v2335 = vld [vmem:[#allocation8 + $0x88] sm:$0xff]
        %v2336 = vld [vmem:[#allocation8 + $0x90] sm:$0xff]
        %v2337 = vld [vmem:[#allocation8 + $0x98] sm:$0xff]
        %v2338 = vld [vmem:[#allocation8 + $0xa0] sm:$0xff]
        %v2339 = vld [vmem:[#allocation8 + $0xa8] sm:$0xff]
        %v2340 = vld [vmem:[#allocation8 + $0xb0] sm:$0xff]
        %v2341 = vld [vmem:[#allocation8 + $0xb8] sm:$0xff]
        %v2342 = vld [vmem:[#allocation8 + $0xc0] sm:$0xff]
        %v2343 = vld [vmem:[#allocation8 + $0xc8] sm:$0xff]
        %v2344 = vld [vmem:[#allocation8 + $0xd0] sm:$0xff]
        %v2345 = vld [vmem:[#allocation8 + $0xd8] sm:$0xff]
        %v2346 = vld [vmem:[#allocation8 + $0xe0] sm:$0xff]
        %v2347 = vld [vmem:[#allocation8 + $0xe8] sm:$0xff]
        %v2348 = vld [vmem:[#allocation8 + $0xf0] sm:$0xff]
        %v2349 = vld [vmem:[#allocation8 + $0xf8] sm:$0xff]
        %v2350 = vpack.c.bf16 %v2317, %v2317
        %v2351 = vld [vmem:[%s11] sm:$0xf]
        %v2353 = vlaneseq
        %v2354 = vshrl.u32 %v2353, 7
        %v2355 = vsub.s32 0, %v2354
        %v2356 = vrot.slane %v2351, %v2355
        %v2357 = vlaneseq
        %v2358 = vshrl.u32 %v2357, 7
        %v2359 = vsub.s32 1, %v2358
        %v2360 = vrot.slane %v2351, %v2359
        %v2361 = vlaneseq
        %v2362 = vshrl.u32 %v2361, 7
        %v2363 = vsub.s32 2, %v2362
        %v2364 = vrot.slane %v2351, %v2363
        %v2365 = vlaneseq
        %v2366 = vshrl.u32 %v2365, 7
        %v2367 = vsub.s32 3, %v2366
        %v2368 = vrot.slane %v2351, %v2367
        %v2405 = vunpack.c.l.b16 %v2318
        %v2406 = vunpack.c.h.b16 %v2318
        %v2407 = vunpack.c.l.b16 %v2319
        %v2408 = vunpack.c.h.b16 %v2319
        %v2409 = vunpack.c.l.b16 %v2320
        %v2410 = vunpack.c.h.b16 %v2320
        %v2411 = vunpack.c.l.b16 %v2321
        %v2412 = vunpack.c.h.b16 %v2321
        %v2413 = vunpack.c.l.b16 %v2322
        %v2414 = vunpack.c.h.b16 %v2322
        %v2415 = vunpack.c.l.b16 %v2323
        %v2416 = vunpack.c.h.b16 %v2323
        %v2417 = vunpack.c.l.b16 %v2324
        %v2418 = vunpack.c.h.b16 %v2324
        %v2419 = vunpack.c.l.b16 %v2325
        %v2420 = vunpack.c.h.b16 %v2325
        %v2421 = vunpack.c.l.b16 %v2326
        %v2422 = vunpack.c.h.b16 %v2326
        %v2423 = vunpack.c.l.b16 %v2327
        %v2424 = vunpack.c.h.b16 %v2327
        %v2425 = vunpack.c.l.b16 %v2328
        %v2426 = vunpack.c.h.b16 %v2328
        %v2427 = vunpack.c.l.b16 %v2329
        %v2428 = vunpack.c.h.b16 %v2329
        %v2429 = vunpack.c.l.b16 %v2330
        %v2430 = vunpack.c.h.b16 %v2330
        %v2431 = vunpack.c.l.b16 %v2331
        %v2432 = vunpack.c.h.b16 %v2331
        %v2433 = vunpack.c.l.b16 %v2332
        %v2434 = vunpack.c.h.b16 %v2332
        %v2435 = vunpack.c.l.b16 %v2333
        %v2436 = vunpack.c.h.b16 %v2333
        %v2437 = vunpack.c.l.b16 %v2334
        %v2438 = vunpack.c.h.b16 %v2334
        %v2439 = vunpack.c.l.b16 %v2335
        %v2440 = vunpack.c.h.b16 %v2335
        %v2441 = vunpack.c.l.b16 %v2336
        %v2442 = vunpack.c.h.b16 %v2336
        %v2443 = vunpack.c.l.b16 %v2337
        %v2444 = vunpack.c.h.b16 %v2337
        %v2445 = vunpack.c.l.b16 %v2338
        %v2446 = vunpack.c.h.b16 %v2338
        %v2447 = vunpack.c.l.b16 %v2339
        %v2448 = vunpack.c.h.b16 %v2339
        %v2449 = vunpack.c.l.b16 %v2340
        %v2450 = vunpack.c.h.b16 %v2340
        %v2451 = vunpack.c.l.b16 %v2341
        %v2452 = vunpack.c.h.b16 %v2341
        %v2453 = vunpack.c.l.b16 %v2342
        %v2454 = vunpack.c.h.b16 %v2342
        %v2455 = vunpack.c.l.b16 %v2343
        %v2456 = vunpack.c.h.b16 %v2343
        %v2457 = vunpack.c.l.b16 %v2344
        %v2458 = vunpack.c.h.b16 %v2344
        %v2459 = vunpack.c.l.b16 %v2345
        %v2460 = vunpack.c.h.b16 %v2345
        %v2461 = vunpack.c.l.b16 %v2346
        %v2462 = vunpack.c.h.b16 %v2346
        %v2463 = vunpack.c.l.b16 %v2347
        %v2464 = vunpack.c.h.b16 %v2347
        %v2465 = vunpack.c.l.b16 %v2348
        %v2466 = vunpack.c.h.b16 %v2348
        %v2467 = vunpack.c.l.b16 %v2349
        %v2468 = vunpack.c.h.b16 %v2349
        %v2469 = vpack.c.b16 %v2409, %v2405
        %v2470 = vpack.c.b16 %v2410, %v2406
        %v2471 = vpack.c.b16 %v2411, %v2407
        %v2472 = vpack.c.b16 %v2412, %v2408
        %v2473 = vpack.c.b16 %v2417, %v2413
        %v2474 = vpack.c.b16 %v2418, %v2414
        %v2475 = vpack.c.b16 %v2419, %v2415
        %v2476 = vpack.c.b16 %v2420, %v2416
        %v2477 = vpack.c.b16 %v2425, %v2421
        %v2478 = vpack.c.b16 %v2426, %v2422
        %v2479 = vpack.c.b16 %v2427, %v2423
        %v2480 = vpack.c.b16 %v2428, %v2424
        %v2481 = vpack.c.b16 %v2433, %v2429
        %v2482 = vpack.c.b16 %v2434, %v2430
        %v2483 = vpack.c.b16 %v2435, %v2431
        %v2484 = vpack.c.b16 %v2436, %v2432
        %v2485 = vpack.c.b16 %v2441, %v2437
        %v2486 = vpack.c.b16 %v2442, %v2438
        %v2487 = vpack.c.b16 %v2443, %v2439
        %v2488 = vpack.c.b16 %v2444, %v2440
        %v2489 = vpack.c.b16 %v2449, %v2445
        %v2490 = vpack.c.b16 %v2450, %v2446
        %v2491 = vpack.c.b16 %v2451, %v2447
        %v2492 = vpack.c.b16 %v2452, %v2448
        %v2493 = vpack.c.b16 %v2457, %v2453
        %v2494 = vpack.c.b16 %v2458, %v2454
        %v2495 = vpack.c.b16 %v2459, %v2455
        %v2496 = vpack.c.b16 %v2460, %v2456
        %v2497 = vpack.c.b16 %v2465, %v2461
        %v2498 = vpack.c.b16 %v2466, %v2462
        %v2499 = vpack.c.b16 %v2467, %v2463
        %v2500 = vpack.c.b16 %v2468, %v2464
        %2533 = vmatprep.subr.bf16.mxu0 %v2470
        %2534 = vmatpush1.bf16.msra.mxu0 %v2469
        %2535 = vmatprep.subr.bf16.mxu0 %v2474
        %2536 = vmatpush1.bf16.msra.mxu0 %v2473
        %2537 = vmatprep.subr.bf16.mxu0 %v2478
        %2538 = vmatpush1.bf16.msra.mxu0 %v2477
        %2539 = vmatprep.subr.bf16.mxu0 %v2482
        %2540 = vmatpush1.bf16.msra.mxu0 %v2481
        %2541 = vmatprep.subr.bf16.mxu0 %v2486
        %2542 = vmatpush1.bf16.msra.mxu0 %v2485
        %2543 = vmatprep.subr.bf16.mxu0 %v2490
        %2544 = vmatpush1.bf16.msra.mxu0 %v2489
        %2545 = vmatprep.subr.bf16.mxu0 %v2494
        %2546 = vmatpush1.bf16.msra.mxu0 %v2493
        %2547 = vmatprep.subr.bf16.mxu0 %v2498
        %2548 = vmatpush1.bf16.msra.mxu0 %v2497
        %2549 = vmatprep.subr.bf16.mxu0 0
        %2550 = vmatpush1.bf16.msra.mxu0 0
        %2551 = vmatprep.subr.bf16.mxu0 0
        %2552 = vmatpush1.bf16.msra.mxu0 0
        %2553 = vmatprep.subr.bf16.mxu0 0
        %2554 = vmatpush1.bf16.msra.mxu0 0
        %2555 = vmatprep.subr.bf16.mxu0 0
        %2556 = vmatpush1.bf16.msra.mxu0 0
        %2557 = vmatprep.subr.bf16.mxu0 0
        %2558 = vmatpush1.bf16.msra.mxu0 0
        %2559 = vmatprep.subr.bf16.mxu0 0
        %2560 = vmatpush1.bf16.msra.mxu0 0
        %2561 = vmatprep.subr.bf16.mxu0 0
        %2562 = vmatpush1.bf16.msra.mxu0 0
        %2563 = vmatprep.subr.bf16.mxu0 0
        %2564 = vmatpush1.bf16.msra.mxu0 0
        %2565 = vmatprep.mubr.bf16.mxu0 0
        %2566 = vmatmul.mubr.bf16.gmra.mrb[0].mxu0 %v2350
        %v2567 = vpop.f32.mrb[0].mxu0
        %v2568 = vadd.f32 %v2356, %v2567
        %v2569 = vpop.f32.mrb[0].mxu0
        %v2570 = vadd.f32 %v2360, %v2569
        %v2571 = vpop.f32.mrb[0].mxu0
        %v2572 = vpop.f32.mrb[0].mxu0
        %2573 = vdwg.mxu0
        %2574 = vmatprep.subr.bf16.mxu0 %v2472
        %2575 = vmatpush1.bf16.msra.mxu0 %v2471
        %2576 = vmatprep.subr.bf16.mxu0 %v2476
        %2577 = vmatpush1.bf16.msra.mxu0 %v2475
        %2578 = vmatprep.subr.bf16.mxu0 %v2480
        %2579 = vmatpush1.bf16.msra.mxu0 %v2479
        %2580 = vmatprep.subr.bf16.mxu0 %v2484
        %2581 = vmatpush1.bf16.msra.mxu0 %v2483
        %2582 = vmatprep.subr.bf16.mxu0 %v2488
        %2583 = vmatpush1.bf16.msra.mxu0 %v2487
        %2584 = vmatprep.subr.bf16.mxu0 %v2492
        %2585 = vmatpush1.bf16.msra.mxu0 %v2491
        %2586 = vmatprep.subr.bf16.mxu0 %v2496
        %2587 = vmatpush1.bf16.msra.mxu0 %v2495
        %2588 = vmatprep.subr.bf16.mxu0 %v2500
        %2589 = vmatpush1.bf16.msra.mxu0 %v2499
        %2590 = vmatprep.subr.bf16.mxu0 0
        %2591 = vmatpush1.bf16.msra.mxu0 0
        %2592 = vmatprep.subr.bf16.mxu0 0
        %2593 = vmatpush1.bf16.msra.mxu0 0
        %2594 = vmatprep.subr.bf16.mxu0 0
        %2595 = vmatpush1.bf16.msra.mxu0 0
        %2596 = vmatprep.subr.bf16.mxu0 0
        %2597 = vmatpush1.bf16.msra.mxu0 0
        %2598 = vmatprep.subr.bf16.mxu0 0
        %2599 = vmatpush1.bf16.msra.mxu0 0
        %2600 = vmatprep.subr.bf16.mxu0 0
        %2601 = vmatpush1.bf16.msra.mxu0 0
        %2602 = vmatprep.subr.bf16.mxu0 0
        %2603 = vmatpush1.bf16.msra.mxu0 0
        %2604 = vmatprep.subr.bf16.mxu0 0
        %2605 = vmatpush1.bf16.msra.mxu0 0
        %2606 = vmatprep.mubr.bf16.mxu0 0
        %2607 = vmatmul.mubr.bf16.gmra.mrb[0].mxu0 %v2350
        %v2608 = vpop.f32.mrb[0].mxu0
        %v2609 = vadd.f32 %v2364, %v2608
        %v2610 = vpop.f32.mrb[0].mxu0
        %v2611 = vadd.f32 %v2368, %v2610
        %v2612 = vpop.f32.mrb[0].mxu0
        %v2613 = vpop.f32.mrb[0].mxu0
        %2614 = vdwg.mxu0
        %v2615 = vmax.f32 %v2568, 0.0
        %v2616 = vmax.f32 %v2570, 0.0
        %v2617 = vmax.f32 %v2609, 0.0
        %v2618 = vmax.f32 %v2611, 0.0
        %v2619 = vld [vmem:[#allocation10] sm:$0xf]
        %v2620 = vld [vmem:[#allocation10 + $0x4] sm:$0xf]
        %v2621 = vld [vmem:[#allocation10 + $0x8] sm:$0xf]
        %v2622 = vld [vmem:[#allocation10 + $0xc] sm:$0xf]
        %v2623 = vld [vmem:[#allocation10 + $0x10] sm:$0xf]
        %v2624 = vld [vmem:[#allocation10 + $0x14] sm:$0xf]
        %v2625 = vld [vmem:[#allocation10 + $0x18] sm:$0xf]
        %v2626 = vld [vmem:[#allocation10 + $0x1c] sm:$0xf]
        %v2627 = vld [vmem:[#allocation10 + $0x20] sm:$0xf]
        %v2628 = vld [vmem:[#allocation10 + $0x24] sm:$0xf]
        %v2629 = vld [vmem:[#allocation10 + $0x28] sm:$0xf]
        %v2630 = vld [vmem:[#allocation10 + $0x2c] sm:$0xf]
        %v2631 = vld [vmem:[#allocation10 + $0x30] sm:$0xf]
        %v2632 = vld [vmem:[#allocation10 + $0x34] sm:$0xf]
        %v2633 = vld [vmem:[#allocation10 + $0x38] sm:$0xf]
        %v2634 = vld [vmem:[#allocation10 + $0x3c] sm:$0xf]
        %v2635 = vld [vmem:[#allocation10 + $0x40] sm:$0xf]
        %v2636 = vld [vmem:[#allocation10 + $0x44] sm:$0xf]
        %v2637 = vld [vmem:[#allocation10 + $0x48] sm:$0xf]
        %v2638 = vld [vmem:[#allocation10 + $0x4c] sm:$0xf]
        %v2639 = vld [vmem:[#allocation10 + $0x50] sm:$0xf]
        %v2640 = vld [vmem:[#allocation10 + $0x54] sm:$0xf]
        %v2641 = vld [vmem:[#allocation10 + $0x58] sm:$0xf]
        %v2642 = vld [vmem:[#allocation10 + $0x5c] sm:$0xf]
        %v2643 = vld [vmem:[#allocation10 + $0x60] sm:$0xf]
        %v2644 = vld [vmem:[#allocation10 + $0x64] sm:$0xf]
        %v2645 = vld [vmem:[#allocation10 + $0x68] sm:$0xf]
        %v2646 = vld [vmem:[#allocation10 + $0x6c] sm:$0xf]
        %v2647 = vld [vmem:[#allocation10 + $0x70] sm:$0xf]
        %v2648 = vld [vmem:[#allocation10 + $0x74] sm:$0xf]
        %v2649 = vld [vmem:[#allocation10 + $0x78] sm:$0xf]
        %v2650 = vld [vmem:[#allocation10 + $0x7c] sm:$0xf]
        %v2651 = vld [vmem:[#allocation10 + $0x80] sm:$0xf]
        %v2652 = vld [vmem:[#allocation10 + $0x84] sm:$0xf]
        %v2653 = vld [vmem:[#allocation10 + $0x88] sm:$0xf]
        %v2654 = vld [vmem:[#allocation10 + $0x8c] sm:$0xf]
        %v2655 = vld [vmem:[#allocation10 + $0x90] sm:$0xf]
        %v2656 = vld [vmem:[#allocation10 + $0x94] sm:$0xf]
        %v2657 = vld [vmem:[#allocation10 + $0x98] sm:$0xf]
        %v2658 = vld [vmem:[#allocation10 + $0x9c] sm:$0xf]
        %v2659 = vld [vmem:[#allocation10 + $0xa0] sm:$0xf]
        %v2660 = vld [vmem:[#allocation10 + $0xa4] sm:$0xf]
        %v2661 = vld [vmem:[#allocation10 + $0xa8] sm:$0xf]
        %v2662 = vld [vmem:[#allocation10 + $0xac] sm:$0xf]
        %v2663 = vld [vmem:[#allocation10 + $0xb0] sm:$0xf]
        %v2664 = vld [vmem:[#allocation10 + $0xb4] sm:$0xf]
        %v2665 = vld [vmem:[#allocation10 + $0xb8] sm:$0xf]
        %v2666 = vld [vmem:[#allocation10 + $0xbc] sm:$0xf]
        %v2667 = vld [vmem:[#allocation10 + $0xc0] sm:$0xf]
        %v2668 = vld [vmem:[#allocation10 + $0xc4] sm:$0xf]
        %v2669 = vld [vmem:[#allocation10 + $0xc8] sm:$0xf]
        %v2670 = vld [vmem:[#allocation10 + $0xcc] sm:$0xf]
        %v2671 = vld [vmem:[#allocation10 + $0xd0] sm:$0xf]
        %v2672 = vld [vmem:[#allocation10 + $0xd4] sm:$0xf]
        %v2673 = vld [vmem:[#allocation10 + $0xd8] sm:$0xf]
        %v2674 = vld [vmem:[#allocation10 + $0xdc] sm:$0xf]
        %v2675 = vld [vmem:[#allocation10 + $0xe0] sm:$0xf]
        %v2676 = vld [vmem:[#allocation10 + $0xe4] sm:$0xf]
        %v2677 = vld [vmem:[#allocation10 + $0xe8] sm:$0xf]
        %v2678 = vld [vmem:[#allocation10 + $0xec] sm:$0xf]
        %v2679 = vld [vmem:[#allocation10 + $0xf0] sm:$0xf]
        %v2680 = vld [vmem:[#allocation10 + $0xf4] sm:$0xf]
        %v2681 = vld [vmem:[#allocation10 + $0xf8] sm:$0xf]
        %v2682 = vld [vmem:[#allocation10 + $0xfc] sm:$0xf]
        %v2683 = vpack.c.bf16 %v2615, %v2615
        %v2684 = vpack.c.bf16 %v2616, %v2616
        %v2685 = vpack.c.bf16 %v2617, %v2617
        %v2686 = vpack.c.bf16 %v2618, %v2618
        %v2751 = vunpack.c.l.b16 %v2619
        %v2752 = vunpack.c.l.b16 %v2620
        %v2753 = vunpack.c.l.b16 %v2621
        %v2754 = vunpack.c.l.b16 %v2622
        %v2755 = vunpack.c.l.b16 %v2623
        %v2756 = vunpack.c.l.b16 %v2624
        %v2757 = vunpack.c.l.b16 %v2625
        %v2758 = vunpack.c.l.b16 %v2626
        %v2759 = vunpack.c.l.b16 %v2627
        %v2760 = vunpack.c.l.b16 %v2628
        %v2761 = vunpack.c.l.b16 %v2629
        %v2762 = vunpack.c.l.b16 %v2630
        %v2763 = vunpack.c.l.b16 %v2631
        %v2764 = vunpack.c.l.b16 %v2632
        %v2765 = vunpack.c.l.b16 %v2633
        %v2766 = vunpack.c.l.b16 %v2634
        %v2767 = vunpack.c.l.b16 %v2635
        %v2768 = vunpack.c.l.b16 %v2636
        %v2769 = vunpack.c.l.b16 %v2637
        %v2770 = vunpack.c.l.b16 %v2638
        %v2771 = vunpack.c.l.b16 %v2639
        %v2772 = vunpack.c.l.b16 %v2640
        %v2773 = vunpack.c.l.b16 %v2641
        %v2774 = vunpack.c.l.b16 %v2642
        %v2775 = vunpack.c.l.b16 %v2643
        %v2776 = vunpack.c.l.b16 %v2644
        %v2777 = vunpack.c.l.b16 %v2645
        %v2778 = vunpack.c.l.b16 %v2646
        %v2779 = vunpack.c.l.b16 %v2647
        %v2780 = vunpack.c.l.b16 %v2648
        %v2781 = vunpack.c.l.b16 %v2649
        %v2782 = vunpack.c.l.b16 %v2650
        %v2783 = vunpack.c.l.b16 %v2651
        %v2784 = vunpack.c.l.b16 %v2652
        %v2785 = vunpack.c.l.b16 %v2653
        %v2786 = vunpack.c.l.b16 %v2654
        %v2787 = vunpack.c.l.b16 %v2655
        %v2788 = vunpack.c.l.b16 %v2656
        %v2789 = vunpack.c.l.b16 %v2657
        %v2790 = vunpack.c.l.b16 %v2658
        %v2791 = vunpack.c.l.b16 %v2659
        %v2792 = vunpack.c.l.b16 %v2660
        %v2793 = vunpack.c.l.b16 %v2661
        %v2794 = vunpack.c.l.b16 %v2662
        %v2795 = vunpack.c.l.b16 %v2663
        %v2796 = vunpack.c.l.b16 %v2664
        %v2797 = vunpack.c.l.b16 %v2665
        %v2798 = vunpack.c.l.b16 %v2666
        %v2799 = vunpack.c.l.b16 %v2667
        %v2800 = vunpack.c.l.b16 %v2668
        %v2801 = vunpack.c.l.b16 %v2669
        %v2802 = vunpack.c.l.b16 %v2670
        %v2803 = vunpack.c.l.b16 %v2671
        %v2804 = vunpack.c.l.b16 %v2672
        %v2805 = vunpack.c.l.b16 %v2673
        %v2806 = vunpack.c.l.b16 %v2674
        %v2807 = vunpack.c.l.b16 %v2675
        %v2808 = vunpack.c.l.b16 %v2676
        %v2809 = vunpack.c.l.b16 %v2677
        %v2810 = vunpack.c.l.b16 %v2678
        %v2811 = vunpack.c.l.b16 %v2679
        %v2812 = vunpack.c.l.b16 %v2680
        %v2813 = vunpack.c.l.b16 %v2681
        %v2814 = vunpack.c.l.b16 %v2682
        %v2815 = vpack.c.b16 %v2752, %v2751
        %v2816 = vpack.c.b16 %v2754, %v2753
        %v2817 = vpack.c.b16 %v2756, %v2755
        %v2818 = vpack.c.b16 %v2758, %v2757
        %v2819 = vpack.c.b16 %v2760, %v2759
        %v2820 = vpack.c.b16 %v2762, %v2761
        %v2821 = vpack.c.b16 %v2764, %v2763
        %v2822 = vpack.c.b16 %v2766, %v2765
        %v2823 = vpack.c.b16 %v2768, %v2767
        %v2824 = vpack.c.b16 %v2770, %v2769
        %v2825 = vpack.c.b16 %v2772, %v2771
        %v2826 = vpack.c.b16 %v2774, %v2773
        %v2827 = vpack.c.b16 %v2776, %v2775
        %v2828 = vpack.c.b16 %v2778, %v2777
        %v2829 = vpack.c.b16 %v2780, %v2779
        %v2830 = vpack.c.b16 %v2782, %v2781
        %v2831 = vpack.c.b16 %v2784, %v2783
        %v2832 = vpack.c.b16 %v2786, %v2785
        %v2833 = vpack.c.b16 %v2788, %v2787
        %v2834 = vpack.c.b16 %v2790, %v2789
        %v2835 = vpack.c.b16 %v2792, %v2791
        %v2836 = vpack.c.b16 %v2794, %v2793
        %v2837 = vpack.c.b16 %v2796, %v2795
        %v2838 = vpack.c.b16 %v2798, %v2797
        %v2839 = vpack.c.b16 %v2800, %v2799
        %v2840 = vpack.c.b16 %v2802, %v2801
        %v2841 = vpack.c.b16 %v2804, %v2803
        %v2842 = vpack.c.b16 %v2806, %v2805
        %v2843 = vpack.c.b16 %v2808, %v2807
        %v2844 = vpack.c.b16 %v2810, %v2809
        %v2845 = vpack.c.b16 %v2812, %v2811
        %v2846 = vpack.c.b16 %v2814, %v2813
        %2879 = vmatprep.subr.bf16.mxu0 0
        %2880 = vmatpush1.bf16.msra.mxu0 %v2815
        %2881 = vmatprep.subr.bf16.mxu0 0
        %2882 = vmatpush1.bf16.msra.mxu0 %v2816
        %2883 = vmatprep.subr.bf16.mxu0 0
        %2884 = vmatpush1.bf16.msra.mxu0 %v2817
        %2885 = vmatprep.subr.bf16.mxu0 0
        %2886 = vmatpush1.bf16.msra.mxu0 %v2818
        %2887 = vmatprep.subr.bf16.mxu0 0
        %2888 = vmatpush1.bf16.msra.mxu0 %v2819
        %2889 = vmatprep.subr.bf16.mxu0 0
        %2890 = vmatpush1.bf16.msra.mxu0 %v2820
        %2891 = vmatprep.subr.bf16.mxu0 0
        %2892 = vmatpush1.bf16.msra.mxu0 %v2821
        %2893 = vmatprep.subr.bf16.mxu0 0
        %2894 = vmatpush1.bf16.msra.mxu0 %v2822
        %2895 = vmatprep.subr.bf16.mxu0 0
        %2896 = vmatpush1.bf16.msra.mxu0 %v2823
        %2897 = vmatprep.subr.bf16.mxu0 0
        %2898 = vmatpush1.bf16.msra.mxu0 %v2824
        %2899 = vmatprep.subr.bf16.mxu0 0
        %2900 = vmatpush1.bf16.msra.mxu0 %v2825
        %2901 = vmatprep.subr.bf16.mxu0 0
        %2902 = vmatpush1.bf16.msra.mxu0 %v2826
        %2903 = vmatprep.subr.bf16.mxu0 0
        %2904 = vmatpush1.bf16.msra.mxu0 %v2827
        %2905 = vmatprep.subr.bf16.mxu0 0
        %2906 = vmatpush1.bf16.msra.mxu0 %v2828
        %2907 = vmatprep.subr.bf16.mxu0 0
        %2908 = vmatpush1.bf16.msra.mxu0 %v2829
        %2909 = vmatprep.subr.bf16.mxu0 0
        %2910 = vmatpush1.bf16.msra.mxu0 %v2830
        %2911 = vmatprep.mubr.bf16.mxu0 %v2684
        %2912 = vmatmul.mubr.bf16.gmra.mrb[0].mxu0 %v2683
        %v2913 = vpop.f32.mrb[0].mxu0
        %v2914 = vadd.f32 0.0, %v2913
        %v2915 = vpop.f32.mrb[0].mxu0
        %v2916 = vpop.f32.mrb[0].mxu0
        %v2917 = vpop.f32.mrb[0].mxu0
        %2918 = vdwg.mxu0
        %2919 = vmatprep.subr.bf16.mxu0 0
        %2920 = vmatpush1.bf16.msra.mxu0 %v2831
        %2921 = vmatprep.subr.bf16.mxu0 0
        %2922 = vmatpush1.bf16.msra.mxu0 %v2832
        %2923 = vmatprep.subr.bf16.mxu0 0
        %2924 = vmatpush1.bf16.msra.mxu0 %v2833
        %2925 = vmatprep.subr.bf16.mxu0 0
        %2926 = vmatpush1.bf16.msra.mxu0 %v2834
        %2927 = vmatprep.subr.bf16.mxu0 0
        %2928 = vmatpush1.bf16.msra.mxu0 %v2835
        %2929 = vmatprep.subr.bf16.mxu0 0
        %2930 = vmatpush1.bf16.msra.mxu0 %v2836
        %2931 = vmatprep.subr.bf16.mxu0 0
        %2932 = vmatpush1.bf16.msra.mxu0 %v2837
        %2933 = vmatprep.subr.bf16.mxu0 0
        %2934 = vmatpush1.bf16.msra.mxu0 %v2838
        %2935 = vmatprep.subr.bf16.mxu0 0
        %2936 = vmatpush1.bf16.msra.mxu0 %v2839
        %2937 = vmatprep.subr.bf16.mxu0 0
        %2938 = vmatpush1.bf16.msra.mxu0 %v2840
        %2939 = vmatprep.subr.bf16.mxu0 0
        %2940 = vmatpush1.bf16.msra.mxu0 %v2841
        %2941 = vmatprep.subr.bf16.mxu0 0
        %2942 = vmatpush1.bf16.msra.mxu0 %v2842
        %2943 = vmatprep.subr.bf16.mxu0 0
        %2944 = vmatpush1.bf16.msra.mxu0 %v2843
        %2945 = vmatprep.subr.bf16.mxu0 0
        %2946 = vmatpush1.bf16.msra.mxu0 %v2844
        %2947 = vmatprep.subr.bf16.mxu0 0
        %2948 = vmatpush1.bf16.msra.mxu0 %v2845
        %2949 = vmatprep.subr.bf16.mxu0 0
        %2950 = vmatpush1.bf16.msra.mxu0 %v2846
        %2951 = vmatprep.mubr.bf16.mxu0 %v2686
        %2952 = vmatmul.mubr.bf16.gmra.mrb[0].mxu0 %v2685
        %v2953 = vpop.f32.mrb[0].mxu0
        %v2954 = vadd.f32 %v2914, %v2953
        %v2955 = vpop.f32.mrb[0].mxu0
        %v2956 = vpop.f32.mrb[0].mxu0
        %v2957 = vpop.f32.mrb[0].mxu0
        %2958 = vdwg.mxu0
        %v2959 = vadd.f32 %v2290, %v2954
        %v2960 = vld [vmem:[#allocation11] sm:$0x1]
        %v2962 = vlaneseq
        %v2963 = vshrl.u32 %v2962, 7
        %v2964 = vsub.s32 0, %v2963
        %v2965 = vrot.slane %v2960, %v2964
        %v2967 = vadd.f32 %v2959, %v2965
        %s2968 = scalar_lea.vmem %s3, 1
        %v2969 = vld [vmem:[%s2968] sm:$0x1]
        %s2970 = scalar_lea.vmem %s4, 1
        %v2971 = vld [vmem:[%s2970] sm:$0x1]
        %2972 = vadd.xlane.f32.xlu0 %v2967
        %v2973 = vpop.xlane.xlu0 %2972
        %v2974 = vmul.f32 %v2973, %v879
        %v2975 = vsub.f32 %v2967, %v2974
        %v2976 = vmul.f32 %v2975, %v2975
        %2977 = vadd.xlane.f32.xlu0 %v2976
        %v2978 = vpop.xlane.xlu0 %2977
        %v2979 = vmul.f32 %v2978, %v879
        %v2980 = vadd.f32 %v2979, 1e-05
        %v2981 = vrsqrt.pop %v2980
        %v2982 = vmul.f32 %v2975, %v2981
        %v2984 = vlaneseq
        %v2985 = vshrl.u32 %v2984, 7
        %v2986 = vsub.s32 0, %v2985
        %v2987 = vrot.slane %v2969, %v2986
        %v2989 = vmul.f32 %v2982, %v2987
        %v2991 = vlaneseq
        %v2992 = vshrl.u32 %v2991, 7
        %v2993 = vsub.s32 0, %v2992
        %v2994 = vrot.slane %v2971, %v2993
        %v2996 = vadd.f32 %v2989, %v2994
        %s2997 = scalar_lea.vmem [#allocation5], 192
        %v2998 = vld [vmem:[%s2997] sm:$0xff]
        %v2999 = vld [vmem:[%s2997 + $0x8] sm:$0xf]
        %v3000 = vld [vmem:[%s2997 + $0xc] sm:$0xff]
        %v3001 = vld [vmem:[%s2997 + $0x14] sm:$0xf]
        %v3002 = vld [vmem:[%s2997 + $0x18] sm:$0xff]
        %v3003 = vld [vmem:[%s2997 + $0x20] sm:$0xf]
        %v3004 = vld [vmem:[%s2997 + $0x24] sm:$0xff]
        %v3005 = vld [vmem:[%s2997 + $0x2c] sm:$0xf]
        %v3006 = vld [vmem:[%s2997 + $0x30] sm:$0xff]
        %v3007 = vld [vmem:[%s2997 + $0x38] sm:$0xf]
        %v3008 = vld [vmem:[%s2997 + $0x3c] sm:$0xff]
        %v3009 = vld [vmem:[%s2997 + $0x44] sm:$0xf]
        %v3010 = vld [vmem:[%s2997 + $0x48] sm:$0xff]
        %v3011 = vld [vmem:[%s2997 + $0x50] sm:$0xf]
        %v3012 = vld [vmem:[%s2997 + $0x54] sm:$0xff]
        %v3013 = vld [vmem:[%s2997 + $0x5c] sm:$0xf]
        %v3014 = vld [vmem:[%s2997 + $0x60] sm:$0xff]
        %v3015 = vld [vmem:[%s2997 + $0x68] sm:$0xf]
        %v3016 = vld [vmem:[%s2997 + $0x6c] sm:$0xff]
        %v3017 = vld [vmem:[%s2997 + $0x74] sm:$0xf]
        %v3018 = vld [vmem:[%s2997 + $0x78] sm:$0xff]
        %v3019 = vld [vmem:[%s2997 + $0x80] sm:$0xf]
        %v3020 = vld [vmem:[%s2997 + $0x84] sm:$0xff]
        %v3021 = vld [vmem:[%s2997 + $0x8c] sm:$0xf]
        %v3022 = vld [vmem:[%s2997 + $0x90] sm:$0xff]
        %v3023 = vld [vmem:[%s2997 + $0x98] sm:$0xf]
        %v3024 = vld [vmem:[%s2997 + $0x9c] sm:$0xff]
        %v3025 = vld [vmem:[%s2997 + $0xa4] sm:$0xf]
        %v3026 = vld [vmem:[%s2997 + $0xa8] sm:$0xff]
        %v3027 = vld [vmem:[%s2997 + $0xb0] sm:$0xf]
        %v3028 = vld [vmem:[%s2997 + $0xb4] sm:$0xff]
        %v3029 = vld [vmem:[%s2997 + $0xbc] sm:$0xf]
        %v3030 = vpack.c.bf16 %v2996, %v2996
        %v3063 = vunpack.c.l.b16 %v2998
        %v3064 = vunpack.c.h.b16 %v2998
        %v3065 = vunpack.c.l.b16 %v2999
        %v3066 = vunpack.c.l.b16 %v3000
        %v3067 = vunpack.c.h.b16 %v3000
        %v3068 = vunpack.c.l.b16 %v3001
        %v3069 = vunpack.c.l.b16 %v3002
        %v3070 = vunpack.c.h.b16 %v3002
        %v3071 = vunpack.c.l.b16 %v3003
        %v3072 = vunpack.c.l.b16 %v3004
        %v3073 = vunpack.c.h.b16 %v3004
        %v3074 = vunpack.c.l.b16 %v3005
        %v3075 = vunpack.c.l.b16 %v3006
        %v3076 = vunpack.c.h.b16 %v3006
        %v3077 = vunpack.c.l.b16 %v3007
        %v3078 = vunpack.c.l.b16 %v3008
        %v3079 = vunpack.c.h.b16 %v3008
        %v3080 = vunpack.c.l.b16 %v3009
        %v3081 = vunpack.c.l.b16 %v3010
        %v3082 = vunpack.c.h.b16 %v3010
        %v3083 = vunpack.c.l.b16 %v3011
        %v3084 = vunpack.c.l.b16 %v3012
        %v3085 = vunpack.c.h.b16 %v3012
        %v3086 = vunpack.c.l.b16 %v3013
        %v3087 = vunpack.c.l.b16 %v3014
        %v3088 = vunpack.c.h.b16 %v3014
        %v3089 = vunpack.c.l.b16 %v3015
        %v3090 = vunpack.c.l.b16 %v3016
        %v3091 = vunpack.c.h.b16 %v3016
        %v3092 = vunpack.c.l.b16 %v3017
        %v3093 = vunpack.c.l.b16 %v3018
        %v3094 = vunpack.c.h.b16 %v3018
        %v3095 = vunpack.c.l.b16 %v3019
        %v3096 = vunpack.c.l.b16 %v3020
        %v3097 = vunpack.c.h.b16 %v3020
        %v3098 = vunpack.c.l.b16 %v3021
        %v3099 = vunpack.c.l.b16 %v3022
        %v3100 = vunpack.c.h.b16 %v3022
        %v3101 = vunpack.c.l.b16 %v3023
        %v3102 = vunpack.c.l.b16 %v3024
        %v3103 = vunpack.c.h.b16 %v3024
        %v3104 = vunpack.c.l.b16 %v3025
        %v3105 = vunpack.c.l.b16 %v3026
        %v3106 = vunpack.c.h.b16 %v3026
        %v3107 = vunpack.c.l.b16 %v3027
        %v3108 = vunpack.c.l.b16 %v3028
        %v3109 = vunpack.c.h.b16 %v3028
        %v3110 = vunpack.c.l.b16 %v3029
        %v3111 = vpack.c.b16 %v3066, %v3063
        %v3112 = vpack.c.b16 %v3067, %v3064
        %v3113 = vpack.c.b16 %v3068, %v3065
        %v3114 = vpack.c.b16 %v3072, %v3069
        %v3115 = vpack.c.b16 %v3073, %v3070
        %v3116 = vpack.c.b16 %v3074, %v3071
        %v3117 = vpack.c.b16 %v3078, %v3075
        %v3118 = vpack.c.b16 %v3079, %v3076
        %v3119 = vpack.c.b16 %v3080, %v3077
        %v3120 = vpack.c.b16 %v3084, %v3081
        %v3121 = vpack.c.b16 %v3085, %v3082
        %v3122 = vpack.c.b16 %v3086, %v3083
        %v3123 = vpack.c.b16 %v3090, %v3087
        %v3124 = vpack.c.b16 %v3091, %v3088
        %v3125 = vpack.c.b16 %v3092, %v3089
        %v3126 = vpack.c.b16 %v3096, %v3093
        %v3127 = vpack.c.b16 %v3097, %v3094
        %v3128 = vpack.c.b16 %v3098, %v3095
        %v3129 = vpack.c.b16 %v3102, %v3099
        %v3130 = vpack.c.b16 %v3103, %v3100
        %v3131 = vpack.c.b16 %v3104, %v3101
        %v3132 = vpack.c.b16 %v3108, %v3105
        %v3133 = vpack.c.b16 %v3109, %v3106
        %v3134 = vpack.c.b16 %v3110, %v3107
        %3159 = vmatprep.subr.bf16.mxu0 %v3112
        %3160 = vmatpush1.bf16.msra.mxu0 %v3111
        %3161 = vmatprep.subr.bf16.mxu0 %v3115
        %3162 = vmatpush1.bf16.msra.mxu0 %v3114
        %3163 = vmatprep.subr.bf16.mxu0 %v3118
        %3164 = vmatpush1.bf16.msra.mxu0 %v3117
        %3165 = vmatprep.subr.bf16.mxu0 %v3121
        %3166 = vmatpush1.bf16.msra.mxu0 %v3120
        %3167 = vmatprep.subr.bf16.mxu0 %v3124
        %3168 = vmatpush1.bf16.msra.mxu0 %v3123
        %3169 = vmatprep.subr.bf16.mxu0 %v3127
        %3170 = vmatpush1.bf16.msra.mxu0 %v3126
        %3171 = vmatprep.subr.bf16.mxu0 %v3130
        %3172 = vmatpush1.bf16.msra.mxu0 %v3129
        %3173 = vmatprep.subr.bf16.mxu0 %v3133
        %3174 = vmatpush1.bf16.msra.mxu0 %v3132
        %3175 = vmatprep.subr.bf16.mxu0 0
        %3176 = vmatpush1.bf16.msra.mxu0 0
        %3177 = vmatprep.subr.bf16.mxu0 0
        %3178 = vmatpush1.bf16.msra.mxu0 0
        %3179 = vmatprep.subr.bf16.mxu0 0
        %3180 = vmatpush1.bf16.msra.mxu0 0
        %3181 = vmatprep.subr.bf16.mxu0 0
        %3182 = vmatpush1.bf16.msra.mxu0 0
        %3183 = vmatprep.subr.bf16.mxu0 0
        %3184 = vmatpush1.bf16.msra.mxu0 0
        %3185 = vmatprep.subr.bf16.mxu0 0
        %3186 = vmatpush1.bf16.msra.mxu0 0
        %3187 = vmatprep.subr.bf16.mxu0 0
        %3188 = vmatpush1.bf16.msra.mxu0 0
        %3189 = vmatprep.subr.bf16.mxu0 0
        %3190 = vmatpush1.bf16.msra.mxu0 0
        %3191 = vmatprep.mubr.bf16.mxu0 0
        %3192 = vmatmul.mubr.bf16.gmra.mrb[0].mxu0 %v3030
        %v3193 = vpop.f32.mrb[0].mxu0
        %v3194 = vadd.f32 0.0, %v3193
        %v3195 = vpop.f32.mrb[0].mxu0
        %v3196 = vadd.f32 0.0, %v3195
        %v3197 = vpop.f32.mrb[0].mxu0
        %v3198 = vpop.f32.mrb[0].mxu0
        %3199 = vdwg.mxu0
        %3200 = vmatprep.subr.bf16.mxu0 0
        %3201 = vmatpush1.bf16.msra.mxu0 %v3113
        %3202 = vmatprep.subr.bf16.mxu0 0
        %3203 = vmatpush1.bf16.msra.mxu0 %v3116
        %3204 = vmatprep.subr.bf16.mxu0 0
        %3205 = vmatpush1.bf16.msra.mxu0 %v3119
        %3206 = vmatprep.subr.bf16.mxu0 0
        %3207 = vmatpush1.bf16.msra.mxu0 %v3122
        %3208 = vmatprep.subr.bf16.mxu0 0
        %3209 = vmatpush1.bf16.msra.mxu0 %v3125
        %3210 = vmatprep.subr.bf16.mxu0 0
        %3211 = vmatpush1.bf16.msra.mxu0 %v3128
        %3212 = vmatprep.subr.bf16.mxu0 0
        %3213 = vmatpush1.bf16.msra.mxu0 %v3131
        %3214 = vmatprep.subr.bf16.mxu0 0
        %3215 = vmatpush1.bf16.msra.mxu0 %v3134
        %3216 = vmatprep.subr.bf16.mxu0 0
        %3217 = vmatpush1.bf16.msra.mxu0 0
        %3218 = vmatprep.subr.bf16.mxu0 0
        %3219 = vmatpush1.bf16.msra.mxu0 0
        %3220 = vmatprep.subr.bf16.mxu0 0
        %3221 = vmatpush1.bf16.msra.mxu0 0
        %3222 = vmatprep.subr.bf16.mxu0 0
        %3223 = vmatpush1.bf16.msra.mxu0 0
        %3224 = vmatprep.subr.bf16.mxu0 0
        %3225 = vmatpush1.bf16.msra.mxu0 0
        %3226 = vmatprep.subr.bf16.mxu0 0
        %3227 = vmatpush1.bf16.msra.mxu0 0
        %3228 = vmatprep.subr.bf16.mxu0 0
        %3229 = vmatpush1.bf16.msra.mxu0 0
        %3230 = vmatprep.subr.bf16.mxu0 0
        %3231 = vmatpush1.bf16.msra.mxu0 0
        %3232 = vmatprep.mubr.bf16.mxu0 0
        %3233 = vmatmul.mubr.bf16.gmra.mrb[0].mxu0 %v3030
        %v3234 = vpop.f32.mrb[0].mxu0
        %v3235 = vadd.f32 0.0, %v3234
        %v3236 = vpop.f32.mrb[0].mxu0
        %v3237 = vpop.f32.mrb[0].mxu0
        %v3238 = vpop.f32.mrb[0].mxu0
        %3239 = vdwg.mxu0
        %3241 = vrot.lane.b32.xlu0 %v3194, 96
        %v3242 = vpop.permute.xlu0 %3241
        %3244 = vrot.lane.b32.xlu0 %v3194, 64
        %v3245 = vpop.permute.xlu0 %3244
        %3247 = vrot.lane.b32.xlu0 %v3194, 32
        %v3248 = vpop.permute.xlu0 %3247
        %v3250 = vcombine.low %v3194, %v3245
        %v3251 = vcombine.high %v3194, %v3245
        %v3253 = vunpack.c.l.s4 1983009808
        %v3254 = vunpack.c.0.s8 %v3253
        %v3255 = vlaneseq
        %v3256 = vshrl.u32 %v3255, 7
        %v3257 = vsub.s32 %v3254, %v3256
        %v3258 = vrot.slane %v3250, %v3257
        %v3260 = vunpack.c.l.s4 1983009808
        %v3261 = vunpack.c.0.s8 %v3260
        %v3262 = vlaneseq
        %v3263 = vshrl.u32 %v3262, 7
        %v3264 = vsub.s32 %v3261, %v3263
        %v3265 = vrot.slane %v3251, %v3264
        %v3266 = vcombine.low %v3242, %v3248
        %v3267 = vcombine.high %v3242, %v3248
        %v3269 = vunpack.c.l.s4 1983009808
        %v3270 = vunpack.c.0.s8 %v3269
        %v3271 = vlaneseq
        %v3272 = vshrl.u32 %v3271, 7
        %v3273 = vsub.s32 %v3270, %v3272
        %v3274 = vrot.slane %v3266, %v3273
        %v3276 = vunpack.c.l.s4 1983009808
        %v3277 = vunpack.c.0.s8 %v3276
        %v3278 = vlaneseq
        %v3279 = vshrl.u32 %v3278, 7
        %v3280 = vsub.s32 %v3277, %v3279
        %v3281 = vrot.slane %v3267, %v3280
        %v3282 = vcombine.low %v3258, %v3274
        %v3283 = vcombine.high %v3258, %v3274
        %v3285 = vunpack.c.l.s4 1934713408
        %v3286 = vunpack.c.0.s8 %v3285
        %v3287 = vlaneseq
        %v3288 = vshrl.u32 %v3287, 7
        %v3289 = vsub.s32 %v3286, %v3288
        %v3290 = vrot.slane %v3282, %v3289
        %v3292 = vunpack.c.l.s4 1934713408
        %v3293 = vunpack.c.0.s8 %v3292
        %v3294 = vlaneseq
        %v3295 = vshrl.u32 %v3294, 7
        %v3296 = vsub.s32 %v3293, %v3295
        %v3297 = vrot.slane %v3283, %v3296
        %v3298 = vcombine.low %v3265, %v3281
        %v3299 = vcombine.high %v3265, %v3281
        %v3301 = vunpack.c.l.s4 1934713408
        %v3302 = vunpack.c.0.s8 %v3301
        %v3303 = vlaneseq
        %v3304 = vshrl.u32 %v3303, 7
        %v3305 = vsub.s32 %v3302, %v3304
        %v3306 = vrot.slane %v3298, %v3305
        %v3308 = vunpack.c.l.s4 1934713408
        %v3309 = vunpack.c.0.s8 %v3308
        %v3310 = vlaneseq
        %v3311 = vshrl.u32 %v3310, 7
        %v3312 = vsub.s32 %v3309, %v3311
        %v3313 = vrot.slane %v3299, %v3312
        %v3314 = vcombine.high %v3290, 0.0
        %v3315 = vcombine.high %v3297, 0.0
        %v3316 = vcombine.high %v3306, 0.0
        %v3317 = vcombine.high %v3313, 0.0
        %v3318 = vcombine.low %v3290, %v3297
        %v3320 = vunpack.c.l.s4 1983009808
        %v3321 = vunpack.c.0.s8 %v3320
        %v3322 = vlaneseq
        %v3323 = vshrl.u32 %v3322, 7
        %v3324 = vsub.s32 %v3321, %v3323
        %v3325 = vrot.slane %v3318, %v3324
        %v3326 = vcombine.low %v3314, %v3315
        %v3328 = vunpack.c.l.s4 1983009808
        %v3329 = vunpack.c.0.s8 %v3328
        %v3330 = vlaneseq
        %v3331 = vshrl.u32 %v3330, 7
        %v3332 = vsub.s32 %v3329, %v3331
        %v3333 = vrot.slane %v3326, %v3332
        %v3334 = vcombine.low %v3306, %v3313
        %v3336 = vunpack.c.l.s4 1983009808
        %v3337 = vunpack.c.0.s8 %v3336
        %v3338 = vlaneseq
        %v3339 = vshrl.u32 %v3338, 7
        %v3340 = vsub.s32 %v3337, %v3339
        %v3341 = vrot.slane %v3334, %v3340
        %v3342 = vcombine.low %v3316, %v3317
        %v3344 = vunpack.c.l.s4 1983009808
        %v3345 = vunpack.c.0.s8 %v3344
        %v3346 = vlaneseq
        %v3347 = vshrl.u32 %v3346, 7
        %v3348 = vsub.s32 %v3345, %v3347
        %v3349 = vrot.slane %v3342, %v3348
        %v3350 = vcombine.low %v3325, %v3333
        %v3351 = vcombine.high %v3325, %v3333
        %v3353 = vunpack.c.l.s4 1934713408
        %v3354 = vunpack.c.0.s8 %v3353
        %v3355 = vlaneseq
        %v3356 = vshrl.u32 %v3355, 7
        %v3357 = vsub.s32 %v3354, %v3356
        %v3358 = vrot.slane %v3350, %v3357
        %v3360 = vunpack.c.l.s4 1934713408
        %v3361 = vunpack.c.0.s8 %v3360
        %v3362 = vlaneseq
        %v3363 = vshrl.u32 %v3362, 7
        %v3364 = vsub.s32 %v3361, %v3363
        %v3365 = vrot.slane %v3351, %v3364
        %v3366 = vcombine.low %v3341, %v3349
        %v3367 = vcombine.high %v3341, %v3349
        %v3369 = vunpack.c.l.s4 1934713408
        %v3370 = vunpack.c.0.s8 %v3369
        %v3371 = vlaneseq
        %v3372 = vshrl.u32 %v3371, 7
        %v3373 = vsub.s32 %v3370, %v3372
        %v3374 = vrot.slane %v3366, %v3373
        %v3376 = vunpack.c.l.s4 1934713408
        %v3377 = vunpack.c.0.s8 %v3376
        %v3378 = vlaneseq
        %v3379 = vshrl.u32 %v3378, 7
        %v3380 = vsub.s32 %v3377, %v3379
        %v3381 = vrot.slane %v3367, %v3380
        %v3382 = vcombine.low %v3358, %v3374
        %v3383 = vcombine.high %v3358, %v3374
        %v3384 = vcombine.low %v3365, %v3381
        %v3385 = vcombine.high %v3365, %v3381
        %v3386 = vpack.c.bf16 %v3382, %v3382
        %v3387 = vpack.c.bf16 %v3383, %v3383
        %v3388 = vpack.c.bf16 %v3384, %v3384
        %v3389 = vpack.c.bf16 %v3385, %v3385
        %3391 = vrot.lane.b32.xlu0 %v3196, 96
        %v3392 = vpop.permute.xlu0 %3391
        %3394 = vrot.lane.b32.xlu0 %v3196, 64
        %v3395 = vpop.permute.xlu0 %3394
        %3397 = vrot.lane.b32.xlu0 %v3196, 32
        %v3398 = vpop.permute.xlu0 %3397
        %v3400 = vcombine.low %v3196, %v3395
        %v3401 = vcombine.high %v3196, %v3395
        %v3403 = vunpack.c.l.s4 1983009808
        %v3404 = vunpack.c.0.s8 %v3403
        %v3405 = vlaneseq
        %v3406 = vshrl.u32 %v3405, 7
        %v3407 = vsub.s32 %v3404, %v3406
        %v3408 = vrot.slane %v3400, %v3407
        %v3410 = vunpack.c.l.s4 1983009808
        %v3411 = vunpack.c.0.s8 %v3410
        %v3412 = vlaneseq
        %v3413 = vshrl.u32 %v3412, 7
        %v3414 = vsub.s32 %v3411, %v3413
        %v3415 = vrot.slane %v3401, %v3414
        %v3416 = vcombine.low %v3392, %v3398
        %v3417 = vcombine.high %v3392, %v3398
        %v3419 = vunpack.c.l.s4 1983009808
        %v3420 = vunpack.c.0.s8 %v3419
        %v3421 = vlaneseq
        %v3422 = vshrl.u32 %v3421, 7
        %v3423 = vsub.s32 %v3420, %v3422
        %v3424 = vrot.slane %v3416, %v3423
        %v3426 = vunpack.c.l.s4 1983009808
        %v3427 = vunpack.c.0.s8 %v3426
        %v3428 = vlaneseq
        %v3429 = vshrl.u32 %v3428, 7
        %v3430 = vsub.s32 %v3427, %v3429
        %v3431 = vrot.slane %v3417, %v3430
        %v3432 = vcombine.low %v3408, %v3424
        %v3433 = vcombine.high %v3408, %v3424
        %v3435 = vunpack.c.l.s4 1934713408
        %v3436 = vunpack.c.0.s8 %v3435
        %v3437 = vlaneseq
        %v3438 = vshrl.u32 %v3437, 7
        %v3439 = vsub.s32 %v3436, %v3438
        %v3440 = vrot.slane %v3432, %v3439
        %v3442 = vunpack.c.l.s4 1934713408
        %v3443 = vunpack.c.0.s8 %v3442
        %v3444 = vlaneseq
        %v3445 = vshrl.u32 %v3444, 7
        %v3446 = vsub.s32 %v3443, %v3445
        %v3447 = vrot.slane %v3433, %v3446
        %v3448 = vcombine.low %v3415, %v3431
        %v3449 = vcombine.high %v3415, %v3431
        %v3451 = vunpack.c.l.s4 1934713408
        %v3452 = vunpack.c.0.s8 %v3451
        %v3453 = vlaneseq
        %v3454 = vshrl.u32 %v3453, 7
        %v3455 = vsub.s32 %v3452, %v3454
        %v3456 = vrot.slane %v3448, %v3455
        %v3458 = vunpack.c.l.s4 1934713408
        %v3459 = vunpack.c.0.s8 %v3458
        %v3460 = vlaneseq
        %v3461 = vshrl.u32 %v3460, 7
        %v3462 = vsub.s32 %v3459, %v3461
        %v3463 = vrot.slane %v3449, %v3462
        %v3464 = vcombine.high %v3440, 0.0
        %v3465 = vcombine.high %v3447, 0.0
        %v3466 = vcombine.high %v3456, 0.0
        %v3467 = vcombine.high %v3463, 0.0
        %v3468 = vcombine.low %v3440, %v3447
        %v3470 = vunpack.c.l.s4 1983009808
        %v3471 = vunpack.c.0.s8 %v3470
        %v3472 = vlaneseq
        %v3473 = vshrl.u32 %v3472, 7
        %v3474 = vsub.s32 %v3471, %v3473
        %v3475 = vrot.slane %v3468, %v3474
        %v3476 = vcombine.low %v3464, %v3465
        %v3478 = vunpack.c.l.s4 1983009808
        %v3479 = vunpack.c.0.s8 %v3478
        %v3480 = vlaneseq
        %v3481 = vshrl.u32 %v3480, 7
        %v3482 = vsub.s32 %v3479, %v3481
        %v3483 = vrot.slane %v3476, %v3482
        %v3484 = vcombine.low %v3456, %v3463
        %v3486 = vunpack.c.l.s4 1983009808
        %v3487 = vunpack.c.0.s8 %v3486
        %v3488 = vlaneseq
        %v3489 = vshrl.u32 %v3488, 7
        %v3490 = vsub.s32 %v3487, %v3489
        %v3491 = vrot.slane %v3484, %v3490
        %v3492 = vcombine.low %v3466, %v3467
        %v3494 = vunpack.c.l.s4 1983009808
        %v3495 = vunpack.c.0.s8 %v3494
        %v3496 = vlaneseq
        %v3497 = vshrl.u32 %v3496, 7
        %v3498 = vsub.s32 %v3495, %v3497
        %v3499 = vrot.slane %v3492, %v3498
        %v3500 = vcombine.low %v3475, %v3483
        %v3501 = vcombine.high %v3475, %v3483
        %v3503 = vunpack.c.l.s4 1934713408
        %v3504 = vunpack.c.0.s8 %v3503
        %v3505 = vlaneseq
        %v3506 = vshrl.u32 %v3505, 7
        %v3507 = vsub.s32 %v3504, %v3506
        %v3508 = vrot.slane %v3500, %v3507
        %v3510 = vunpack.c.l.s4 1934713408
        %v3511 = vunpack.c.0.s8 %v3510
        %v3512 = vlaneseq
        %v3513 = vshrl.u32 %v3512, 7
        %v3514 = vsub.s32 %v3511, %v3513
        %v3515 = vrot.slane %v3501, %v3514
        %v3516 = vcombine.low %v3491, %v3499
        %v3517 = vcombine.high %v3491, %v3499
        %v3519 = vunpack.c.l.s4 1934713408
        %v3520 = vunpack.c.0.s8 %v3519
        %v3521 = vlaneseq
        %v3522 = vshrl.u32 %v3521, 7
        %v3523 = vsub.s32 %v3520, %v3522
        %v3524 = vrot.slane %v3516, %v3523
        %v3526 = vunpack.c.l.s4 1934713408
        %v3527 = vunpack.c.0.s8 %v3526
        %v3528 = vlaneseq
        %v3529 = vshrl.u32 %v3528, 7
        %v3530 = vsub.s32 %v3527, %v3529
        %v3531 = vrot.slane %v3517, %v3530
        %v3532 = vcombine.low %v3508, %v3524
        %v3533 = vcombine.high %v3508, %v3524
        %v3534 = vcombine.low %v3515, %v3531
        %v3535 = vcombine.high %v3515, %v3531
        %v3536 = vpack.c.bf16 %v3532, %v3532
        %v3537 = vpack.c.bf16 %v3533, %v3533
        %v3538 = vpack.c.bf16 %v3534, %v3534
        %v3539 = vpack.c.bf16 %v3535, %v3535
        %3541 = vrot.lane.b32.xlu0 %v3235, 96
        %v3542 = vpop.permute.xlu0 %3541
        %3544 = vrot.lane.b32.xlu0 %v3235, 64
        %v3545 = vpop.permute.xlu0 %3544
        %3547 = vrot.lane.b32.xlu0 %v3235, 32
        %v3548 = vpop.permute.xlu0 %3547
        %v3550 = vcombine.low %v3235, %v3545
        %v3551 = vcombine.high %v3235, %v3545
        %v3553 = vunpack.c.l.s4 1983009808
        %v3554 = vunpack.c.0.s8 %v3553
        %v3555 = vlaneseq
        %v3556 = vshrl.u32 %v3555, 7
        %v3557 = vsub.s32 %v3554, %v3556
        %v3558 = vrot.slane %v3550, %v3557
        %v3560 = vunpack.c.l.s4 1983009808
        %v3561 = vunpack.c.0.s8 %v3560
        %v3562 = vlaneseq
        %v3563 = vshrl.u32 %v3562, 7
        %v3564 = vsub.s32 %v3561, %v3563
        %v3565 = vrot.slane %v3551, %v3564
        %v3566 = vcombine.low %v3542, %v3548
        %v3567 = vcombine.high %v3542, %v3548
        %v3569 = vunpack.c.l.s4 1983009808
        %v3570 = vunpack.c.0.s8 %v3569
        %v3571 = vlaneseq
        %v3572 = vshrl.u32 %v3571, 7
        %v3573 = vsub.s32 %v3570, %v3572
        %v3574 = vrot.slane %v3566, %v3573
        %v3576 = vunpack.c.l.s4 1983009808
        %v3577 = vunpack.c.0.s8 %v3576
        %v3578 = vlaneseq
        %v3579 = vshrl.u32 %v3578, 7
        %v3580 = vsub.s32 %v3577, %v3579
        %v3581 = vrot.slane %v3567, %v3580
        %v3582 = vcombine.low %v3558, %v3574
        %v3583 = vcombine.high %v3558, %v3574
        %v3585 = vunpack.c.l.s4 1934713408
        %v3586 = vunpack.c.0.s8 %v3585
        %v3587 = vlaneseq
        %v3588 = vshrl.u32 %v3587, 7
        %v3589 = vsub.s32 %v3586, %v3588
        %v3590 = vrot.slane %v3582, %v3589
        %v3592 = vunpack.c.l.s4 1934713408
        %v3593 = vunpack.c.0.s8 %v3592
        %v3594 = vlaneseq
        %v3595 = vshrl.u32 %v3594, 7
        %v3596 = vsub.s32 %v3593, %v3595
        %v3597 = vrot.slane %v3583, %v3596
        %v3598 = vcombine.low %v3565, %v3581
        %v3599 = vcombine.high %v3565, %v3581
        %v3601 = vunpack.c.l.s4 1934713408
        %v3602 = vunpack.c.0.s8 %v3601
        %v3603 = vlaneseq
        %v3604 = vshrl.u32 %v3603, 7
        %v3605 = vsub.s32 %v3602, %v3604
        %v3606 = vrot.slane %v3598, %v3605
        %v3608 = vunpack.c.l.s4 1934713408
        %v3609 = vunpack.c.0.s8 %v3608
        %v3610 = vlaneseq
        %v3611 = vshrl.u32 %v3610, 7
        %v3612 = vsub.s32 %v3609, %v3611
        %v3613 = vrot.slane %v3599, %v3612
        %v3614 = vcombine.high %v3590, 0.0
        %v3615 = vcombine.high %v3597, 0.0
        %v3616 = vcombine.high %v3606, 0.0
        %v3617 = vcombine.high %v3613, 0.0
        %v3618 = vcombine.low %v3590, %v3597
        %v3620 = vunpack.c.l.s4 1983009808
        %v3621 = vunpack.c.0.s8 %v3620
        %v3622 = vlaneseq
        %v3623 = vshrl.u32 %v3622, 7
        %v3624 = vsub.s32 %v3621, %v3623
        %v3625 = vrot.slane %v3618, %v3624
        %v3626 = vcombine.low %v3614, %v3615
        %v3628 = vunpack.c.l.s4 1983009808
        %v3629 = vunpack.c.0.s8 %v3628
        %v3630 = vlaneseq
        %v3631 = vshrl.u32 %v3630, 7
        %v3632 = vsub.s32 %v3629, %v3631
        %v3633 = vrot.slane %v3626, %v3632
        %v3634 = vcombine.low %v3606, %v3613
        %v3636 = vunpack.c.l.s4 1983009808
        %v3637 = vunpack.c.0.s8 %v3636
        %v3638 = vlaneseq
        %v3639 = vshrl.u32 %v3638, 7
        %v3640 = vsub.s32 %v3637, %v3639
        %v3641 = vrot.slane %v3634, %v3640
        %v3642 = vcombine.low %v3616, %v3617
        %v3644 = vunpack.c.l.s4 1983009808
        %v3645 = vunpack.c.0.s8 %v3644
        %v3646 = vlaneseq
        %v3647 = vshrl.u32 %v3646, 7
        %v3648 = vsub.s32 %v3645, %v3647
        %v3649 = vrot.slane %v3642, %v3648
        %v3650 = vcombine.low %v3625, %v3633
        %v3651 = vcombine.high %v3625, %v3633
        %v3653 = vunpack.c.l.s4 1934713408
        %v3654 = vunpack.c.0.s8 %v3653
        %v3655 = vlaneseq
        %v3656 = vshrl.u32 %v3655, 7
        %v3657 = vsub.s32 %v3654, %v3656
        %v3658 = vrot.slane %v3650, %v3657
        %v3660 = vunpack.c.l.s4 1934713408
        %v3661 = vunpack.c.0.s8 %v3660
        %v3662 = vlaneseq
        %v3663 = vshrl.u32 %v3662, 7
        %v3664 = vsub.s32 %v3661, %v3663
        %v3665 = vrot.slane %v3651, %v3664
        %v3666 = vcombine.low %v3641, %v3649
        %v3667 = vcombine.high %v3641, %v3649
        %v3669 = vunpack.c.l.s4 1934713408
        %v3670 = vunpack.c.0.s8 %v3669
        %v3671 = vlaneseq
        %v3672 = vshrl.u32 %v3671, 7
        %v3673 = vsub.s32 %v3670, %v3672
        %v3674 = vrot.slane %v3666, %v3673
        %v3676 = vunpack.c.l.s4 1934713408
        %v3677 = vunpack.c.0.s8 %v3676
        %v3678 = vlaneseq
        %v3679 = vshrl.u32 %v3678, 7
        %v3680 = vsub.s32 %v3677, %v3679
        %v3681 = vrot.slane %v3667, %v3680
        %v3682 = vcombine.low %v3658, %v3674
        %v3683 = vcombine.high %v3658, %v3674
        %v3684 = vcombine.low %v3665, %v3681
        %v3685 = vcombine.high %v3665, %v3681
        %v3686 = vpack.c.bf16 %v3682, %v3682
        %v3687 = vpack.c.bf16 %v3683, %v3683
        %v3688 = vpack.c.bf16 %v3684, %v3684
        %v3689 = vpack.c.bf16 %v3685, %v3685
        %v3691 = vsel %vm1595, %v3386, 0
        %v3694 = vsel %vm1595, %v3536, 0
        %3696 = vmatprep.subr.bf16.mxu0 0
        %3697 = vmatpush1.bf16.xpose.msra.mxu0 %v3694
        %3698 = vmatprep.subr.bf16.mxu0 0
        %3699 = vmatpush1.bf16.xpose.msra.mxu0 0
        %3700 = vmatprep.subr.bf16.mxu0 0
        %3701 = vmatpush1.bf16.xpose.msra.mxu0 0
        %3702 = vmatprep.subr.bf16.mxu0 0
        %3703 = vmatpush1.bf16.xpose.msra.mxu0 0
        %3704 = vmatprep.subr.bf16.mxu0 0
        %3705 = vmatpush1.bf16.xpose.msra.mxu0 0
        %3706 = vmatprep.subr.bf16.mxu0 0
        %3707 = vmatpush1.bf16.xpose.msra.mxu0 0
        %3708 = vmatprep.subr.bf16.mxu0 0
        %3709 = vmatpush1.bf16.xpose.msra.mxu0 0
        %3710 = vmatprep.subr.bf16.mxu0 0
        %3711 = vmatpush1.bf16.xpose.msra.mxu0 0
        %3712 = vmatprep.subr.bf16.mxu0 0
        %3713 = vmatpush1.bf16.xpose.msra.mxu0 0
        %3714 = vmatprep.subr.bf16.mxu0 0
        %3715 = vmatpush1.bf16.xpose.msra.mxu0 0
        %3716 = vmatprep.subr.bf16.mxu0 0
        %3717 = vmatpush1.bf16.xpose.msra.mxu0 0
        %3718 = vmatprep.subr.bf16.mxu0 0
        %3719 = vmatpush1.bf16.xpose.msra.mxu0 0
        %3720 = vmatprep.subr.bf16.mxu0 0
        %3721 = vmatpush1.bf16.xpose.msra.mxu0 0
        %3722 = vmatprep.subr.bf16.mxu0 0
        %3723 = vmatpush1.bf16.xpose.msra.mxu0 0
        %3724 = vmatprep.subr.bf16.mxu0 0
        %3725 = vmatpush1.bf16.xpose.msra.mxu0 0
        %3726 = vmatprep.subr.bf16.mxu0 0
        %3727 = vmatpush1.bf16.xpose.msra.mxu0 0
        %3728 = vmatprep.mubr.bf16.mxu0 0
        %3729 = vmatmul.mubr.bf16.gmra.mrb[0].mxu0 %v3691
        %v3730 = vpop.f32.mrb[0].mxu0
        %v3731 = vadd.f32 0.0, %v3730
        %v3732 = vpop.f32.mrb[0].mxu0
        %v3733 = vpop.f32.mrb[0].mxu0
        %v3734 = vpop.f32.mrb[0].mxu0
        %3735 = vdwg.mxu0
        %v3737 = vsel %vm1595, %v3387, 0
        %v3740 = vsel %vm1595, %v3537, 0
        %3742 = vmatprep.subr.bf16.mxu0 0
        %3743 = vmatpush1.bf16.xpose.msra.mxu0 %v3740
        %3744 = vmatprep.subr.bf16.mxu0 0
        %3745 = vmatpush1.bf16.xpose.msra.mxu0 0
        %3746 = vmatprep.subr.bf16.mxu0 0
        %3747 = vmatpush1.bf16.xpose.msra.mxu0 0
        %3748 = vmatprep.subr.bf16.mxu0 0
        %3749 = vmatpush1.bf16.xpose.msra.mxu0 0
        %3750 = vmatprep.subr.bf16.mxu0 0
        %3751 = vmatpush1.bf16.xpose.msra.mxu0 0
        %3752 = vmatprep.subr.bf16.mxu0 0
        %3753 = vmatpush1.bf16.xpose.msra.mxu0 0
        %3754 = vmatprep.subr.bf16.mxu0 0
        %3755 = vmatpush1.bf16.xpose.msra.mxu0 0
        %3756 = vmatprep.subr.bf16.mxu0 0
        %3757 = vmatpush1.bf16.xpose.msra.mxu0 0
        %3758 = vmatprep.subr.bf16.mxu0 0
        %3759 = vmatpush1.bf16.xpose.msra.mxu0 0
        %3760 = vmatprep.subr.bf16.mxu0 0
        %3761 = vmatpush1.bf16.xpose.msra.mxu0 0
        %3762 = vmatprep.subr.bf16.mxu0 0
        %3763 = vmatpush1.bf16.xpose.msra.mxu0 0
        %3764 = vmatprep.subr.bf16.mxu0 0
        %3765 = vmatpush1.bf16.xpose.msra.mxu0 0
        %3766 = vmatprep.subr.bf16.mxu0 0
        %3767 = vmatpush1.bf16.xpose.msra.mxu0 0
        %3768 = vmatprep.subr.bf16.mxu0 0
        %3769 = vmatpush1.bf16.xpose.msra.mxu0 0
        %3770 = vmatprep.subr.bf16.mxu0 0
        %3771 = vmatpush1.bf16.xpose.msra.mxu0 0
        %3772 = vmatprep.subr.bf16.mxu0 0
        %3773 = vmatpush1.bf16.xpose.msra.mxu0 0
        %3774 = vmatprep.mubr.bf16.mxu0 0
        %3775 = vmatmul.mubr.bf16.gmra.mrb[0].mxu0 %v3737
        %v3776 = vpop.f32.mrb[0].mxu0
        %v3777 = vadd.f32 0.0, %v3776
        %v3778 = vpop.f32.mrb[0].mxu0
        %v3779 = vpop.f32.mrb[0].mxu0
        %v3780 = vpop.f32.mrb[0].mxu0
        %3781 = vdwg.mxu0
        %v3783 = vsel %vm1595, %v3388, 0
        %v3786 = vsel %vm1595, %v3538, 0
        %3788 = vmatprep.subr.bf16.mxu0 0
        %3789 = vmatpush1.bf16.xpose.msra.mxu0 %v3786
        %3790 = vmatprep.subr.bf16.mxu0 0
        %3791 = vmatpush1.bf16.xpose.msra.mxu0 0
        %3792 = vmatprep.subr.bf16.mxu0 0
        %3793 = vmatpush1.bf16.xpose.msra.mxu0 0
        %3794 = vmatprep.subr.bf16.mxu0 0
        %3795 = vmatpush1.bf16.xpose.msra.mxu0 0
        %3796 = vmatprep.subr.bf16.mxu0 0
        %3797 = vmatpush1.bf16.xpose.msra.mxu0 0
        %3798 = vmatprep.subr.bf16.mxu0 0
        %3799 = vmatpush1.bf16.xpose.msra.mxu0 0
        %3800 = vmatprep.subr.bf16.mxu0 0
        %3801 = vmatpush1.bf16.xpose.msra.mxu0 0
        %3802 = vmatprep.subr.bf16.mxu0 0
        %3803 = vmatpush1.bf16.xpose.msra.mxu0 0
        %3804 = vmatprep.subr.bf16.mxu0 0
        %3805 = vmatpush1.bf16.xpose.msra.mxu0 0
        %3806 = vmatprep.subr.bf16.mxu0 0
        %3807 = vmatpush1.bf16.xpose.msra.mxu0 0
        %3808 = vmatprep.subr.bf16.mxu0 0
        %3809 = vmatpush1.bf16.xpose.msra.mxu0 0
        %3810 = vmatprep.subr.bf16.mxu0 0
        %3811 = vmatpush1.bf16.xpose.msra.mxu0 0
        %3812 = vmatprep.subr.bf16.mxu0 0
        %3813 = vmatpush1.bf16.xpose.msra.mxu0 0
        %3814 = vmatprep.subr.bf16.mxu0 0
        %3815 = vmatpush1.bf16.xpose.msra.mxu0 0
        %3816 = vmatprep.subr.bf16.mxu0 0
        %3817 = vmatpush1.bf16.xpose.msra.mxu0 0
        %3818 = vmatprep.subr.bf16.mxu0 0
        %3819 = vmatpush1.bf16.xpose.msra.mxu0 0
        %3820 = vmatprep.mubr.bf16.mxu0 0
        %3821 = vmatmul.mubr.bf16.gmra.mrb[0].mxu0 %v3783
        %v3822 = vpop.f32.mrb[0].mxu0
        %v3823 = vadd.f32 0.0, %v3822
        %v3824 = vpop.f32.mrb[0].mxu0
        %v3825 = vpop.f32.mrb[0].mxu0
        %v3826 = vpop.f32.mrb[0].mxu0
        %3827 = vdwg.mxu0
        %v3829 = vsel %vm1595, %v3389, 0
        %v3832 = vsel %vm1595, %v3539, 0
        %3834 = vmatprep.subr.bf16.mxu0 0
        %3835 = vmatpush1.bf16.xpose.msra.mxu0 %v3832
        %3836 = vmatprep.subr.bf16.mxu0 0
        %3837 = vmatpush1.bf16.xpose.msra.mxu0 0
        %3838 = vmatprep.subr.bf16.mxu0 0
        %3839 = vmatpush1.bf16.xpose.msra.mxu0 0
        %3840 = vmatprep.subr.bf16.mxu0 0
        %3841 = vmatpush1.bf16.xpose.msra.mxu0 0
        %3842 = vmatprep.subr.bf16.mxu0 0
        %3843 = vmatpush1.bf16.xpose.msra.mxu0 0
        %3844 = vmatprep.subr.bf16.mxu0 0
        %3845 = vmatpush1.bf16.xpose.msra.mxu0 0
        %3846 = vmatprep.subr.bf16.mxu0 0
        %3847 = vmatpush1.bf16.xpose.msra.mxu0 0
        %3848 = vmatprep.subr.bf16.mxu0 0
        %3849 = vmatpush1.bf16.xpose.msra.mxu0 0
        %3850 = vmatprep.subr.bf16.mxu0 0
        %3851 = vmatpush1.bf16.xpose.msra.mxu0 0
        %3852 = vmatprep.subr.bf16.mxu0 0
        %3853 = vmatpush1.bf16.xpose.msra.mxu0 0
        %3854 = vmatprep.subr.bf16.mxu0 0
        %3855 = vmatpush1.bf16.xpose.msra.mxu0 0
        %3856 = vmatprep.subr.bf16.mxu0 0
        %3857 = vmatpush1.bf16.xpose.msra.mxu0 0
        %3858 = vmatprep.subr.bf16.mxu0 0
        %3859 = vmatpush1.bf16.xpose.msra.mxu0 0
        %3860 = vmatprep.subr.bf16.mxu0 0
        %3861 = vmatpush1.bf16.xpose.msra.mxu0 0
        %3862 = vmatprep.subr.bf16.mxu0 0
        %3863 = vmatpush1.bf16.xpose.msra.mxu0 0
        %3864 = vmatprep.subr.bf16.mxu0 0
        %3865 = vmatpush1.bf16.xpose.msra.mxu0 0
        %3866 = vmatprep.mubr.bf16.mxu0 0
        %3867 = vmatmul.mubr.bf16.gmra.mrb[0].mxu0 %v3829
        %v3868 = vpop.f32.mrb[0].mxu0
        %v3869 = vadd.f32 0.0, %v3868
        %v3870 = vpop.f32.mrb[0].mxu0
        %v3871 = vpop.f32.mrb[0].mxu0
        %v3872 = vpop.f32.mrb[0].mxu0
        %3873 = vdwg.mxu0
        %v3874 = vmul.f32 %v3731, 0.17677669
        %v3875 = vmul.f32 %v3777, 0.17677669
        %v3876 = vmul.f32 %v3823, 0.17677669
        %v3877 = vmul.f32 %v3869, 0.17677669
        %v3878 = vsel %vm1785, %v3874, -1e+30
        %v3879 = vsel %vm1785, %v3875, -1e+30
        %v3880 = vsel %vm1785, %v3876, -1e+30
        %v3881 = vsel %vm1785, %v3877, -1e+30
        %v3882 = vsel %vm1790, %v3878, -inf
        %3883 = vmax.xlane.f32.xlu0 %v3882
        %v3884 = vpop.xlane.xlu0 %3883
        %v3885 = vsel %vm1790, %v3879, -inf
        %3886 = vmax.xlane.f32.xlu0 %v3885
        %v3887 = vpop.xlane.xlu0 %3886
        %v3888 = vsel %vm1790, %v3880, -inf
        %3889 = vmax.xlane.f32.xlu0 %v3888
        %v3890 = vpop.xlane.xlu0 %3889
        %v3891 = vsel %vm1790, %v3881, -inf
        %3892 = vmax.xlane.f32.xlu0 %v3891
        %v3893 = vpop.xlane.xlu0 %3892
        %v3894 = vsub.f32 %v3878, %v3884
        %v3895 = vsub.f32 %v3879, %v3887
        %v3896 = vsub.f32 %v3880, %v3890
        %v3897 = vsub.f32 %v3881, %v3893
        %v3898 = vmul.f32 %v3894, 1.442695
        %v3899 = vpow.pop %v3898
        %v3900 = vmul.f32 %v3895, 1.442695
        %v3901 = vpow.pop %v3900
        %v3902 = vmul.f32 %v3896, 1.442695
        %v3903 = vpow.pop %v3902
        %v3904 = vmul.f32 %v3897, 1.442695
        %v3905 = vpow.pop %v3904
        %v3906 = vsel %vm1790, %v3899, 0.0
        %3907 = vadd.xlane.f32.xlu0 %v3906
        %v3908 = vpop.xlane.xlu0 %3907
        %v3909 = vsel %vm1790, %v3901, 0.0
        %3910 = vadd.xlane.f32.xlu0 %v3909
        %v3911 = vpop.xlane.xlu0 %3910
        %v3912 = vsel %vm1790, %v3903, 0.0
        %3913 = vadd.xlane.f32.xlu0 %v3912
        %v3914 = vpop.xlane.xlu0 %3913
        %v3915 = vsel %vm1790, %v3905, 0.0
        %3916 = vadd.xlane.f32.xlu0 %v3915
        %v3917 = vpop.xlane.xlu0 %3916
        %v3918 = vrcp.pop %v3908
        %v3919 = vrcp.pop %v3911
        %v3920 = vrcp.pop %v3914
        %v3921 = vrcp.pop %v3917
        %v3922 = vmul.f32 %v3899, %v3918
        %v3923 = vmul.f32 %v3901, %v3919
        %v3924 = vmul.f32 %v3903, %v3920
        %v3925 = vmul.f32 %v3905, %v3921
        %v3926 = vpack.c.bf16 %v3922, %v3922
        %v3927 = vpack.c.bf16 %v3923, %v3923
        %v3928 = vpack.c.bf16 %v3924, %v3924
        %v3929 = vpack.c.bf16 %v3925, %v3925
        %v3931 = vsel %vm1790, %v3926, 0
        %v3934 = vsel %vm1842, %v3686, 0
        %3936 = vmatprep.subr.bf16.mxu0 0
        %3937 = vmatpush1.bf16.msra.mxu0 %v3934
        %3938 = vmatprep.subr.bf16.mxu0 0
        %3939 = vmatpush1.bf16.msra.mxu0 0
        %3940 = vmatprep.subr.bf16.mxu0 0
        %3941 = vmatpush1.bf16.msra.mxu0 0
        %3942 = vmatprep.subr.bf16.mxu0 0
        %3943 = vmatpush1.bf16.msra.mxu0 0
        %3944 = vmatprep.subr.bf16.mxu0 0
        %3945 = vmatpush1.bf16.msra.mxu0 0
        %3946 = vmatprep.subr.bf16.mxu0 0
        %3947 = vmatpush1.bf16.msra.mxu0 0
        %3948 = vmatprep.subr.bf16.mxu0 0
        %3949 = vmatpush1.bf16.msra.mxu0 0
        %3950 = vmatprep.subr.bf16.mxu0 0
        %3951 = vmatpush1.bf16.msra.mxu0 0
        %3952 = vmatprep.subr.bf16.mxu0 0
        %3953 = vmatpush1.bf16.msra.mxu0 0
        %3954 = vmatprep.subr.bf16.mxu0 0
        %3955 = vmatpush1.bf16.msra.mxu0 0
        %3956 = vmatprep.subr.bf16.mxu0 0
        %3957 = vmatpush1.bf16.msra.mxu0 0
        %3958 = vmatprep.subr.bf16.mxu0 0
        %3959 = vmatpush1.bf16.msra.mxu0 0
        %3960 = vmatprep.subr.bf16.mxu0 0
        %3961 = vmatpush1.bf16.msra.mxu0 0
        %3962 = vmatprep.subr.bf16.mxu0 0
        %3963 = vmatpush1.bf16.msra.mxu0 0
        %3964 = vmatprep.subr.bf16.mxu0 0
        %3965 = vmatpush1.bf16.msra.mxu0 0
        %3966 = vmatprep.subr.bf16.mxu0 0
        %3967 = vmatpush1.bf16.msra.mxu0 0
        %3968 = vmatprep.mubr.bf16.mxu0 0
        %3969 = vmatmul.mubr.bf16.gmra.mrb[0].mxu0 %v3931
        %v3970 = vpop.f32.mrb[0].mxu0
        %v3971 = vadd.f32 0.0, %v3970
        %v3972 = vpop.f32.mrb[0].mxu0
        %v3973 = vpop.f32.mrb[0].mxu0
        %v3974 = vpop.f32.mrb[0].mxu0
        %3975 = vdwg.mxu0
        %v3977 = vsel %vm1790, %v3927, 0
        %v3980 = vsel %vm1842, %v3687, 0
        %3982 = vmatprep.subr.bf16.mxu0 0
        %3983 = vmatpush1.bf16.msra.mxu0 %v3980
        %3984 = vmatprep.subr.bf16.mxu0 0
        %3985 = vmatpush1.bf16.msra.mxu0 0
        %3986 = vmatprep.subr.bf16.mxu0 0
        %3987 = vmatpush1.bf16.msra.mxu0 0
        %3988 = vmatprep.subr.bf16.mxu0 0
        %3989 = vmatpush1.bf16.msra.mxu0 0
        %3990 = vmatprep.subr.bf16.mxu0 0
        %3991 = vmatpush1.bf16.msra.mxu0 0
        %3992 = vmatprep.subr.bf16.mxu0 0
        %3993 = vmatpush1.bf16.msra.mxu0 0
        %3994 = vmatprep.subr.bf16.mxu0 0
        %3995 = vmatpush1.bf16.msra.mxu0 0
        %3996 = vmatprep.subr.bf16.mxu0 0
        %3997 = vmatpush1.bf16.msra.mxu0 0
        %3998 = vmatprep.subr.bf16.mxu0 0
        %3999 = vmatpush1.bf16.msra.mxu0 0
        %4000 = vmatprep.subr.bf16.mxu0 0
        %4001 = vmatpush1.bf16.msra.mxu0 0
        %4002 = vmatprep.subr.bf16.mxu0 0
        %4003 = vmatpush1.bf16.msra.mxu0 0
        %4004 = vmatprep.subr.bf16.mxu0 0
        %4005 = vmatpush1.bf16.msra.mxu0 0
        %4006 = vmatprep.subr.bf16.mxu0 0
        %4007 = vmatpush1.bf16.msra.mxu0 0
        %4008 = vmatprep.subr.bf16.mxu0 0
        %4009 = vmatpush1.bf16.msra.mxu0 0
        %4010 = vmatprep.subr.bf16.mxu0 0
        %4011 = vmatpush1.bf16.msra.mxu0 0
        %4012 = vmatprep.subr.bf16.mxu0 0
        %4013 = vmatpush1.bf16.msra.mxu0 0
        %4014 = vmatprep.mubr.bf16.mxu0 0
        %4015 = vmatmul.mubr.bf16.gmra.mrb[0].mxu0 %v3977
        %v4016 = vpop.f32.mrb[0].mxu0
        %v4017 = vadd.f32 0.0, %v4016
        %v4018 = vpop.f32.mrb[0].mxu0
        %v4019 = vpop.f32.mrb[0].mxu0
        %v4020 = vpop.f32.mrb[0].mxu0
        %4021 = vdwg.mxu0
        %v4023 = vsel %vm1790, %v3928, 0
        %v4026 = vsel %vm1842, %v3688, 0
        %4028 = vmatprep.subr.bf16.mxu0 0
        %4029 = vmatpush1.bf16.msra.mxu0 %v4026
        %4030 = vmatprep.subr.bf16.mxu0 0
        %4031 = vmatpush1.bf16.msra.mxu0 0
        %4032 = vmatprep.subr.bf16.mxu0 0
        %4033 = vmatpush1.bf16.msra.mxu0 0
        %4034 = vmatprep.subr.bf16.mxu0 0
        %4035 = vmatpush1.bf16.msra.mxu0 0
        %4036 = vmatprep.subr.bf16.mxu0 0
        %4037 = vmatpush1.bf16.msra.mxu0 0
        %4038 = vmatprep.subr.bf16.mxu0 0
        %4039 = vmatpush1.bf16.msra.mxu0 0
        %4040 = vmatprep.subr.bf16.mxu0 0
        %4041 = vmatpush1.bf16.msra.mxu0 0
        %4042 = vmatprep.subr.bf16.mxu0 0
        %4043 = vmatpush1.bf16.msra.mxu0 0
        %4044 = vmatprep.subr.bf16.mxu0 0
        %4045 = vmatpush1.bf16.msra.mxu0 0
        %4046 = vmatprep.subr.bf16.mxu0 0
        %4047 = vmatpush1.bf16.msra.mxu0 0
        %4048 = vmatprep.subr.bf16.mxu0 0
        %4049 = vmatpush1.bf16.msra.mxu0 0
        %4050 = vmatprep.subr.bf16.mxu0 0
        %4051 = vmatpush1.bf16.msra.mxu0 0
        %4052 = vmatprep.subr.bf16.mxu0 0
        %4053 = vmatpush1.bf16.msra.mxu0 0
        %4054 = vmatprep.subr.bf16.mxu0 0
        %4055 = vmatpush1.bf16.msra.mxu0 0
        %4056 = vmatprep.subr.bf16.mxu0 0
        %4057 = vmatpush1.bf16.msra.mxu0 0
        %4058 = vmatprep.subr.bf16.mxu0 0
        %4059 = vmatpush1.bf16.msra.mxu0 0
        %4060 = vmatprep.mubr.bf16.mxu0 0
        %4061 = vmatmul.mubr.bf16.gmra.mrb[0].mxu0 %v4023
        %v4062 = vpop.f32.mrb[0].mxu0
        %v4063 = vadd.f32 0.0, %v4062
        %v4064 = vpop.f32.mrb[0].mxu0
        %v4065 = vpop.f32.mrb[0].mxu0
        %v4066 = vpop.f32.mrb[0].mxu0
        %4067 = vdwg.mxu0
        %v4069 = vsel %vm1790, %v3929, 0
        %v4072 = vsel %vm1842, %v3689, 0
        %4074 = vmatprep.subr.bf16.mxu0 0
        %4075 = vmatpush1.bf16.msra.mxu0 %v4072
        %4076 = vmatprep.subr.bf16.mxu0 0
        %4077 = vmatpush1.bf16.msra.mxu0 0
        %4078 = vmatprep.subr.bf16.mxu0 0
        %4079 = vmatpush1.bf16.msra.mxu0 0
        %4080 = vmatprep.subr.bf16.mxu0 0
        %4081 = vmatpush1.bf16.msra.mxu0 0
        %4082 = vmatprep.subr.bf16.mxu0 0
        %4083 = vmatpush1.bf16.msra.mxu0 0
        %4084 = vmatprep.subr.bf16.mxu0 0
        %4085 = vmatpush1.bf16.msra.mxu0 0
        %4086 = vmatprep.subr.bf16.mxu0 0
        %4087 = vmatpush1.bf16.msra.mxu0 0
        %4088 = vmatprep.subr.bf16.mxu0 0
        %4089 = vmatpush1.bf16.msra.mxu0 0
        %4090 = vmatprep.subr.bf16.mxu0 0
        %4091 = vmatpush1.bf16.msra.mxu0 0
        %4092 = vmatprep.subr.bf16.mxu0 0
        %4093 = vmatpush1.bf16.msra.mxu0 0
        %4094 = vmatprep.subr.bf16.mxu0 0
        %4095 = vmatpush1.bf16.msra.mxu0 0
        %4096 = vmatprep.subr.bf16.mxu0 0
        %4097 = vmatpush1.bf16.msra.mxu0 0
        %4098 = vmatprep.subr.bf16.mxu0 0
        %4099 = vmatpush1.bf16.msra.mxu0 0
        %4100 = vmatprep.subr.bf16.mxu0 0
        %4101 = vmatpush1.bf16.msra.mxu0 0
        %4102 = vmatprep.subr.bf16.mxu0 0
        %4103 = vmatpush1.bf16.msra.mxu0 0
        %4104 = vmatprep.subr.bf16.mxu0 0
        %4105 = vmatpush1.bf16.msra.mxu0 0
        %4106 = vmatprep.mubr.bf16.mxu0 0
        %4107 = vmatmul.mubr.bf16.gmra.mrb[0].mxu0 %v4069
        %v4108 = vpop.f32.mrb[0].mxu0
        %v4109 = vadd.f32 0.0, %v4108
        %v4110 = vpop.f32.mrb[0].mxu0
        %v4111 = vpop.f32.mrb[0].mxu0
        %v4112 = vpop.f32.mrb[0].mxu0
        %4113 = vdwg.mxu0
        %v4114 = vcombine.low %v3971, %v4063
        %v4115 = vcombine.high %v3971, %v4063
        %v4117 = vunpack.c.l.s4 1983009808
        %v4118 = vunpack.c.0.s8 %v4117
        %v4119 = vlaneseq
        %v4120 = vshrl.u32 %v4119, 7
        %v4121 = vsub.s32 %v4118, %v4120
        %v4122 = vrot.slane %v4114, %v4121
        %v4124 = vunpack.c.l.s4 1983009808
        %v4125 = vunpack.c.0.s8 %v4124
        %v4126 = vlaneseq
        %v4127 = vshrl.u32 %v4126, 7
        %v4128 = vsub.s32 %v4125, %v4127
        %v4129 = vrot.slane %v4115, %v4128
        %v4130 = vcombine.low %v4017, %v4109
        %v4131 = vcombine.high %v4017, %v4109
        %v4133 = vunpack.c.l.s4 1983009808
        %v4134 = vunpack.c.0.s8 %v4133
        %v4135 = vlaneseq
        %v4136 = vshrl.u32 %v4135, 7
        %v4137 = vsub.s32 %v4134, %v4136
        %v4138 = vrot.slane %v4130, %v4137
        %v4140 = vunpack.c.l.s4 1983009808
        %v4141 = vunpack.c.0.s8 %v4140
        %v4142 = vlaneseq
        %v4143 = vshrl.u32 %v4142, 7
        %v4144 = vsub.s32 %v4141, %v4143
        %v4145 = vrot.slane %v4131, %v4144
        %v4146 = vcombine.low %v4122, %v4138
        %v4147 = vcombine.high %v4122, %v4138
        %v4149 = vunpack.c.l.s4 1934713408
        %v4150 = vunpack.c.0.s8 %v4149
        %v4151 = vlaneseq
        %v4152 = vshrl.u32 %v4151, 7
        %v4153 = vsub.s32 %v4150, %v4152
        %v4154 = vrot.slane %v4146, %v4153
        %v4156 = vunpack.c.l.s4 1934713408
        %v4157 = vunpack.c.0.s8 %v4156
        %v4158 = vlaneseq
        %v4159 = vshrl.u32 %v4158, 7
        %v4160 = vsub.s32 %v4157, %v4159
        %v4161 = vrot.slane %v4147, %v4160
        %v4162 = vcombine.low %v4129, %v4145
        %v4163 = vcombine.high %v4129, %v4145
        %v4165 = vunpack.c.l.s4 1934713408
        %v4166 = vunpack.c.0.s8 %v4165
        %v4167 = vlaneseq
        %v4168 = vshrl.u32 %v4167, 7
        %v4169 = vsub.s32 %v4166, %v4168
        %v4170 = vrot.slane %v4162, %v4169
        %v4172 = vunpack.c.l.s4 1934713408
        %v4173 = vunpack.c.0.s8 %v4172
        %v4174 = vlaneseq
        %v4175 = vshrl.u32 %v4174, 7
        %v4176 = vsub.s32 %v4173, %v4175
        %v4177 = vrot.slane %v4163, %v4176
        %v4178 = vcombine.high %v4154, 0.0
        %v4179 = vcombine.high %v4161, 0.0
        %v4180 = vcombine.high %v4170, 0.0
        %v4181 = vcombine.high %v4177, 0.0
        %v4182 = vcombine.low %v4154, %v4161
        %v4184 = vunpack.c.l.s4 1983009808
        %v4185 = vunpack.c.0.s8 %v4184
        %v4186 = vlaneseq
        %v4187 = vshrl.u32 %v4186, 7
        %v4188 = vsub.s32 %v4185, %v4187
        %v4189 = vrot.slane %v4182, %v4188
        %v4190 = vcombine.low %v4178, %v4179
        %v4192 = vunpack.c.l.s4 1983009808
        %v4193 = vunpack.c.0.s8 %v4192
        %v4194 = vlaneseq
        %v4195 = vshrl.u32 %v4194, 7
        %v4196 = vsub.s32 %v4193, %v4195
        %v4197 = vrot.slane %v4190, %v4196
        %v4198 = vcombine.low %v4170, %v4177
        %v4200 = vunpack.c.l.s4 1983009808
        %v4201 = vunpack.c.0.s8 %v4200
        %v4202 = vlaneseq
        %v4203 = vshrl.u32 %v4202, 7
        %v4204 = vsub.s32 %v4201, %v4203
        %v4205 = vrot.slane %v4198, %v4204
        %v4206 = vcombine.low %v4180, %v4181
        %v4208 = vunpack.c.l.s4 1983009808
        %v4209 = vunpack.c.0.s8 %v4208
        %v4210 = vlaneseq
        %v4211 = vshrl.u32 %v4210, 7
        %v4212 = vsub.s32 %v4209, %v4211
        %v4213 = vrot.slane %v4206, %v4212
        %v4214 = vcombine.low %v4189, %v4197
        %v4215 = vcombine.high %v4189, %v4197
        %v4217 = vunpack.c.l.s4 1934713408
        %v4218 = vunpack.c.0.s8 %v4217
        %v4219 = vlaneseq
        %v4220 = vshrl.u32 %v4219, 7
        %v4221 = vsub.s32 %v4218, %v4220
        %v4222 = vrot.slane %v4214, %v4221
        %v4224 = vunpack.c.l.s4 1934713408
        %v4225 = vunpack.c.0.s8 %v4224
        %v4226 = vlaneseq
        %v4227 = vshrl.u32 %v4226, 7
        %v4228 = vsub.s32 %v4225, %v4227
        %v4229 = vrot.slane %v4215, %v4228
        %v4230 = vcombine.low %v4205, %v4213
        %v4231 = vcombine.high %v4205, %v4213
        %v4233 = vunpack.c.l.s4 1934713408
        %v4234 = vunpack.c.0.s8 %v4233
        %v4235 = vlaneseq
        %v4236 = vshrl.u32 %v4235, 7
        %v4237 = vsub.s32 %v4234, %v4236
        %v4238 = vrot.slane %v4230, %v4237
        %v4240 = vunpack.c.l.s4 1934713408
        %v4241 = vunpack.c.0.s8 %v4240
        %v4242 = vlaneseq
        %v4243 = vshrl.u32 %v4242, 7
        %v4244 = vsub.s32 %v4241, %v4243
        %v4245 = vrot.slane %v4231, %v4244
        %v4246 = vcombine.low %v4222, %v4238
        %v4247 = vcombine.high %v4222, %v4238
        %v4248 = vcombine.low %v4229, %v4245
        %v4249 = vcombine.high %v4229, %v4245
        %4251 = vrot.lane.b32.xlu0 %v4247, 32
        %v4252 = vpop.permute.xlu0 %4251
        %4255 = vrot.lane.b32.xlu0 %v4248, 64
        %v4256 = vpop.permute.xlu0 %4255
        %4259 = vrot.lane.b32.xlu0 %v4249, 96
        %v4260 = vpop.permute.xlu0 %4259
        %v4262 = vsel %vm1595, %v4246, %v4252
        %v4263 = vsel %vm2173, %v4262, %v4256
        %v4264 = vsel %vm2175, %v4263, %v4260
        %s4265 = scalar_lea.vmem [#allocation7], 64
        %v4266 = vld [vmem:[%s4265] sm:$0xf]
        %v4267 = vld [vmem:[%s4265 + $0x4] sm:$0xf]
        %v4268 = vld [vmem:[%s4265 + $0x8] sm:$0xf]
        %v4269 = vld [vmem:[%s4265 + $0xc] sm:$0xf]
        %v4270 = vld [vmem:[%s4265 + $0x10] sm:$0xf]
        %v4271 = vld [vmem:[%s4265 + $0x14] sm:$0xf]
        %v4272 = vld [vmem:[%s4265 + $0x18] sm:$0xf]
        %v4273 = vld [vmem:[%s4265 + $0x1c] sm:$0xf]
        %v4274 = vld [vmem:[%s4265 + $0x20] sm:$0xf]
        %v4275 = vld [vmem:[%s4265 + $0x24] sm:$0xf]
        %v4276 = vld [vmem:[%s4265 + $0x28] sm:$0xf]
        %v4277 = vld [vmem:[%s4265 + $0x2c] sm:$0xf]
        %v4278 = vld [vmem:[%s4265 + $0x30] sm:$0xf]
        %v4279 = vld [vmem:[%s4265 + $0x34] sm:$0xf]
        %v4280 = vld [vmem:[%s4265 + $0x38] sm:$0xf]
        %v4281 = vld [vmem:[%s4265 + $0x3c] sm:$0xf]
        %v4282 = vpack.c.bf16 %v4264, %v4264
        %v4299 = vunpack.c.l.b16 %v4266
        %v4300 = vunpack.c.l.b16 %v4267
        %v4301 = vunpack.c.l.b16 %v4268
        %v4302 = vunpack.c.l.b16 %v4269
        %v4303 = vunpack.c.l.b16 %v4270
        %v4304 = vunpack.c.l.b16 %v4271
        %v4305 = vunpack.c.l.b16 %v4272
        %v4306 = vunpack.c.l.b16 %v4273
        %v4307 = vunpack.c.l.b16 %v4274
        %v4308 = vunpack.c.l.b16 %v4275
        %v4309 = vunpack.c.l.b16 %v4276
        %v4310 = vunpack.c.l.b16 %v4277
        %v4311 = vunpack.c.l.b16 %v4278
        %v4312 = vunpack.c.l.b16 %v4279
        %v4313 = vunpack.c.l.b16 %v4280
        %v4314 = vunpack.c.l.b16 %v4281
        %v4315 = vpack.c.b16 %v4300, %v4299
        %v4316 = vpack.c.b16 %v4302, %v4301
        %v4317 = vpack.c.b16 %v4304, %v4303
        %v4318 = vpack.c.b16 %v4306, %v4305
        %v4319 = vpack.c.b16 %v4308, %v4307
        %v4320 = vpack.c.b16 %v4310, %v4309
        %v4321 = vpack.c.b16 %v4312, %v4311
        %v4322 = vpack.c.b16 %v4314, %v4313
        %4331 = vmatprep.subr.bf16.mxu0 0
        %4332 = vmatpush1.bf16.msra.mxu0 %v4315
        %4333 = vmatprep.subr.bf16.mxu0 0
        %4334 = vmatpush1.bf16.msra.mxu0 %v4316
        %4335 = vmatprep.subr.bf16.mxu0 0
        %4336 = vmatpush1.bf16.msra.mxu0 %v4317
        %4337 = vmatprep.subr.bf16.mxu0 0
        %4338 = vmatpush1.bf16.msra.mxu0 %v4318
        %4339 = vmatprep.subr.bf16.mxu0 0
        %4340 = vmatpush1.bf16.msra.mxu0 %v4319
        %4341 = vmatprep.subr.bf16.mxu0 0
        %4342 = vmatpush1.bf16.msra.mxu0 %v4320
        %4343 = vmatprep.subr.bf16.mxu0 0
        %4344 = vmatpush1.bf16.msra.mxu0 %v4321
        %4345 = vmatprep.subr.bf16.mxu0 0
        %4346 = vmatpush1.bf16.msra.mxu0 %v4322
        %4347 = vmatprep.subr.bf16.mxu0 0
        %4348 = vmatpush1.bf16.msra.mxu0 0
        %4349 = vmatprep.subr.bf16.mxu0 0
        %4350 = vmatpush1.bf16.msra.mxu0 0
        %4351 = vmatprep.subr.bf16.mxu0 0
        %4352 = vmatpush1.bf16.msra.mxu0 0
        %4353 = vmatprep.subr.bf16.mxu0 0
        %4354 = vmatpush1.bf16.msra.mxu0 0
        %4355 = vmatprep.subr.bf16.mxu0 0
        %4356 = vmatpush1.bf16.msra.mxu0 0
        %4357 = vmatprep.subr.bf16.mxu0 0
        %4358 = vmatpush1.bf16.msra.mxu0 0
        %4359 = vmatprep.subr.bf16.mxu0 0
        %4360 = vmatpush1.bf16.msra.mxu0 0
        %4361 = vmatprep.subr.bf16.mxu0 0
        %4362 = vmatpush1.bf16.msra.mxu0 0
        %4363 = vmatprep.mubr.bf16.mxu0 0
        %4364 = vmatmul.mubr.bf16.gmra.mrb[0].mxu0 %v4282
        %v4365 = vpop.f32.mrb[0].mxu0
        %v4366 = vadd.f32 0.0, %v4365
        %v4367 = vpop.f32.mrb[0].mxu0
        %v4368 = vpop.f32.mrb[0].mxu0
        %v4369 = vpop.f32.mrb[0].mxu0
        %4370 = vdwg.mxu0
        %v4371 = vadd.f32 %v2967, %v4366
        %s4372 = scalar_lea.vmem %s7, 1
        %v4373 = vld [vmem:[%s4372] sm:$0x1]
        %v4375 = vlaneseq
        %v4376 = vshrl.u32 %v4375, 7
        %v4377 = vsub.s32 0, %v4376
        %v4378 = vrot.slane %v4373, %v4377
        %v4380 = vadd.f32 %v4371, %v4378
        %s4381 = scalar_lea.vmem %s8, 1
        %v4382 = vld [vmem:[%s4381] sm:$0x1]
        %s4383 = scalar_lea.vmem %s9, 1
        %v4384 = vld [vmem:[%s4383] sm:$0x1]
        %4385 = vadd.xlane.f32.xlu0 %v4380
        %v4386 = vpop.xlane.xlu0 %4385
        %v4387 = vmul.f32 %v4386, %v879
        %v4388 = vsub.f32 %v4380, %v4387
        %v4389 = vmul.f32 %v4388, %v4388
        %4390 = vadd.xlane.f32.xlu0 %v4389
        %v4391 = vpop.xlane.xlu0 %4390
        %v4392 = vmul.f32 %v4391, %v879
        %v4393 = vadd.f32 %v4392, 1e-05
        %v4394 = vrsqrt.pop %v4393
        %v4395 = vmul.f32 %v4388, %v4394
        %v4397 = vlaneseq
        %v4398 = vshrl.u32 %v4397, 7
        %v4399 = vsub.s32 0, %v4398
        %v4400 = vrot.slane %v4382, %v4399
        %v4402 = vmul.f32 %v4395, %v4400
        %v4404 = vlaneseq
        %v4405 = vshrl.u32 %v4404, 7
        %v4406 = vsub.s32 0, %v4405
        %v4407 = vrot.slane %v4384, %v4406
        %v4409 = vadd.f32 %v4402, %v4407
        %s4410 = scalar_lea.vmem [#allocation8], 256
        %v4411 = vld [vmem:[%s4410] sm:$0xff]
        %v4412 = vld [vmem:[%s4410 + $0x8] sm:$0xff]
        %v4413 = vld [vmem:[%s4410 + $0x10] sm:$0xff]
        %v4414 = vld [vmem:[%s4410 + $0x18] sm:$0xff]
        %v4415 = vld [vmem:[%s4410 + $0x20] sm:$0xff]
        %v4416 = vld [vmem:[%s4410 + $0x28] sm:$0xff]
        %v4417 = vld [vmem:[%s4410 + $0x30] sm:$0xff]
        %v4418 = vld [vmem:[%s4410 + $0x38] sm:$0xff]
        %v4419 = vld [vmem:[%s4410 + $0x40] sm:$0xff]
        %v4420 = vld [vmem:[%s4410 + $0x48] sm:$0xff]
        %v4421 = vld [vmem:[%s4410 + $0x50] sm:$0xff]
        %v4422 = vld [vmem:[%s4410 + $0x58] sm:$0xff]
        %v4423 = vld [vmem:[%s4410 + $0x60] sm:$0xff]
        %v4424 = vld [vmem:[%s4410 + $0x68] sm:$0xff]
        %v4425 = vld [vmem:[%s4410 + $0x70] sm:$0xff]
        %v4426 = vld [vmem:[%s4410 + $0x78] sm:$0xff]
        %v4427 = vld [vmem:[%s4410 + $0x80] sm:$0xff]
        %v4428 = vld [vmem:[%s4410 + $0x88] sm:$0xff]
        %v4429 = vld [vmem:[%s4410 + $0x90] sm:$0xff]
        %v4430 = vld [vmem:[%s4410 + $0x98] sm:$0xff]
        %v4431 = vld [vmem:[%s4410 + $0xa0] sm:$0xff]
        %v4432 = vld [vmem:[%s4410 + $0xa8] sm:$0xff]
        %v4433 = vld [vmem:[%s4410 + $0xb0] sm:$0xff]
        %v4434 = vld [vmem:[%s4410 + $0xb8] sm:$0xff]
        %v4435 = vld [vmem:[%s4410 + $0xc0] sm:$0xff]
        %v4436 = vld [vmem:[%s4410 + $0xc8] sm:$0xff]
        %v4437 = vld [vmem:[%s4410 + $0xd0] sm:$0xff]
        %v4438 = vld [vmem:[%s4410 + $0xd8] sm:$0xff]
        %v4439 = vld [vmem:[%s4410 + $0xe0] sm:$0xff]
        %v4440 = vld [vmem:[%s4410 + $0xe8] sm:$0xff]
        %v4441 = vld [vmem:[%s4410 + $0xf0] sm:$0xff]
        %v4442 = vld [vmem:[%s4410 + $0xf8] sm:$0xff]
        %v4443 = vpack.c.bf16 %v4409, %v4409
        %s4444 = scalar_lea.vmem %s11, 4
        %v4445 = vld [vmem:[%s4444] sm:$0xf]
        %v4447 = vlaneseq
        %v4448 = vshrl.u32 %v4447, 7
        %v4449 = vsub.s32 0, %v4448
        %v4450 = vrot.slane %v4445, %v4449
        %v4451 = vlaneseq
        %v4452 = vshrl.u32 %v4451, 7
        %v4453 = vsub.s32 1, %v4452
        %v4454 = vrot.slane %v4445, %v4453
        %v4455 = vlaneseq
        %v4456 = vshrl.u32 %v4455, 7
        %v4457 = vsub.s32 2, %v4456
        %v4458 = vrot.slane %v4445, %v4457
        %v4459 = vlaneseq
        %v4460 = vshrl.u32 %v4459, 7
        %v4461 = vsub.s32 3, %v4460
        %v4462 = vrot.slane %v4445, %v4461
        %v4499 = vunpack.c.l.b16 %v4411
        %v4500 = vunpack.c.h.b16 %v4411
        %v4501 = vunpack.c.l.b16 %v4412
        %v4502 = vunpack.c.h.b16 %v4412
        %v4503 = vunpack.c.l.b16 %v4413
        %v4504 = vunpack.c.h.b16 %v4413
        %v4505 = vunpack.c.l.b16 %v4414
        %v4506 = vunpack.c.h.b16 %v4414
        %v4507 = vunpack.c.l.b16 %v4415
        %v4508 = vunpack.c.h.b16 %v4415
        %v4509 = vunpack.c.l.b16 %v4416
        %v4510 = vunpack.c.h.b16 %v4416
        %v4511 = vunpack.c.l.b16 %v4417
        %v4512 = vunpack.c.h.b16 %v4417
        %v4513 = vunpack.c.l.b16 %v4418
        %v4514 = vunpack.c.h.b16 %v4418
        %v4515 = vunpack.c.l.b16 %v4419
        %v4516 = vunpack.c.h.b16 %v4419
        %v4517 = vunpack.c.l.b16 %v4420
        %v4518 = vunpack.c.h.b16 %v4420
        %v4519 = vunpack.c.l.b16 %v4421
        %v4520 = vunpack.c.h.b16 %v4421
        %v4521 = vunpack.c.l.b16 %v4422
        %v4522 = vunpack.c.h.b16 %v4422
        %v4523 = vunpack.c.l.b16 %v4423
        %v4524 = vunpack.c.h.b16 %v4423
        %v4525 = vunpack.c.l.b16 %v4424
        %v4526 = vunpack.c.h.b16 %v4424
        %v4527 = vunpack.c.l.b16 %v4425
        %v4528 = vunpack.c.h.b16 %v4425
        %v4529 = vunpack.c.l.b16 %v4426
        %v4530 = vunpack.c.h.b16 %v4426
        %v4531 = vunpack.c.l.b16 %v4427
        %v4532 = vunpack.c.h.b16 %v4427
        %v4533 = vunpack.c.l.b16 %v4428
        %v4534 = vunpack.c.h.b16 %v4428
        %v4535 = vunpack.c.l.b16 %v4429
        %v4536 = vunpack.c.h.b16 %v4429
        %v4537 = vunpack.c.l.b16 %v4430
        %v4538 = vunpack.c.h.b16 %v4430
        %v4539 = vunpack.c.l.b16 %v4431
        %v4540 = vunpack.c.h.b16 %v4431
        %v4541 = vunpack.c.l.b16 %v4432
        %v4542 = vunpack.c.h.b16 %v4432
        %v4543 = vunpack.c.l.b16 %v4433
        %v4544 = vunpack.c.h.b16 %v4433
        %v4545 = vunpack.c.l.b16 %v4434
        %v4546 = vunpack.c.h.b16 %v4434
        %v4547 = vunpack.c.l.b16 %v4435
        %v4548 = vunpack.c.h.b16 %v4435
        %v4549 = vunpack.c.l.b16 %v4436
        %v4550 = vunpack.c.h.b16 %v4436
        %v4551 = vunpack.c.l.b16 %v4437
        %v4552 = vunpack.c.h.b16 %v4437
        %v4553 = vunpack.c.l.b16 %v4438
        %v4554 = vunpack.c.h.b16 %v4438
        %v4555 = vunpack.c.l.b16 %v4439
        %v4556 = vunpack.c.h.b16 %v4439
        %v4557 = vunpack.c.l.b16 %v4440
        %v4558 = vunpack.c.h.b16 %v4440
        %v4559 = vunpack.c.l.b16 %v4441
        %v4560 = vunpack.c.h.b16 %v4441
        %v4561 = vunpack.c.l.b16 %v4442
        %v4562 = vunpack.c.h.b16 %v4442
        %v4563 = vpack.c.b16 %v4503, %v4499
        %v4564 = vpack.c.b16 %v4504, %v4500
        %v4565 = vpack.c.b16 %v4505, %v4501
        %v4566 = vpack.c.b16 %v4506, %v4502
        %v4567 = vpack.c.b16 %v4511, %v4507
        %v4568 = vpack.c.b16 %v4512, %v4508
        %v4569 = vpack.c.b16 %v4513, %v4509
        %v4570 = vpack.c.b16 %v4514, %v4510
        %v4571 = vpack.c.b16 %v4519, %v4515
        %v4572 = vpack.c.b16 %v4520, %v4516
        %v4573 = vpack.c.b16 %v4521, %v4517
        %v4574 = vpack.c.b16 %v4522, %v4518
        %v4575 = vpack.c.b16 %v4527, %v4523
        %v4576 = vpack.c.b16 %v4528, %v4524
        %v4577 = vpack.c.b16 %v4529, %v4525
        %v4578 = vpack.c.b16 %v4530, %v4526
        %v4579 = vpack.c.b16 %v4535, %v4531
        %v4580 = vpack.c.b16 %v4536, %v4532
        %v4581 = vpack.c.b16 %v4537, %v4533
        %v4582 = vpack.c.b16 %v4538, %v4534
        %v4583 = vpack.c.b16 %v4543, %v4539
        %v4584 = vpack.c.b16 %v4544, %v4540
        %v4585 = vpack.c.b16 %v4545, %v4541
        %v4586 = vpack.c.b16 %v4546, %v4542
        %v4587 = vpack.c.b16 %v4551, %v4547
        %v4588 = vpack.c.b16 %v4552, %v4548
        %v4589 = vpack.c.b16 %v4553, %v4549
        %v4590 = vpack.c.b16 %v4554, %v4550
        %v4591 = vpack.c.b16 %v4559, %v4555
        %v4592 = vpack.c.b16 %v4560, %v4556
        %v4593 = vpack.c.b16 %v4561, %v4557
        %v4594 = vpack.c.b16 %v4562, %v4558
        %4627 = vmatprep.subr.bf16.mxu0 %v4564
        %4628 = vmatpush1.bf16.msra.mxu0 %v4563
        %4629 = vmatprep.subr.bf16.mxu0 %v4568
        %4630 = vmatpush1.bf16.msra.mxu0 %v4567
        %4631 = vmatprep.subr.bf16.mxu0 %v4572
        %4632 = vmatpush1.bf16.msra.mxu0 %v4571
        %4633 = vmatprep.subr.bf16.mxu0 %v4576
        %4634 = vmatpush1.bf16.msra.mxu0 %v4575
        %4635 = vmatprep.subr.bf16.mxu0 %v4580
        %4636 = vmatpush1.bf16.msra.mxu0 %v4579
        %4637 = vmatprep.subr.bf16.mxu0 %v4584
        %4638 = vmatpush1.bf16.msra.mxu0 %v4583
        %4639 = vmatprep.subr.bf16.mxu0 %v4588
        %4640 = vmatpush1.bf16.msra.mxu0 %v4587
        %4641 = vmatprep.subr.bf16.mxu0 %v4592
        %4642 = vmatpush1.bf16.msra.mxu0 %v4591
        %4643 = vmatprep.subr.bf16.mxu0 0
        %4644 = vmatpush1.bf16.msra.mxu0 0
        %4645 = vmatprep.subr.bf16.mxu0 0
        %4646 = vmatpush1.bf16.msra.mxu0 0
        %4647 = vmatprep.subr.bf16.mxu0 0
        %4648 = vmatpush1.bf16.msra.mxu0 0
        %4649 = vmatprep.subr.bf16.mxu0 0
        %4650 = vmatpush1.bf16.msra.mxu0 0
        %4651 = vmatprep.subr.bf16.mxu0 0
        %4652 = vmatpush1.bf16.msra.mxu0 0
        %4653 = vmatprep.subr.bf16.mxu0 0
        %4654 = vmatpush1.bf16.msra.mxu0 0
        %4655 = vmatprep.subr.bf16.mxu0 0
        %4656 = vmatpush1.bf16.msra.mxu0 0
        %4657 = vmatprep.subr.bf16.mxu0 0
        %4658 = vmatpush1.bf16.msra.mxu0 0
        %4659 = vmatprep.mubr.bf16.mxu0 0
        %4660 = vmatmul.mubr.bf16.gmra.mrb[0].mxu0 %v4443
        %v4661 = vpop.f32.mrb[0].mxu0
        %v4662 = vadd.f32 %v4450, %v4661
        %v4663 = vpop.f32.mrb[0].mxu0
        %v4664 = vadd.f32 %v4454, %v4663
        %v4665 = vpop.f32.mrb[0].mxu0
        %v4666 = vpop.f32.mrb[0].mxu0
        %4667 = vdwg.mxu0
        %4668 = vmatprep.subr.bf16.mxu0 %v4566
        %4669 = vmatpush1.bf16.msra.mxu0 %v4565
        %4670 = vmatprep.subr.bf16.mxu0 %v4570
        %4671 = vmatpush1.bf16.msra.mxu0 %v4569
        %4672 = vmatprep.subr.bf16.mxu0 %v4574
        %4673 = vmatpush1.bf16.msra.mxu0 %v4573
        %4674 = vmatprep.subr.bf16.mxu0 %v4578
        %4675 = vmatpush1.bf16.msra.mxu0 %v4577
        %4676 = vmatprep.subr.bf16.mxu0 %v4582
        %4677 = vmatpush1.bf16.msra.mxu0 %v4581
        %4678 = vmatprep.subr.bf16.mxu0 %v4586
        %4679 = vmatpush1.bf16.msra.mxu0 %v4585
        %4680 = vmatprep.subr.bf16.mxu0 %v4590
        %4681 = vmatpush1.bf16.msra.mxu0 %v4589
        %4682 = vmatprep.subr.bf16.mxu0 %v4594
        %4683 = vmatpush1.bf16.msra.mxu0 %v4593
        %4684 = vmatprep.subr.bf16.mxu0 0
        %4685 = vmatpush1.bf16.msra.mxu0 0
        %4686 = vmatprep.subr.bf16.mxu0 0
        %4687 = vmatpush1.bf16.msra.mxu0 0
        %4688 = vmatprep.subr.bf16.mxu0 0
        %4689 = vmatpush1.bf16.msra.mxu0 0
        %4690 = vmatprep.subr.bf16.mxu0 0
        %4691 = vmatpush1.bf16.msra.mxu0 0
        %4692 = vmatprep.subr.bf16.mxu0 0
        %4693 = vmatpush1.bf16.msra.mxu0 0
        %4694 = vmatprep.subr.bf16.mxu0 0
        %4695 = vmatpush1.bf16.msra.mxu0 0
        %4696 = vmatprep.subr.bf16.mxu0 0
        %4697 = vmatpush1.bf16.msra.mxu0 0
        %4698 = vmatprep.subr.bf16.mxu0 0
        %4699 = vmatpush1.bf16.msra.mxu0 0
        %4700 = vmatprep.mubr.bf16.mxu0 0
        %4701 = vmatmul.mubr.bf16.gmra.mrb[0].mxu0 %v4443
        %v4702 = vpop.f32.mrb[0].mxu0
        %v4703 = vadd.f32 %v4458, %v4702
        %v4704 = vpop.f32.mrb[0].mxu0
        %v4705 = vadd.f32 %v4462, %v4704
        %v4706 = vpop.f32.mrb[0].mxu0
        %v4707 = vpop.f32.mrb[0].mxu0
        %4708 = vdwg.mxu0
        %v4709 = vmax.f32 %v4662, 0.0
        %v4710 = vmax.f32 %v4664, 0.0
        %v4711 = vmax.f32 %v4703, 0.0
        %v4712 = vmax.f32 %v4705, 0.0
        %s4713 = scalar_lea.vmem [#allocation10], 256
        %v4714 = vld [vmem:[%s4713] sm:$0xf]
        %v4715 = vld [vmem:[%s4713 + $0x4] sm:$0xf]
        %v4716 = vld [vmem:[%s4713 + $0x8] sm:$0xf]
        %v4717 = vld [vmem:[%s4713 + $0xc] sm:$0xf]
        %v4718 = vld [vmem:[%s4713 + $0x10] sm:$0xf]
        %v4719 = vld [vmem:[%s4713 + $0x14] sm:$0xf]
        %v4720 = vld [vmem:[%s4713 + $0x18] sm:$0xf]
        %v4721 = vld [vmem:[%s4713 + $0x1c] sm:$0xf]
        %v4722 = vld [vmem:[%s4713 + $0x20] sm:$0xf]
        %v4723 = vld [vmem:[%s4713 + $0x24] sm:$0xf]
        %v4724 = vld [vmem:[%s4713 + $0x28] sm:$0xf]
        %v4725 = vld [vmem:[%s4713 + $0x2c] sm:$0xf]
        %v4726 = vld [vmem:[%s4713 + $0x30] sm:$0xf]
        %v4727 = vld [vmem:[%s4713 + $0x34] sm:$0xf]
        %v4728 = vld [vmem:[%s4713 + $0x38] sm:$0xf]
        %v4729 = vld [vmem:[%s4713 + $0x3c] sm:$0xf]
        %v4730 = vld [vmem:[%s4713 + $0x40] sm:$0xf]
        %v4731 = vld [vmem:[%s4713 + $0x44] sm:$0xf]
        %v4732 = vld [vmem:[%s4713 + $0x48] sm:$0xf]
        %v4733 = vld [vmem:[%s4713 + $0x4c] sm:$0xf]
        %v4734 = vld [vmem:[%s4713 + $0x50] sm:$0xf]
        %v4735 = vld [vmem:[%s4713 + $0x54] sm:$0xf]
        %v4736 = vld [vmem:[%s4713 + $0x58] sm:$0xf]
        %v4737 = vld [vmem:[%s4713 + $0x5c] sm:$0xf]
        %v4738 = vld [vmem:[%s4713 + $0x60] sm:$0xf]
        %v4739 = vld [vmem:[%s4713 + $0x64] sm:$0xf]
        %v4740 = vld [vmem:[%s4713 + $0x68] sm:$0xf]
        %v4741 = vld [vmem:[%s4713 + $0x6c] sm:$0xf]
        %v4742 = vld [vmem:[%s4713 + $0x70] sm:$0xf]
        %v4743 = vld [vmem:[%s4713 + $0x74] sm:$0xf]
        %v4744 = vld [vmem:[%s4713 + $0x78] sm:$0xf]
        %v4745 = vld [vmem:[%s4713 + $0x7c] sm:$0xf]
        %v4746 = vld [vmem:[%s4713 + $0x80] sm:$0xf]
        %v4747 = vld [vmem:[%s4713 + $0x84] sm:$0xf]
        %v4748 = vld [vmem:[%s4713 + $0x88] sm:$0xf]
        %v4749 = vld [vmem:[%s4713 + $0x8c] sm:$0xf]
        %v4750 = vld [vmem:[%s4713 + $0x90] sm:$0xf]
        %v4751 = vld [vmem:[%s4713 + $0x94] sm:$0xf]
        %v4752 = vld [vmem:[%s4713 + $0x98] sm:$0xf]
        %v4753 = vld [vmem:[%s4713 + $0x9c] sm:$0xf]
        %v4754 = vld [vmem:[%s4713 + $0xa0] sm:$0xf]
        %v4755 = vld [vmem:[%s4713 + $0xa4] sm:$0xf]
        %v4756 = vld [vmem:[%s4713 + $0xa8] sm:$0xf]
        %v4757 = vld [vmem:[%s4713 + $0xac] sm:$0xf]
        %v4758 = vld [vmem:[%s4713 + $0xb0] sm:$0xf]
        %v4759 = vld [vmem:[%s4713 + $0xb4] sm:$0xf]
        %v4760 = vld [vmem:[%s4713 + $0xb8] sm:$0xf]
        %v4761 = vld [vmem:[%s4713 + $0xbc] sm:$0xf]
        %v4762 = vld [vmem:[%s4713 + $0xc0] sm:$0xf]
        %v4763 = vld [vmem:[%s4713 + $0xc4] sm:$0xf]
        %v4764 = vld [vmem:[%s4713 + $0xc8] sm:$0xf]
        %v4765 = vld [vmem:[%s4713 + $0xcc] sm:$0xf]
        %v4766 = vld [vmem:[%s4713 + $0xd0] sm:$0xf]
        %v4767 = vld [vmem:[%s4713 + $0xd4] sm:$0xf]
        %v4768 = vld [vmem:[%s4713 + $0xd8] sm:$0xf]
        %v4769 = vld [vmem:[%s4713 + $0xdc] sm:$0xf]
        %v4770 = vld [vmem:[%s4713 + $0xe0] sm:$0xf]
        %v4771 = vld [vmem:[%s4713 + $0xe4] sm:$0xf]
        %v4772 = vld [vmem:[%s4713 + $0xe8] sm:$0xf]
        %v4773 = vld [vmem:[%s4713 + $0xec] sm:$0xf]
        %v4774 = vld [vmem:[%s4713 + $0xf0] sm:$0xf]
        %v4775 = vld [vmem:[%s4713 + $0xf4] sm:$0xf]
        %v4776 = vld [vmem:[%s4713 + $0xf8] sm:$0xf]
        %v4777 = vld [vmem:[%s4713 + $0xfc] sm:$0xf]
        %v4778 = vpack.c.bf16 %v4709, %v4709
        %v4779 = vpack.c.bf16 %v4710, %v4710
        %v4780 = vpack.c.bf16 %v4711, %v4711
        %v4781 = vpack.c.bf16 %v4712, %v4712
        %v4846 = vunpack.c.l.b16 %v4714
        %v4847 = vunpack.c.l.b16 %v4715
        %v4848 = vunpack.c.l.b16 %v4716
        %v4849 = vunpack.c.l.b16 %v4717
        %v4850 = vunpack.c.l.b16 %v4718
        %v4851 = vunpack.c.l.b16 %v4719
        %v4852 = vunpack.c.l.b16 %v4720
        %v4853 = vunpack.c.l.b16 %v4721
        %v4854 = vunpack.c.l.b16 %v4722
        %v4855 = vunpack.c.l.b16 %v4723
        %v4856 = vunpack.c.l.b16 %v4724
        %v4857 = vunpack.c.l.b16 %v4725
        %v4858 = vunpack.c.l.b16 %v4726
        %v4859 = vunpack.c.l.b16 %v4727
        %v4860 = vunpack.c.l.b16 %v4728
        %v4861 = vunpack.c.l.b16 %v4729
        %v4862 = vunpack.c.l.b16 %v4730
        %v4863 = vunpack.c.l.b16 %v4731
        %v4864 = vunpack.c.l.b16 %v4732
        %v4865 = vunpack.c.l.b16 %v4733
        %v4866 = vunpack.c.l.b16 %v4734
        %v4867 = vunpack.c.l.b16 %v4735
        %v4868 = vunpack.c.l.b16 %v4736
        %v4869 = vunpack.c.l.b16 %v4737
        %v4870 = vunpack.c.l.b16 %v4738
        %v4871 = vunpack.c.l.b16 %v4739
        %v4872 = vunpack.c.l.b16 %v4740
        %v4873 = vunpack.c.l.b16 %v4741
        %v4874 = vunpack.c.l.b16 %v4742
        %v4875 = vunpack.c.l.b16 %v4743
        %v4876 = vunpack.c.l.b16 %v4744
        %v4877 = vunpack.c.l.b16 %v4745
        %v4878 = vunpack.c.l.b16 %v4746
        %v4879 = vunpack.c.l.b16 %v4747
        %v4880 = vunpack.c.l.b16 %v4748
        %v4881 = vunpack.c.l.b16 %v4749
        %v4882 = vunpack.c.l.b16 %v4750
        %v4883 = vunpack.c.l.b16 %v4751
        %v4884 = vunpack.c.l.b16 %v4752
        %v4885 = vunpack.c.l.b16 %v4753
        %v4886 = vunpack.c.l.b16 %v4754
        %v4887 = vunpack.c.l.b16 %v4755
        %v4888 = vunpack.c.l.b16 %v4756
        %v4889 = vunpack.c.l.b16 %v4757
        %v4890 = vunpack.c.l.b16 %v4758
        %v4891 = vunpack.c.l.b16 %v4759
        %v4892 = vunpack.c.l.b16 %v4760
        %v4893 = vunpack.c.l.b16 %v4761
        %v4894 = vunpack.c.l.b16 %v4762
        %v4895 = vunpack.c.l.b16 %v4763
        %v4896 = vunpack.c.l.b16 %v4764
        %v4897 = vunpack.c.l.b16 %v4765
        %v4898 = vunpack.c.l.b16 %v4766
        %v4899 = vunpack.c.l.b16 %v4767
        %v4900 = vunpack.c.l.b16 %v4768
        %v4901 = vunpack.c.l.b16 %v4769
        %v4902 = vunpack.c.l.b16 %v4770
        %v4903 = vunpack.c.l.b16 %v4771
        %v4904 = vunpack.c.l.b16 %v4772
        %v4905 = vunpack.c.l.b16 %v4773
        %v4906 = vunpack.c.l.b16 %v4774
        %v4907 = vunpack.c.l.b16 %v4775
        %v4908 = vunpack.c.l.b16 %v4776
        %v4909 = vunpack.c.l.b16 %v4777
        %v4910 = vpack.c.b16 %v4847, %v4846
        %v4911 = vpack.c.b16 %v4849, %v4848
        %v4912 = vpack.c.b16 %v4851, %v4850
        %v4913 = vpack.c.b16 %v4853, %v4852
        %v4914 = vpack.c.b16 %v4855, %v4854
        %v4915 = vpack.c.b16 %v4857, %v4856
        %v4916 = vpack.c.b16 %v4859, %v4858
        %v4917 = vpack.c.b16 %v4861, %v4860
        %v4918 = vpack.c.b16 %v4863, %v4862
        %v4919 = vpack.c.b16 %v4865, %v4864
        %v4920 = vpack.c.b16 %v4867, %v4866
        %v4921 = vpack.c.b16 %v4869, %v4868
        %v4922 = vpack.c.b16 %v4871, %v4870
        %v4923 = vpack.c.b16 %v4873, %v4872
        %v4924 = vpack.c.b16 %v4875, %v4874
        %v4925 = vpack.c.b16 %v4877, %v4876
        %v4926 = vpack.c.b16 %v4879, %v4878
        %v4927 = vpack.c.b16 %v4881, %v4880
        %v4928 = vpack.c.b16 %v4883, %v4882
        %v4929 = vpack.c.b16 %v4885, %v4884
        %v4930 = vpack.c.b16 %v4887, %v4886
        %v4931 = vpack.c.b16 %v4889, %v4888
        %v4932 = vpack.c.b16 %v4891, %v4890
        %v4933 = vpack.c.b16 %v4893, %v4892
        %v4934 = vpack.c.b16 %v4895, %v4894
        %v4935 = vpack.c.b16 %v4897, %v4896
        %v4936 = vpack.c.b16 %v4899, %v4898
        %v4937 = vpack.c.b16 %v4901, %v4900
        %v4938 = vpack.c.b16 %v4903, %v4902
        %v4939 = vpack.c.b16 %v4905, %v4904
        %v4940 = vpack.c.b16 %v4907, %v4906
        %v4941 = vpack.c.b16 %v4909, %v4908
        %4974 = vmatprep.subr.bf16.mxu0 0
        %4975 = vmatpush1.bf16.msra.mxu0 %v4910
        %4976 = vmatprep.subr.bf16.mxu0 0
        %4977 = vmatpush1.bf16.msra.mxu0 %v4911
        %4978 = vmatprep.subr.bf16.mxu0 0
        %4979 = vmatpush1.bf16.msra.mxu0 %v4912
        %4980 = vmatprep.subr.bf16.mxu0 0
        %4981 = vmatpush1.bf16.msra.mxu0 %v4913
        %4982 = vmatprep.subr.bf16.mxu0 0
        %4983 = vmatpush1.bf16.msra.mxu0 %v4914
        %4984 = vmatprep.subr.bf16.mxu0 0
        %4985 = vmatpush1.bf16.msra.mxu0 %v4915
        %4986 = vmatprep.subr.bf16.mxu0 0
        %4987 = vmatpush1.bf16.msra.mxu0 %v4916
        %4988 = vmatprep.subr.bf16.mxu0 0
        %4989 = vmatpush1.bf16.msra.mxu0 %v4917
        %4990 = vmatprep.subr.bf16.mxu0 0
        %4991 = vmatpush1.bf16.msra.mxu0 %v4918
        %4992 = vmatprep.subr.bf16.mxu0 0
        %4993 = vmatpush1.bf16.msra.mxu0 %v4919
        %4994 = vmatprep.subr.bf16.mxu0 0
        %4995 = vmatpush1.bf16.msra.mxu0 %v4920
        %4996 = vmatprep.subr.bf16.mxu0 0
        %4997 = vmatpush1.bf16.msra.mxu0 %v4921
        %4998 = vmatprep.subr.bf16.mxu0 0
        %4999 = vmatpush1.bf16.msra.mxu0 %v4922
        %5000 = vmatprep.subr.bf16.mxu0 0
        %5001 = vmatpush1.bf16.msra.mxu0 %v4923
        %5002 = vmatprep.subr.bf16.mxu0 0
        %5003 = vmatpush1.bf16.msra.mxu0 %v4924
        %5004 = vmatprep.subr.bf16.mxu0 0
        %5005 = vmatpush1.bf16.msra.mxu0 %v4925
        %5006 = vmatprep.mubr.bf16.mxu0 %v4779
        %5007 = vmatmul.mubr.bf16.gmra.mrb[0].mxu0 %v4778
        %v5008 = vpop.f32.mrb[0].mxu0
        %v5009 = vadd.f32 0.0, %v5008
        %v5010 = vpop.f32.mrb[0].mxu0
        %v5011 = vpop.f32.mrb[0].mxu0
        %v5012 = vpop.f32.mrb[0].mxu0
        %5013 = vdwg.mxu0
        %5014 = vmatprep.subr.bf16.mxu0 0
        %5015 = vmatpush1.bf16.msra.mxu0 %v4926
        %5016 = vmatprep.subr.bf16.mxu0 0
        %5017 = vmatpush1.bf16.msra.mxu0 %v4927
        %5018 = vmatprep.subr.bf16.mxu0 0
        %5019 = vmatpush1.bf16.msra.mxu0 %v4928
        %5020 = vmatprep.subr.bf16.mxu0 0
        %5021 = vmatpush1.bf16.msra.mxu0 %v4929
        %5022 = vmatprep.subr.bf16.mxu0 0
        %5023 = vmatpush1.bf16.msra.mxu0 %v4930
        %5024 = vmatprep.subr.bf16.mxu0 0
        %5025 = vmatpush1.bf16.msra.mxu0 %v4931
        %5026 = vmatprep.subr.bf16.mxu0 0
        %5027 = vmatpush1.bf16.msra.mxu0 %v4932
        %5028 = vmatprep.subr.bf16.mxu0 0
        %5029 = vmatpush1.bf16.msra.mxu0 %v4933
        %5030 = vmatprep.subr.bf16.mxu0 0
        %5031 = vmatpush1.bf16.msra.mxu0 %v4934
        %5032 = vmatprep.subr.bf16.mxu0 0
        %5033 = vmatpush1.bf16.msra.mxu0 %v4935
        %5034 = vmatprep.subr.bf16.mxu0 0
        %5035 = vmatpush1.bf16.msra.mxu0 %v4936
        %5036 = vmatprep.subr.bf16.mxu0 0
        %5037 = vmatpush1.bf16.msra.mxu0 %v4937
        %5038 = vmatprep.subr.bf16.mxu0 0
        %5039 = vmatpush1.bf16.msra.mxu0 %v4938
        %5040 = vmatprep.subr.bf16.mxu0 0
        %5041 = vmatpush1.bf16.msra.mxu0 %v4939
        %5042 = vmatprep.subr.bf16.mxu0 0
        %5043 = vmatpush1.bf16.msra.mxu0 %v4940
        %5044 = vmatprep.subr.bf16.mxu0 0
        %5045 = vmatpush1.bf16.msra.mxu0 %v4941
        %5046 = vmatprep.mubr.bf16.mxu0 %v4781
        %5047 = vmatmul.mubr.bf16.gmra.mrb[0].mxu0 %v4780
        %v5048 = vpop.f32.mrb[0].mxu0
        %v5049 = vadd.f32 %v5009, %v5048
        %v5050 = vpop.f32.mrb[0].mxu0
        %v5051 = vpop.f32.mrb[0].mxu0
        %v5052 = vpop.f32.mrb[0].mxu0
        %5053 = vdwg.mxu0
        %v5054 = vadd.f32 %v4380, %v5049
        %s5055 = scalar_lea.vmem [#allocation11], 1
        %v5056 = vld [vmem:[%s5055] sm:$0x1]
        %v5058 = vlaneseq
        %v5059 = vshrl.u32 %v5058, 7
        %v5060 = vsub.s32 0, %v5059
        %v5061 = vrot.slane %v5056, %v5060
        %v5063 = vadd.f32 %v5054, %v5061
        %v5064 = vld [vmem:[%s14] sm:$0x1]
        %v5065 = vld [vmem:[%s15] sm:$0x1]
        %5066 = vadd.xlane.f32.xlu0 %v5063
        %v5067 = vpop.xlane.xlu0 %5066
        %v5068 = vmul.f32 %v5067, %v879
        %v5069 = vsub.f32 %v5063, %v5068
        %v5070 = vmul.f32 %v5069, %v5069
        %5071 = vadd.xlane.f32.xlu0 %v5070
        %v5072 = vpop.xlane.xlu0 %5071
        %v5073 = vmul.f32 %v5072, %v879
        %v5074 = vadd.f32 %v5073, 1e-05
        %v5075 = vrsqrt.pop %v5074
        %v5076 = vmul.f32 %v5069, %v5075
        %v5078 = vlaneseq
        %v5079 = vshrl.u32 %v5078, 7
        %v5080 = vsub.s32 0, %v5079
        %v5081 = vrot.slane %v5064, %v5080
        %v5083 = vmul.f32 %v5076, %v5081
        %v5085 = vlaneseq
        %v5086 = vshrl.u32 %v5085, 7
        %v5087 = vsub.s32 0, %v5086
        %v5088 = vrot.slane %v5065, %v5087
        %v5090 = vadd.f32 %v5083, %v5088
        %v5091 = vld [vmem:[#allocation13] sm:$0xff]
        %v5092 = vld [vmem:[#allocation13 + $0x8] sm:$0xff]
        %v5093 = vld [vmem:[#allocation13 + $0x10] sm:$0xff]
        %v5094 = vld [vmem:[#allocation13 + $0x18] sm:$0xff]
        %v5095 = vld [vmem:[#allocation13 + $0x20] sm:$0xff]
        %v5096 = vld [vmem:[#allocation13 + $0x28] sm:$0xff]
        %v5097 = vld [vmem:[#allocation13 + $0x30] sm:$0xff]
        %v5098 = vld [vmem:[#allocation13 + $0x38] sm:$0xff]
        %v5099 = vld [vmem:[#allocation13 + $0x40] sm:$0xff]
        %v5100 = vld [vmem:[#allocation13 + $0x48] sm:$0xff]
        %v5101 = vld [vmem:[#allocation13 + $0x50] sm:$0xff]
        %v5102 = vld [vmem:[#allocation13 + $0x58] sm:$0xff]
        %v5103 = vld [vmem:[#allocation13 + $0x60] sm:$0xff]
        %v5104 = vld [vmem:[#allocation13 + $0x68] sm:$0xff]
        %v5105 = vld [vmem:[#allocation13 + $0x70] sm:$0xff]
        %v5106 = vld [vmem:[#allocation13 + $0x78] sm:$0xff]
        %v5107 = vpack.c.bf16 %v5090, %v5090
        %v5108 = vld [vmem:[#allocation14] sm:$0x3]
        %v5110 = vlaneseq
        %v5111 = vshrl.u32 %v5110, 7
        %v5112 = vsub.s32 0, %v5111
        %v5113 = vrot.slane %v5108, %v5112
        %v5114 = vlaneseq
        %v5115 = vshrl.u32 %v5114, 7
        %v5116 = vsub.s32 1, %v5115
        %v5117 = vrot.slane %v5108, %v5116
        %v5136 = vunpack.c.l.b16 %v5091
        %v5137 = vunpack.c.h.b16 %v5091
        %v5138 = vunpack.c.l.b16 %v5092
        %v5139 = vunpack.c.h.b16 %v5092
        %v5140 = vunpack.c.l.b16 %v5093
        %v5141 = vunpack.c.h.b16 %v5093
        %v5142 = vunpack.c.l.b16 %v5094
        %v5143 = vunpack.c.h.b16 %v5094
        %v5144 = vunpack.c.l.b16 %v5095
        %v5145 = vunpack.c.h.b16 %v5095
        %v5146 = vunpack.c.l.b16 %v5096
        %v5147 = vunpack.c.h.b16 %v5096
        %v5148 = vunpack.c.l.b16 %v5097
        %v5149 = vunpack.c.h.b16 %v5097
        %v5150 = vunpack.c.l.b16 %v5098
        %v5151 = vunpack.c.h.b16 %v5098
        %v5152 = vunpack.c.l.b16 %v5099
        %v5153 = vunpack.c.h.b16 %v5099
        %v5154 = vunpack.c.l.b16 %v5100
        %v5155 = vunpack.c.h.b16 %v5100
        %v5156 = vunpack.c.l.b16 %v5101
        %v5157 = vunpack.c.h.b16 %v5101
        %v5158 = vunpack.c.l.b16 %v5102
        %v5159 = vunpack.c.h.b16 %v5102
        %v5160 = vunpack.c.l.b16 %v5103
        %v5161 = vunpack.c.h.b16 %v5103
        %v5162 = vunpack.c.l.b16 %v5104
        %v5163 = vunpack.c.h.b16 %v5104
        %v5164 = vunpack.c.l.b16 %v5105
        %v5165 = vunpack.c.h.b16 %v5105
        %v5166 = vunpack.c.l.b16 %v5106
        %v5167 = vunpack.c.h.b16 %v5106
        %v5168 = vpack.c.b16 %v5138, %v5136
        %v5169 = vpack.c.b16 %v5139, %v5137
        %v5170 = vpack.c.b16 %v5142, %v5140
        %v5171 = vpack.c.b16 %v5143, %v5141
        %v5172 = vpack.c.b16 %v5146, %v5144
        %v5173 = vpack.c.b16 %v5147, %v5145
        %v5174 = vpack.c.b16 %v5150, %v5148
        %v5175 = vpack.c.b16 %v5151, %v5149
        %v5176 = vpack.c.b16 %v5154, %v5152
        %v5177 = vpack.c.b16 %v5155, %v5153
        %v5178 = vpack.c.b16 %v5158, %v5156
        %v5179 = vpack.c.b16 %v5159, %v5157
        %v5180 = vpack.c.b16 %v5162, %v5160
        %v5181 = vpack.c.b16 %v5163, %v5161
        %v5182 = vpack.c.b16 %v5166, %v5164
        %v5183 = vpack.c.b16 %v5167, %v5165
        %5200 = vmatprep.subr.bf16.mxu0 %v5169
        %5201 = vmatpush1.bf16.msra.mxu0 %v5168
        %5202 = vmatprep.subr.bf16.mxu0 %v5171
        %5203 = vmatpush1.bf16.msra.mxu0 %v5170
        %5204 = vmatprep.subr.bf16.mxu0 %v5173
        %5205 = vmatpush1.bf16.msra.mxu0 %v5172
        %5206 = vmatprep.subr.bf16.mxu0 %v5175
        %5207 = vmatpush1.bf16.msra.mxu0 %v5174
        %5208 = vmatprep.subr.bf16.mxu0 %v5177
        %5209 = vmatpush1.bf16.msra.mxu0 %v5176
        %5210 = vmatprep.subr.bf16.mxu0 %v5179
        %5211 = vmatpush1.bf16.msra.mxu0 %v5178
        %5212 = vmatprep.subr.bf16.mxu0 %v5181
        %5213 = vmatpush1.bf16.msra.mxu0 %v5180
        %5214 = vmatprep.subr.bf16.mxu0 %v5183
        %5215 = vmatpush1.bf16.msra.mxu0 %v5182
        %5216 = vmatprep.subr.bf16.mxu0 0
        %5217 = vmatpush1.bf16.msra.mxu0 0
        %5218 = vmatprep.subr.bf16.mxu0 0
        %5219 = vmatpush1.bf16.msra.mxu0 0
        %5220 = vmatprep.subr.bf16.mxu0 0
        %5221 = vmatpush1.bf16.msra.mxu0 0
        %5222 = vmatprep.subr.bf16.mxu0 0
        %5223 = vmatpush1.bf16.msra.mxu0 0
        %5224 = vmatprep.subr.bf16.mxu0 0
        %5225 = vmatpush1.bf16.msra.mxu0 0
        %5226 = vmatprep.subr.bf16.mxu0 0
        %5227 = vmatpush1.bf16.msra.mxu0 0
        %5228 = vmatprep.subr.bf16.mxu0 0
        %5229 = vmatpush1.bf16.msra.mxu0 0
        %5230 = vmatprep.subr.bf16.mxu0 0
        %5231 = vmatpush1.bf16.msra.mxu0 0
        %5232 = vmatprep.mubr.bf16.mxu0 0
        %5233 = vmatmul.mubr.bf16.gmra.mrb[0].mxu0 %v5107
        %v5234 = vpop.f32.mrb[0].mxu0
        %v5235 = vadd.f32 %v5113, %v5234
        %v5236 = vpop.f32.mrb[0].mxu0
        %v5237 = vadd.f32 %v5117, %v5236
        %v5238 = vpop.f32.mrb[0].mxu0
        %v5239 = vpop.f32.mrb[0].mxu0
        %5240 = vdwg.mxu0
        %5241 = vst [vmem:[%s681] sm:$0xff] %v5235
        %5242 = vst [vmem:[%s681 + $0x8] sm:$0xff] %v5237
        %s5243 = sand.u32 %s428, 1
        %s5244 = scalar_lea.sflag [#allocation4], %s5243
        %s5245 = sand.u32 %s428, 1
        %s5246 = smul.addr %s5245, 16
        %s5247 = scalar_lea.vmem [#allocation16], %s5246
        // Predicated region
        $region125: #{gpt_forward.1} parent=91 // pred_check
          %p5248 = pneg %p438
        $region126: #{gpt_forward.1} parent=91 // pred_check_branch
          %5250 = sbr.rel (%p5248) target = $region128
        $region127: #{gpt_forward.1} parent=91 // pred_region
          %s5252 = ssub.s32 256, 256
          %5253 = vsyncadd %s5244, %s5252
          %s5254 = smul.addr %s37, 2
          %s5255 = smul.addr %s5254, 128
          %s5256 = scalar_lea.hbm %s18, %s5255
          %s5258 = sshll.u32 %s5247, 4
          %s5259 = int_to_ptr.vmem [resolvable:$true] %s5258
          %5261 = dma.vmem_to_hbm [thread:$0]  %s5259, 256, %s5256, %s5244
        $region128: #{gpt_forward.1} parent=91 // pred_fallthru
          _
      $region92: #{gpt_forward.1} parent=5 // pred_fallthru
        _
      %p5262 = scmp.le.s32.totalorder 2, %s32
      // Predicated region
      $region129: #{gpt_forward.1} parent=5 // pred_check
        %p5263 = pneg %p5262
      $region130: #{gpt_forward.1} parent=5 // pred_check_branch
        %5265 = sbr.rel (%p5263) target = $region132
      $region131: #{gpt_forward.1} parent=5 // pred_region
        %s5266 = ssub.s32 %s32, 2
        // Predicated region
        $region133: #{gpt_forward.1} parent=131 // pred_check
          %p5267 = pneg %p444
        $region134: #{gpt_forward.1} parent=131 // pred_check_branch
          %5269 = sbr.rel (%p5267) target = $region136
        $region135: #{gpt_forward.1} parent=131 // pred_region
          %s5270 = sand.u32 %s429, 1
          %s5271 = scalar_lea.sflag [#allocation4], %s5270
          %s5272 = sand.u32 %s429, 1
          %s5273 = smul.addr %s5272, 16
          %s5274 = scalar_lea.vmem [#allocation16], %s5273
          %5275 = dma.done %s5271, 256
        $region136: #{gpt_forward.1} parent=131 // pred_fallthru
          _
      $region132: #{gpt_forward.1} parent=5 // pred_fallthru
        _
    $region6: #{gpt_forward.1} parent=1 // loop_footer
      %s36 = sadd.s32 1, %s32
    $region7: #{gpt_forward.1} parent=1 // loop_footer_branch
      %31 = sbr.rel target = $region3
    $region8: #{gpt_forward.1} parent=1 // loop_exit
      _
    %5276 = vsyncpa [#allocation3], 1
    %s5277 = scalar_lea.sflag [#allocation3], 1
    %5278 = vsyncpa %s5277, 1
    %5279 = vsyncpa [#allocation6], 1
    %5280 = vsyncpa [#allocation9], 1
    %5281 = vsyncpa [#allocation12], 1
    %5282 = vsyncpa [#allocation15], 1
    %5283 = vsyncpa [#allocation4], 1
    %s5284 = scalar_lea.sflag [#allocation4], 1
    %5285 = vsyncpa %s5284, 1

</llo_original>
